<compile_context>
chip_gen: v6e
topology: v6e:2x2x1
jax: 0.10.0
libtpu: 0.0.40
codegen_flags: <defaults>
</compile_context>

<pallas_src>
import functools

import jax
import jax.numpy as jnp
import numpy as np
from jax.experimental import pallas as pl
from jax.experimental.pallas import tpu as pltpu


# ----------------------------------------------------------------------------
# Pallas kernel: input mapping + full ODE solver unroll + output mapping.
# ----------------------------------------------------------------------------
def _ltc_kernel(ode_unfolds, epsilon, dims, off, b_pad,
                # inputs
                inputs_t_ref, state_ref, p_ref,
                # outputs
                out_ref, next_state_ref):
    S, N, BN = dims["S"], dims["N"], dims["BN"]
    f32 = jnp.float32
    hi = jax.lax.Precision.HIGHEST

    def sect(name, rows):
        o = off[name]                       # static python int (8-row aligned)
        return p_ref[o:o + rows, :]

    # ----- synapse parameters / selection constants, lane layout (pre, B*N) --
    mu, sigma = sect("mu", N), sect("sigma", N)
    wm, wme = sect("wm", N), sect("wme", N)            # w*mask, w*mask*erev
    foldT = sect("foldT", N)                           # [i, l] = (l % N == i)
    blockdiag = sect("blockdiag", BN)                  # [l, m] = (l//N == m//N)
    sens_mu, sens_sigma = sect("sens_mu", S), sect("sens_sigma", S)
    sens_wm, sens_wme = sect("sens_wm", S), sect("sens_wme", S)
    iw, ib = sect("iw", S), sect("ib", S)              # input map (lane-bcast)
    expand = sect("expand", b_pad)                     # [b, m] = (m//N == b)
    cmt, glvl, cmgl = sect("cmt", 1), sect("glvl", 1), sect("cmgl", 1)
    ow, ob = sect("ow", 1), sect("ob", 1)              # output map, flat layout

    # ----- _map_inputs + sensory synapse contribution (computed once) --------
    # inputs_lane[s, b*N+j] = inputs[b, s]  (exact one-hot selection matmul)
    inputs_lane = jnp.dot(inputs_t_ref[...], expand,
                          precision=hi, preferred_element_type=f32)   # (S, BN)
    x_lane = inputs_lane * iw + ib
    s_sig = jax.nn.sigmoid(sens_sigma * (x_lane - sens_mu))
    sens_num = jnp.sum(sens_wme * s_sig, axis=0, keepdims=True)       # (1, BN)
    sens_den = jnp.sum(sens_wm * s_sig, axis=0, keepdims=True)        # (1, BN)

    # ----- ODE unfolds, state carried flat as (1, B*N) ------------------------
    def body(_, v_flat):
        # v_lane[pre, b*N+post] = v_flat[0, b*N+pre]: one K=128 selection matmul
        v_lane = jnp.dot(foldT * v_flat, blockdiag,
                         precision=hi, preferred_element_type=f32)    # (N, BN)
        sig = jax.nn.sigmoid(sigma * (v_lane - mu))
        w_num = jnp.sum(wme * sig, axis=0, keepdims=True) + sens_num  # (1, BN)
        w_den = jnp.sum(wm * sig, axis=0, keepdims=True) + sens_den   # (1, BN)
        numerator = cmt * v_flat + glvl * w_num
        denominator = cmgl + w_den
        return numerator / (denominator + epsilon)

    v_flat = jax.lax.fori_loop(0, ode_unfolds, body, state_ref[...],
                               unroll=True)

    # ----- lane-dense stores ---------------------------------------------------
    next_state_ref[...] = v_flat
    # _map_outputs in the flat layout (ow/ob are zero past motor_size; the
    # wrapper slices [:, :M] after a free reshape).
    out_ref[...] = v_flat * ow + ob


# ----------------------------------------------------------------------------
# One-time parameter preparation (layout plumbing + exact mask/erev folding,
# loop-invariant precomputation, single packed VMEM slab).
# ----------------------------------------------------------------------------
def _build_slab(blocks):
    """Stack named (rows, W) float32 blocks into one slab; 8-row align starts."""
    width = blocks[0][1].shape[1]
    parts, offsets, cur = [], {}, 0
    for name, arr in blocks:
        arr = np.asarray(arr, np.float32)
        assert arr.ndim == 2 and arr.shape[1] == width
        offsets[name] = cur
        parts.append(arr)
        cur += arr.shape[0]
        pad = (-cur) % 8
        if pad:
            parts.append(np.zeros((pad, width), np.float32))
            cur += pad
    return np.concatenate(parts, axis=0), offsets


def prepare_ltc_params(params, batch_size, *, elapsed_time=1.0, ode_unfolds=6):
    B = int(batch_size)
    p = {k: np.asarray(v, np.float32) for k, v in params.items()}
    S, N = p["sensory_w"].shape
    M = int(p["output_w"].shape[0])
    BN = B * N
    b_pad = -(-B // 8) * 8

    # Exact folds: mask in {0,1}, erev in {-1,0,1}.
    w_masked = p["w"] * p["sparsity_mask"]
    w_masked_erev = w_masked * p["erev"]
    sw_masked = p["sensory_w"] * p["sensory_sparsity_mask"]
    sw_masked_erev = sw_masked * p["sensory_erev"]

    tile_b = lambda a: np.tile(a, (1, B))                    # (pre,N)->(pre,B*N)
    flat = lambda a: np.tile(a.reshape(1, N), (1, B))        # (N,)   ->(1, B*N)
    lane_bcast = lambda a: np.tile(a.reshape(S, 1), (1, BN))  # (S,)  ->(S, B*N)

    # Loop-invariant per-neuron vectors (trace-time constants).
    cm_t = p["cm"] / np.float32(elapsed_time / ode_unfolds)
    gl_vl = p["gleak"] * p["vleak"]
    cm_gl = cm_t + p["gleak"]

    # Output affine map padded past motor_size with zeros (flat layout).
    ow = np.zeros((N,), np.float32); ow[:M] = p["output_w"]
    ob = np.zeros((N,), np.float32); ob[:M] = p["output_b"]

    # Selection constants.
    lane = np.arange(BN)
    foldT = (lane[None, :] % N == np.arange(N)[:, None]).astype(np.float32)
    expand = (lane[None, :] // N == np.arange(B)[:, None]).astype(np.float32)
    blockdiag = (lane[:, None] // N == lane[None, :] // N).astype(np.float32)

    blocks = [
        ("mu", tile_b(p["mu"])), ("sigma", tile_b(p["sigma"])),
        ("wm", tile_b(w_masked)), ("wme", tile_b(w_masked_erev)),
        ("foldT", foldT), ("blockdiag", blockdiag),
        ("sens_mu", tile_b(p["sensory_mu"])),
        ("sens_sigma", tile_b(p["sensory_sigma"])),
        ("sens_wm", tile_b(sw_masked)), ("sens_wme", tile_b(sw_masked_erev)),
        ("iw", lane_bcast(p["input_w"])), ("ib", lane_bcast(p["input_b"])),
        ("expand", expand),
        ("cmt", flat(cm_t)), ("glvl", flat(gl_vl)), ("cmgl", flat(cm_gl)),
        ("ow", flat(ow)), ("ob", flat(ob)),
    ]
    slab, offsets = _build_slab(blocks)
    return {
        "slab": jnp.asarray(slab),
        "offsets": offsets,
        "dims": dict(B=B, S=int(S), N=int(N), M=M, BN=BN, b_pad=b_pad),
        "ode_unfolds": int(ode_unfolds),
        "elapsed_time": float(elapsed_time),
    }


# ----------------------------------------------------------------------------
# Wrapper
# ----------------------------------------------------------------------------
def ltc_forward(inputs, state, prepared, *, epsilon=1e-8):
    dims = prepared["dims"]
    B, S, N, M = dims["B"], dims["S"], dims["N"], dims["M"]
    BN, b_pad = dims["BN"], dims["b_pad"]
    assert inputs.shape == (B, S) and state.shape == (B, N)

    # Layout plumbing only: transposed + zero-padded inputs, flat state row.
    inputs_t = jnp.pad(jnp.asarray(inputs, jnp.float32).T,
                       ((0, 0), (0, b_pad - B)))
    state_flat = jnp.asarray(state, jnp.float32).reshape(1, BN)

    kernel = functools.partial(_ltc_kernel, int(prepared["ode_unfolds"]),
                               float(epsilon), dims, prepared["offsets"], b_pad)

    out_flat, ns_flat = pl.pallas_call(
        kernel,
        out_shape=(
            jax.ShapeDtypeStruct((1, BN), jnp.float32),
            jax.ShapeDtypeStruct((1, BN), jnp.float32),
        ),
        in_specs=[pl.BlockSpec(memory_space=pltpu.MemorySpace.VMEM)] * 3,
        out_specs=(
            pl.BlockSpec(memory_space=pltpu.MemorySpace.VMEM),
            pl.BlockSpec(memory_space=pltpu.MemorySpace.VMEM),
        ),
    )(inputs_t, state_flat, prepared["slab"])

    next_state = ns_flat.reshape(B, N).astype(state.dtype)
    outputs = out_flat.reshape(B, N)[:, :M].astype(inputs.dtype)
    return outputs, next_state


# ----------------------------------------------------------------------------
# Pure-JAX reference (mirrors the PyTorch forward) for correctness checking.
# ----------------------------------------------------------------------------
def ltc_forward_ref(inputs, state, params, *, elapsed_time=1.0, ode_unfolds=6,
                    epsilon=1e-8, motor_size=None):
    if motor_size is None:
        motor_size = params["output_w"].shape[0]
    x = inputs * params["input_w"] + params["input_b"]
    v_pre = state

    def sig(v, mu, sigma):
        return jax.nn.sigmoid(sigma * (v[..., None] - mu))

    sens_act = params["sensory_w"] * sig(x, params["sensory_mu"],
                                         params["sensory_sigma"])
    sens_act = sens_act * params["sensory_sparsity_mask"]
    sensory_num = jnp.sum(sens_act * params["sensory_erev"], axis=1)
    sensory_den = jnp.sum(sens_act, axis=1)
    cm_t = params["cm"] / (elapsed_time / ode_unfolds)
    for _ in range(ode_unfolds):
        w_act = params["w"] * sig(v_pre, params["mu"], params["sigma"])
        w_act = w_act * params["sparsity_mask"]
        w_num = jnp.sum(w_act * params["erev"], axis=1) + sensory_num
        w_den = jnp.sum(w_act, axis=1) + sensory_den
        numerator = cm_t * v_pre + params["gleak"] * params["vleak"] * w_num
        denominator = cm_t + params["gleak"] + w_den
        v_pre = numerator / (denominator + epsilon)
    out = v_pre[:, :motor_size] * params["output_w"] + params["output_b"]
    return out, v_pre


# ----------------------------------------------------------------------------
# Deterministic synthetic parameter initialization (mirrors _allocate_parameters
# shapes / init ranges; erev & sparsity come from a synthetic wiring with
# polarities in {-1, 0, +1}).
# ----------------------------------------------------------------------------
def init_params(key, sensory_size, state_size, motor_size):
    ks = jax.random.split(key, 16)
    u = lambda k, shape, lo, hi: jax.random.uniform(
        k, shape, dtype=jnp.float32, minval=lo, maxval=hi)

    adjacency = jax.random.randint(ks[0], (state_size, state_size), -1, 2)
    sensory_adjacency = jax.random.randint(
        ks[1], (sensory_size, state_size), -1, 2)

    params = {
        "gleak": u(ks[2], (state_size,), 0.001, 1.0),
        "vleak": u(ks[3], (state_size,), -0.2, 0.2),
        "cm": u(ks[4], (state_size,), 0.4, 0.6),
        "sigma": u(ks[5], (state_size, state_size), 3.0, 8.0),
        "mu": u(ks[6], (state_size, state_size), 0.3, 0.8),
        "w": u(ks[7], (state_size, state_size), 0.001, 1.0),
        "erev": adjacency.astype(jnp.float32),
        "sensory_sigma": u(ks[8], (sensory_size, state_size), 3.0, 8.0),
        "sensory_mu": u(ks[9], (sensory_size, state_size), 0.3, 0.8),
        "sensory_w": u(ks[10], (sensory_size, state_size), 0.001, 1.0),
        "sensory_erev": sensory_adjacency.astype(jnp.float32),
        "sparsity_mask": jnp.abs(adjacency).astype(jnp.float32),
        "sensory_sparsity_mask": jnp.abs(sensory_adjacency).astype(jnp.float32),
        "input_w": jnp.ones((sensory_size,), jnp.float32),
        "input_b": jnp.zeros((sensory_size,), jnp.float32),
        "output_w": jnp.ones((motor_size,), jnp.float32),
        "output_b": jnp.zeros((motor_size,), jnp.float32),
    }
    return params


if __name__ == "__main__":
    B = 4            # batch
    SENSORY = 8      # sensory (input) neurons
    UNITS = 32       # LTC state neurons  (B * UNITS = 128 -> one full lane row)
    MOTOR = 8        # motor (output) neurons
    ELAPSED_TIME = 1.0
    ODE_UNFOLDS = 6
    EPSILON = 1e-8

    key = jax.random.PRNGKey(0)
    kp, kx, ks = jax.random.split(key, 3)
    params = init_params(kp, SENSORY, UNITS, MOTOR)
    inputs = jax.random.normal(kx, (B, SENSORY), dtype=jnp.float32)
    state = jax.random.normal(ks, (B, UNITS), dtype=jnp.float32)

    prepared = prepare_ltc_params(params, B, elapsed_time=ELAPSED_TIME,
                                  ode_unfolds=ODE_UNFOLDS)

    outputs, next_state = ltc_forward(inputs, state, prepared, epsilon=EPSILON)
    jax.block_until_ready((outputs, next_state))

    ref_out, ref_state = ltc_forward_ref(
        inputs, state, params,
        elapsed_time=ELAPSED_TIME, ode_unfolds=ODE_UNFOLDS,
        epsilon=EPSILON, motor_size=MOTOR)

    np.testing.assert_allclose(np.asarray(outputs), np.asarray(ref_out),
                               rtol=1e-4, atol=1e-5)
    np.testing.assert_allclose(np.asarray(next_state), np.asarray(ref_state),
                               rtol=1e-4, atol=1e-5)
    print("KERNEL_OK")
</pallas_src>

<mosaic_0001>
module attributes {stable_mosaic.version = 11 : i64} {
  func.func @_ltc_kernel(%arg0: memref<8x8xf32, #tpu.memory_space<vmem>>, %arg1: memref<1x128xf32, #tpu.memory_space<vmem>>, %arg2: memref<384x128xf32, #tpu.memory_space<vmem>>, %arg3: memref<1x128xf32, #tpu.memory_space<vmem>>, %arg4: memref<1x128xf32, #tpu.memory_space<vmem>>) attributes {dimension_semantics = [], scalar_prefetch = 0 : i64, scratch_operands = 0 : i64, tpu.core_type = #tpu.core_type<tc>} {
    %c0 = arith.constant 0 : index
    %c0_0 = arith.constant 0 : index
    %0 = vector.load %arg2[%c0, %c0_0] : memref<384x128xf32, #tpu.memory_space<vmem>>, vector<32x128xf32>
    %c32 = arith.constant 32 : index
    %c0_1 = arith.constant 0 : index
    %1 = vector.load %arg2[%c32, %c0_1] : memref<384x128xf32, #tpu.memory_space<vmem>>, vector<32x128xf32>
    %c64 = arith.constant 64 : index
    %c0_2 = arith.constant 0 : index
    %2 = vector.load %arg2[%c64, %c0_2] : memref<384x128xf32, #tpu.memory_space<vmem>>, vector<32x128xf32>
    %c96 = arith.constant 96 : index
    %c0_3 = arith.constant 0 : index
    %3 = vector.load %arg2[%c96, %c0_3] : memref<384x128xf32, #tpu.memory_space<vmem>>, vector<32x128xf32>
    %c128 = arith.constant 128 : index
    %c0_4 = arith.constant 0 : index
    %4 = vector.load %arg2[%c128, %c0_4] : memref<384x128xf32, #tpu.memory_space<vmem>>, vector<32x128xf32>
    %c160 = arith.constant 160 : index
    %c0_5 = arith.constant 0 : index
    %5 = vector.load %arg2[%c160, %c0_5] : memref<384x128xf32, #tpu.memory_space<vmem>>, vector<128x128xf32>
    %c288 = arith.constant 288 : index
    %c0_6 = arith.constant 0 : index
    %6 = vector.load %arg2[%c288, %c0_6] : memref<384x128xf32, #tpu.memory_space<vmem>>, vector<8x128xf32>
    %c296 = arith.constant 296 : index
    %c0_7 = arith.constant 0 : index
    %7 = vector.load %arg2[%c296, %c0_7] : memref<384x128xf32, #tpu.memory_space<vmem>>, vector<8x128xf32>
    %c304 = arith.constant 304 : index
    %c0_8 = arith.constant 0 : index
    %8 = vector.load %arg2[%c304, %c0_8] : memref<384x128xf32, #tpu.memory_space<vmem>>, vector<8x128xf32>
    %c312 = arith.constant 312 : index
    %c0_9 = arith.constant 0 : index
    %9 = vector.load %arg2[%c312, %c0_9] : memref<384x128xf32, #tpu.memory_space<vmem>>, vector<8x128xf32>
    %c320 = arith.constant 320 : index
    %c0_10 = arith.constant 0 : index
    %10 = vector.load %arg2[%c320, %c0_10] : memref<384x128xf32, #tpu.memory_space<vmem>>, vector<8x128xf32>
    %c328 = arith.constant 328 : index
    %c0_11 = arith.constant 0 : index
    %11 = vector.load %arg2[%c328, %c0_11] : memref<384x128xf32, #tpu.memory_space<vmem>>, vector<8x128xf32>
    %c336 = arith.constant 336 : index
    %c0_12 = arith.constant 0 : index
    %12 = vector.load %arg2[%c336, %c0_12] : memref<384x128xf32, #tpu.memory_space<vmem>>, vector<8x128xf32>
    %c344 = arith.constant 344 : index
    %c0_13 = arith.constant 0 : index
    %13 = vector.load %arg2[%c344, %c0_13] : memref<384x128xf32, #tpu.memory_space<vmem>>, vector<1x128xf32>
    %c352 = arith.constant 352 : index
    %c0_14 = arith.constant 0 : index
    %14 = vector.load %arg2[%c352, %c0_14] : memref<384x128xf32, #tpu.memory_space<vmem>>, vector<1x128xf32>
    %c360 = arith.constant 360 : index
    %c0_15 = arith.constant 0 : index
    %15 = vector.load %arg2[%c360, %c0_15] : memref<384x128xf32, #tpu.memory_space<vmem>>, vector<1x128xf32>
    %c368 = arith.constant 368 : index
    %c0_16 = arith.constant 0 : index
    %16 = vector.load %arg2[%c368, %c0_16] : memref<384x128xf32, #tpu.memory_space<vmem>>, vector<1x128xf32>
    %c376 = arith.constant 376 : index
    %c0_17 = arith.constant 0 : index
    %17 = vector.load %arg2[%c376, %c0_17] : memref<384x128xf32, #tpu.memory_space<vmem>>, vector<1x128xf32>
    %c0_18 = arith.constant 0 : index
    %c0_19 = arith.constant 0 : index
    %18 = vector.load %arg0[%c0_18, %c0_19] : memref<8x8xf32, #tpu.memory_space<vmem>>, vector<8x8xf32>
    %cst = arith.constant dense<0.000000e+00> : vector<8x128xf32>
    %19 = tpu.matmul %18, %12, %cst {dimension_numbers = #tpu.dot_dimension_numbers<[1], [0], [0], [1], [0, 0, 1, 1], [], []>, precision = #tpu.contract_precision<fp32>} : vector<8x8xf32>, vector<8x128xf32>, vector<8x128xf32> -> vector<8x128xf32>
    %20 = arith.mulf %19, %10 : vector<8x128xf32>
    %21 = arith.addf %20, %11 : vector<8x128xf32>
    %22 = arith.subf %21, %6 : vector<8x128xf32>
    %23 = arith.mulf %7, %22 : vector<8x128xf32>
    %24 = arith.negf %23 : vector<8x128xf32>
    %25 = math.exp %24 : vector<8x128xf32>
    %cst_20 = arith.constant 1.000000e+00 : f32
    %26 = vector.broadcast %cst_20 : f32 to vector<8x128xf32>
    %27 = arith.addf %26, %25 : vector<8x128xf32>
    %28 = arith.divf %26, %27 : vector<8x128xf32>
    %29 = arith.mulf %9, %28 : vector<8x128xf32>
    %cst_21 = arith.constant dense<0.000000e+00> : vector<128xf32>
    %30 = vector.multi_reduction <add>, %29, %cst_21 [0] : vector<8x128xf32> to vector<128xf32>
    %31 = vector.shape_cast %30 : vector<128xf32> to vector<1x128xf32>
    %32 = arith.mulf %8, %28 : vector<8x128xf32>
    %cst_22 = arith.constant dense<0.000000e+00> : vector<128xf32>
    %33 = vector.multi_reduction <add>, %32, %cst_22 [0] : vector<8x128xf32> to vector<128xf32>
    %34 = vector.shape_cast %33 : vector<128xf32> to vector<1x128xf32>
    %c0_23 = arith.constant 0 : index
    %c0_24 = arith.constant 0 : index
    %35 = vector.load %arg1[%c0_23, %c0_24] : memref<1x128xf32, #tpu.memory_space<vmem>>, vector<1x128xf32>
    %c0_i32 = arith.constant 0 : i32
    %36 = vector.broadcast %35 : vector<1x128xf32> to vector<32x128xf32>
    %37 = arith.mulf %4, %36 : vector<32x128xf32>
    %cst_25 = arith.constant dense<0.000000e+00> : vector<32x128xf32>
    %38 = tpu.matmul %37, %5, %cst_25 {dimension_numbers = #tpu.dot_dimension_numbers<[1], [0], [0], [1], [0, 0, 1, 1], [], []>, precision = #tpu.contract_precision<fp32>} : vector<32x128xf32>, vector<128x128xf32>, vector<32x128xf32> -> vector<32x128xf32>
    %39 = arith.subf %38, %0 : vector<32x128xf32>
    %40 = arith.mulf %1, %39 : vector<32x128xf32>
    %41 = arith.negf %40 : vector<32x128xf32>
    %42 = math.exp %41 : vector<32x128xf32>
    %cst_26 = arith.constant 1.000000e+00 : f32
    %43 = vector.broadcast %cst_26 : f32 to vector<32x128xf32>
    %44 = arith.addf %43, %42 : vector<32x128xf32>
    %45 = arith.divf %43, %44 : vector<32x128xf32>
    %46 = arith.mulf %3, %45 : vector<32x128xf32>
    %cst_27 = arith.constant dense<0.000000e+00> : vector<128xf32>
    %47 = vector.multi_reduction <add>, %46, %cst_27 [0] : vector<32x128xf32> to vector<128xf32>
    %48 = vector.shape_cast %47 : vector<128xf32> to vector<1x128xf32>
    %49 = arith.addf %48, %31 : vector<1x128xf32>
    %50 = arith.mulf %2, %45 : vector<32x128xf32>
    %cst_28 = arith.constant dense<0.000000e+00> : vector<128xf32>
    %51 = vector.multi_reduction <add>, %50, %cst_28 [0] : vector<32x128xf32> to vector<128xf32>
    %52 = vector.shape_cast %51 : vector<128xf32> to vector<1x128xf32>
    %53 = arith.addf %52, %34 : vector<1x128xf32>
    %54 = arith.mulf %13, %35 : vector<1x128xf32>
    %55 = arith.mulf %14, %49 : vector<1x128xf32>
    %56 = arith.addf %54, %55 : vector<1x128xf32>
    %57 = arith.addf %15, %53 : vector<1x128xf32>
    %cst_29 = arith.constant 9.99999993E-9 : f32
    %58 = vector.broadcast %cst_29 : f32 to vector<1x128xf32>
    %59 = arith.addf %57, %58 : vector<1x128xf32>
    %60 = arith.divf %56, %59 : vector<1x128xf32>
    %c1_i32 = arith.constant 1 : i32
    %61 = vector.broadcast %60 : vector<1x128xf32> to vector<32x128xf32>
    %62 = arith.mulf %4, %61 : vector<32x128xf32>
    %cst_30 = arith.constant dense<0.000000e+00> : vector<32x128xf32>
    %63 = tpu.matmul %62, %5, %cst_30 {dimension_numbers = #tpu.dot_dimension_numbers<[1], [0], [0], [1], [0, 0, 1, 1], [], []>, precision = #tpu.contract_precision<fp32>} : vector<32x128xf32>, vector<128x128xf32>, vector<32x128xf32> -> vector<32x128xf32>
    %64 = arith.subf %63, %0 : vector<32x128xf32>
    %65 = arith.mulf %1, %64 : vector<32x128xf32>
    %66 = arith.negf %65 : vector<32x128xf32>
    %67 = math.exp %66 : vector<32x128xf32>
    %cst_31 = arith.constant 1.000000e+00 : f32
    %68 = vector.broadcast %cst_31 : f32 to vector<32x128xf32>
    %69 = arith.addf %68, %67 : vector<32x128xf32>
    %70 = arith.divf %68, %69 : vector<32x128xf32>
    %71 = arith.mulf %3, %70 : vector<32x128xf32>
    %cst_32 = arith.constant dense<0.000000e+00> : vector<128xf32>
    %72 = vector.multi_reduction <add>, %71, %cst_32 [0] : vector<32x128xf32> to vector<128xf32>
    %73 = vector.shape_cast %72 : vector<128xf32> to vector<1x128xf32>
    %74 = arith.addf %73, %31 : vector<1x128xf32>
    %75 = arith.mulf %2, %70 : vector<32x128xf32>
    %cst_33 = arith.constant dense<0.000000e+00> : vector<128xf32>
    %76 = vector.multi_reduction <add>, %75, %cst_33 [0] : vector<32x128xf32> to vector<128xf32>
    %77 = vector.shape_cast %76 : vector<128xf32> to vector<1x128xf32>
    %78 = arith.addf %77, %34 : vector<1x128xf32>
    %79 = arith.mulf %13, %60 : vector<1x128xf32>
    %80 = arith.mulf %14, %74 : vector<1x128xf32>
    %81 = arith.addf %79, %80 : vector<1x128xf32>
    %82 = arith.addf %15, %78 : vector<1x128xf32>
    %cst_34 = arith.constant 9.99999993E-9 : f32
    %83 = vector.broadcast %cst_34 : f32 to vector<1x128xf32>
    %84 = arith.addf %82, %83 : vector<1x128xf32>
    %85 = arith.divf %81, %84 : vector<1x128xf32>
    %c2_i32 = arith.constant 2 : i32
    %86 = vector.broadcast %85 : vector<1x128xf32> to vector<32x128xf32>
    %87 = arith.mulf %4, %86 : vector<32x128xf32>
    %cst_35 = arith.constant dense<0.000000e+00> : vector<32x128xf32>
    %88 = tpu.matmul %87, %5, %cst_35 {dimension_numbers = #tpu.dot_dimension_numbers<[1], [0], [0], [1], [0, 0, 1, 1], [], []>, precision = #tpu.contract_precision<fp32>} : vector<32x128xf32>, vector<128x128xf32>, vector<32x128xf32> -> vector<32x128xf32>
    %89 = arith.subf %88, %0 : vector<32x128xf32>
    %90 = arith.mulf %1, %89 : vector<32x128xf32>
    %91 = arith.negf %90 : vector<32x128xf32>
    %92 = math.exp %91 : vector<32x128xf32>
    %cst_36 = arith.constant 1.000000e+00 : f32
    %93 = vector.broadcast %cst_36 : f32 to vector<32x128xf32>
    %94 = arith.addf %93, %92 : vector<32x128xf32>
    %95 = arith.divf %93, %94 : vector<32x128xf32>
    %96 = arith.mulf %3, %95 : vector<32x128xf32>
    %cst_37 = arith.constant dense<0.000000e+00> : vector<128xf32>
    %97 = vector.multi_reduction <add>, %96, %cst_37 [0] : vector<32x128xf32> to vector<128xf32>
    %98 = vector.shape_cast %97 : vector<128xf32> to vector<1x128xf32>
    %99 = arith.addf %98, %31 : vector<1x128xf32>
    %100 = arith.mulf %2, %95 : vector<32x128xf32>
    %cst_38 = arith.constant dense<0.000000e+00> : vector<128xf32>
    %101 = vector.multi_reduction <add>, %100, %cst_38 [0] : vector<32x128xf32> to vector<128xf32>
    %102 = vector.shape_cast %101 : vector<128xf32> to vector<1x128xf32>
    %103 = arith.addf %102, %34 : vector<1x128xf32>
    %104 = arith.mulf %13, %85 : vector<1x128xf32>
    %105 = arith.mulf %14, %99 : vector<1x128xf32>
    %106 = arith.addf %104, %105 : vector<1x128xf32>
    %107 = arith.addf %15, %103 : vector<1x128xf32>
    %cst_39 = arith.constant 9.99999993E-9 : f32
    %108 = vector.broadcast %cst_39 : f32 to vector<1x128xf32>
    %109 = arith.addf %107, %108 : vector<1x128xf32>
    %110 = arith.divf %106, %109 : vector<1x128xf32>
    %c3_i32 = arith.constant 3 : i32
    %111 = vector.broadcast %110 : vector<1x128xf32> to vector<32x128xf32>
    %112 = arith.mulf %4, %111 : vector<32x128xf32>
    %cst_40 = arith.constant dense<0.000000e+00> : vector<32x128xf32>
    %113 = tpu.matmul %112, %5, %cst_40 {dimension_numbers = #tpu.dot_dimension_numbers<[1], [0], [0], [1], [0, 0, 1, 1], [], []>, precision = #tpu.contract_precision<fp32>} : vector<32x128xf32>, vector<128x128xf32>, vector<32x128xf32> -> vector<32x128xf32>
    %114 = arith.subf %113, %0 : vector<32x128xf32>
    %115 = arith.mulf %1, %114 : vector<32x128xf32>
    %116 = arith.negf %115 : vector<32x128xf32>
    %117 = math.exp %116 : vector<32x128xf32>
    %cst_41 = arith.constant 1.000000e+00 : f32
    %118 = vector.broadcast %cst_41 : f32 to vector<32x128xf32>
    %119 = arith.addf %118, %117 : vector<32x128xf32>
    %120 = arith.divf %118, %119 : vector<32x128xf32>
    %121 = arith.mulf %3, %120 : vector<32x128xf32>
    %cst_42 = arith.constant dense<0.000000e+00> : vector<128xf32>
    %122 = vector.multi_reduction <add>, %121, %cst_42 [0] : vector<32x128xf32> to vector<128xf32>
    %123 = vector.shape_cast %122 : vector<128xf32> to vector<1x128xf32>
    %124 = arith.addf %123, %31 : vector<1x128xf32>
    %125 = arith.mulf %2, %120 : vector<32x128xf32>
    %cst_43 = arith.constant dense<0.000000e+00> : vector<128xf32>
    %126 = vector.multi_reduction <add>, %125, %cst_43 [0] : vector<32x128xf32> to vector<128xf32>
    %127 = vector.shape_cast %126 : vector<128xf32> to vector<1x128xf32>
    %128 = arith.addf %127, %34 : vector<1x128xf32>
    %129 = arith.mulf %13, %110 : vector<1x128xf32>
    %130 = arith.mulf %14, %124 : vector<1x128xf32>
    %131 = arith.addf %129, %130 : vector<1x128xf32>
    %132 = arith.addf %15, %128 : vector<1x128xf32>
    %cst_44 = arith.constant 9.99999993E-9 : f32
    %133 = vector.broadcast %cst_44 : f32 to vector<1x128xf32>
    %134 = arith.addf %132, %133 : vector<1x128xf32>
    %135 = arith.divf %131, %134 : vector<1x128xf32>
    %c4_i32 = arith.constant 4 : i32
    %136 = vector.broadcast %135 : vector<1x128xf32> to vector<32x128xf32>
    %137 = arith.mulf %4, %136 : vector<32x128xf32>
    %cst_45 = arith.constant dense<0.000000e+00> : vector<32x128xf32>
    %138 = tpu.matmul %137, %5, %cst_45 {dimension_numbers = #tpu.dot_dimension_numbers<[1], [0], [0], [1], [0, 0, 1, 1], [], []>, precision = #tpu.contract_precision<fp32>} : vector<32x128xf32>, vector<128x128xf32>, vector<32x128xf32> -> vector<32x128xf32>
    %139 = arith.subf %138, %0 : vector<32x128xf32>
    %140 = arith.mulf %1, %139 : vector<32x128xf32>
    %141 = arith.negf %140 : vector<32x128xf32>
    %142 = math.exp %141 : vector<32x128xf32>
    %cst_46 = arith.constant 1.000000e+00 : f32
    %143 = vector.broadcast %cst_46 : f32 to vector<32x128xf32>
    %144 = arith.addf %143, %142 : vector<32x128xf32>
    %145 = arith.divf %143, %144 : vector<32x128xf32>
    %146 = arith.mulf %3, %145 : vector<32x128xf32>
    %cst_47 = arith.constant dense<0.000000e+00> : vector<128xf32>
    %147 = vector.multi_reduction <add>, %146, %cst_47 [0] : vector<32x128xf32> to vector<128xf32>
    %148 = vector.shape_cast %147 : vector<128xf32> to vector<1x128xf32>
    %149 = arith.addf %148, %31 : vector<1x128xf32>
    %150 = arith.mulf %2, %145 : vector<32x128xf32>
    %cst_48 = arith.constant dense<0.000000e+00> : vector<128xf32>
    %151 = vector.multi_reduction <add>, %150, %cst_48 [0] : vector<32x128xf32> to vector<128xf32>
    %152 = vector.shape_cast %151 : vector<128xf32> to vector<1x128xf32>
    %153 = arith.addf %152, %34 : vector<1x128xf32>
    %154 = arith.mulf %13, %135 : vector<1x128xf32>
    %155 = arith.mulf %14, %149 : vector<1x128xf32>
    %156 = arith.addf %154, %155 : vector<1x128xf32>
    %157 = arith.addf %15, %153 : vector<1x128xf32>
    %cst_49 = arith.constant 9.99999993E-9 : f32
    %158 = vector.broadcast %cst_49 : f32 to vector<1x128xf32>
    %159 = arith.addf %157, %158 : vector<1x128xf32>
    %160 = arith.divf %156, %159 : vector<1x128xf32>
    %c5_i32 = arith.constant 5 : i32
    %161 = vector.broadcast %160 : vector<1x128xf32> to vector<32x128xf32>
    %162 = arith.mulf %4, %161 : vector<32x128xf32>
    %cst_50 = arith.constant dense<0.000000e+00> : vector<32x128xf32>
    %163 = tpu.matmul %162, %5, %cst_50 {dimension_numbers = #tpu.dot_dimension_numbers<[1], [0], [0], [1], [0, 0, 1, 1], [], []>, precision = #tpu.contract_precision<fp32>} : vector<32x128xf32>, vector<128x128xf32>, vector<32x128xf32> -> vector<32x128xf32>
    %164 = arith.subf %163, %0 : vector<32x128xf32>
    %165 = arith.mulf %1, %164 : vector<32x128xf32>
    %166 = arith.negf %165 : vector<32x128xf32>
    %167 = math.exp %166 : vector<32x128xf32>
    %cst_51 = arith.constant 1.000000e+00 : f32
    %168 = vector.broadcast %cst_51 : f32 to vector<32x128xf32>
    %169 = arith.addf %168, %167 : vector<32x128xf32>
    %170 = arith.divf %168, %169 : vector<32x128xf32>
    %171 = arith.mulf %3, %170 : vector<32x128xf32>
    %cst_52 = arith.constant dense<0.000000e+00> : vector<128xf32>
    %172 = vector.multi_reduction <add>, %171, %cst_52 [0] : vector<32x128xf32> to vector<128xf32>
    %173 = vector.shape_cast %172 : vector<128xf32> to vector<1x128xf32>
    %174 = arith.addf %173, %31 : vector<1x128xf32>
    %175 = arith.mulf %2, %170 : vector<32x128xf32>
    %cst_53 = arith.constant dense<0.000000e+00> : vector<128xf32>
    %176 = vector.multi_reduction <add>, %175, %cst_53 [0] : vector<32x128xf32> to vector<128xf32>
    %177 = vector.shape_cast %176 : vector<128xf32> to vector<1x128xf32>
    %178 = arith.addf %177, %34 : vector<1x128xf32>
    %179 = arith.mulf %13, %160 : vector<1x128xf32>
    %180 = arith.mulf %14, %174 : vector<1x128xf32>
    %181 = arith.addf %179, %180 : vector<1x128xf32>
    %182 = arith.addf %15, %178 : vector<1x128xf32>
    %cst_54 = arith.constant 9.99999993E-9 : f32
    %183 = vector.broadcast %cst_54 : f32 to vector<1x128xf32>
    %184 = arith.addf %182, %183 : vector<1x128xf32>
    %185 = arith.divf %181, %184 : vector<1x128xf32>
    %c0_55 = arith.constant 0 : index
    %c0_56 = arith.constant 0 : index
    %186 = vector.load %arg4[%c0_55, %c0_56] : memref<1x128xf32, #tpu.memory_space<vmem>>, vector<1x128xf32>
    tpu.vector_store %arg4[%c0_55, %c0_56], %185 {strides = array<i32>} : memref<1x128xf32, #tpu.memory_space<vmem>>, vector<1x128xf32>,
    %187 = arith.mulf %185, %16 : vector<1x128xf32>
    %188 = arith.addf %187, %17 : vector<1x128xf32>
    %c0_57 = arith.constant 0 : index
    %c0_58 = arith.constant 0 : index
    %189 = vector.load %arg3[%c0_57, %c0_58] : memref<1x128xf32, #tpu.memory_space<vmem>>, vector<1x128xf32>
    tpu.vector_store %arg3[%c0_57, %c0_58], %188 {strides = array<i32>} : memref<1x128xf32, #tpu.memory_space<vmem>>, vector<1x128xf32>,
    return
  }
}

</mosaic_0001>

<llo_original>
// kernel: tpu_custom_call.1
$region0: #{tpu_custom_call.1}
  #allocation0 [shape = 'u32[]', space=smem, size = 0x4, offset = 0x4, fixed_abs, tag = 'smem constant byte address 0x4 - core index']
  #allocation1 [shape = 'u32[144,128]{1,0:T(1,128)}', space=vmem, size = 0x12000, scoped, tag = 'internal scratch']
  %s0 = inlined_call_operand.hbm [shape: f32[8,8], index: 0, kind: input, shape index: {}]
  %s1 = inlined_call_operand.vmem [shape: f32[1,128], index: 1, kind: input, shape index: {}]
  %s2 = inlined_call_operand.hbm [shape: f32[384,128], index: 2, kind: input, shape index: {}]
  %s3 = inlined_call_operand.hbm [shape: f32[1,128], index: 3, kind: output, shape index: {0}]
  %s4 = inlined_call_operand.hbm [shape: f32[1,128], index: 4, kind: output, shape index: {1}]
  %5 = xla_tuple %s3, %s4
  %s6 = sld [smem:[#allocation0]]
  $region38: #{tpu_custom_call.1} parent=0
    _
  %s8 = ssub.s32 1, %s6
  %s9 = scalar_select 0, %s8, %s6
  $region1: #{tpu_custom_call.1} parent=0
    #allocation2 [shape = 'u8[4096]{0}', space=vmem, size = 0x1000, scoped, tag = 'input window, operand 0, single buffered']
    #allocation3 [shape = 's32[1]{0}', space=sflag, size = 0x4, scoped, tag = 'scoped memory for tpu_custom_call.1']
    #allocation4 [shape = 's32[1]{0}', space=sflag, size = 0x4, scoped, tag = 'scoped memory for tpu_custom_call.1']
    #allocation5 [shape = 'u8[196608]{0}', space=vmem, size = 0x30000, scoped, tag = 'input window, operand 2, single buffered']
    #allocation6 [shape = 's32[1]{0}', space=sflag, size = 0x4, scoped, tag = 'scoped memory for tpu_custom_call.1']
    #allocation7 [shape = 'u8[512]{0}', space=vmem, size = 0x400, scoped, tag = 'output window, operand 0, single buffered']
    #allocation8 [shape = 'u8[512]{0}', space=vmem, size = 0x400, scoped, tag = 'output window, operand 1, single buffered']
    #allocation9 [shape = 's32[1]{0}', space=sflag, size = 0x4, scoped, tag = 'scoped memory for tpu_custom_call.1']
    %10 = vsyncpa [#allocation3], 0
    %11 = vsyncpa [#allocation6], 0
    %12 = vsyncpa [#allocation4], 0
    %13 = vsyncpa [#allocation9], 0
    // Predicated region
    $region2: #{tpu_custom_call.1} parent=1 // pred_check
      _
    $region3: #{tpu_custom_call.1} parent=1 // pred_check_branch
      %15 = sbr.rel (0) target = $region5
    $region4: #{tpu_custom_call.1} parent=1 // pred_region
      %s17 = ssub.s32 128, 128
      %18 = vsyncadd [#allocation3], %s17
      %s20 = sshll.u32 [#allocation2], 4
      %s21 = int_to_ptr.vmem [resolvable:$true] %s20
      %23 = dma.hbm_to_vmem [thread:$0]  %s0, 128, %s21, [#allocation3]
    $region5: #{tpu_custom_call.1} parent=1 // pred_fallthru
      _
    // Predicated region
    $region6: #{tpu_custom_call.1} parent=1 // pred_check
      _
    $region7: #{tpu_custom_call.1} parent=1 // pred_check_branch
      %25 = sbr.rel (0) target = $region9
    $region8: #{tpu_custom_call.1} parent=1 // pred_region
      _
    $region9: #{tpu_custom_call.1} parent=1 // pred_fallthru
      _
    // Predicated region
    $region10: #{tpu_custom_call.1} parent=1 // pred_check
      _
    $region11: #{tpu_custom_call.1} parent=1 // pred_check_branch
      %27 = sbr.rel (0) target = $region13
    $region12: #{tpu_custom_call.1} parent=1 // pred_region
      %s29 = ssub.s32 6144, 6144
      %30 = vsyncadd [#allocation6], %s29
      %s31 = sshll.u32 [#allocation5], 4
      %s32 = int_to_ptr.vmem [resolvable:$true] %s31
      %37 = dma.hbm_to_vmem [thread:$0]  %s2, 6144, %s32, [#allocation6], 128, 128, 8
    $region13: #{tpu_custom_call.1} parent=1 // pred_fallthru
      _
    // Predicated region
    $region14: #{tpu_custom_call.1} parent=1 // pred_check
      _
    $region15: #{tpu_custom_call.1} parent=1 // pred_check_branch
      %39 = sbr.rel (0) target = $region17
    $region16: #{tpu_custom_call.1} parent=1 // pred_region
      %40 = dma.done [#allocation3], 128
    $region17: #{tpu_custom_call.1} parent=1 // pred_fallthru
      _
    // Predicated region
    $region18: #{tpu_custom_call.1} parent=1 // pred_check
      _
    $region19: #{tpu_custom_call.1} parent=1 // pred_check_branch
      %42 = sbr.rel (0) target = $region21
    $region20: #{tpu_custom_call.1} parent=1 // pred_region
      %43 = dma.done [#allocation6], 6144
    $region21: #{tpu_custom_call.1} parent=1 // pred_fallthru
      _
    %v44 = vld [vmem:[#allocation5] sm:$0xff]
    %v45 = vld [vmem:[#allocation5 + $0x8] sm:$0xff]
    %v46 = vld [vmem:[#allocation5 + $0x10] sm:$0xff]
    %v47 = vld [vmem:[#allocation5 + $0x18] sm:$0xff]
    %v48 = vld [vmem:[#allocation5 + $0x20] sm:$0xff]
    %v49 = vld [vmem:[#allocation5 + $0x28] sm:$0xff]
    %v50 = vld [vmem:[#allocation5 + $0x30] sm:$0xff]
    %v51 = vld [vmem:[#allocation5 + $0x38] sm:$0xff]
    %v52 = vld [vmem:[#allocation5 + $0x40] sm:$0xff]
    %v53 = vld [vmem:[#allocation5 + $0x48] sm:$0xff]
    %v54 = vld [vmem:[#allocation5 + $0x50] sm:$0xff]
    %v55 = vld [vmem:[#allocation5 + $0x58] sm:$0xff]
    %v56 = vld [vmem:[#allocation5 + $0x60] sm:$0xff]
    %v57 = vld [vmem:[#allocation5 + $0x68] sm:$0xff]
    %v58 = vld [vmem:[#allocation5 + $0x70] sm:$0xff]
    %v59 = vld [vmem:[#allocation5 + $0x78] sm:$0xff]
    %v60 = vld [vmem:[#allocation5 + $0x80] sm:$0xff]
    %v61 = vld [vmem:[#allocation5 + $0x88] sm:$0xff]
    %v62 = vld [vmem:[#allocation5 + $0x90] sm:$0xff]
    %v63 = vld [vmem:[#allocation5 + $0x98] sm:$0xff]
    %v64 = vld [vmem:[#allocation5 + $0xa0] sm:$0xff]
    %v65 = vld [vmem:[#allocation5 + $0xa8] sm:$0xff]
    %v66 = vld [vmem:[#allocation5 + $0xb0] sm:$0xff]
    %v67 = vld [vmem:[#allocation5 + $0xb8] sm:$0xff]
    %v68 = vld [vmem:[#allocation5 + $0xc0] sm:$0xff]
    %v69 = vld [vmem:[#allocation5 + $0xc8] sm:$0xff]
    %v70 = vld [vmem:[#allocation5 + $0xd0] sm:$0xff]
    %v71 = vld [vmem:[#allocation5 + $0xd8] sm:$0xff]
    %v72 = vld [vmem:[#allocation5 + $0xe0] sm:$0xff]
    %v73 = vld [vmem:[#allocation5 + $0xe8] sm:$0xff]
    %v74 = vld [vmem:[#allocation5 + $0xf0] sm:$0xff]
    %v75 = vld [vmem:[#allocation5 + $0xf8] sm:$0xff]
    %v76 = vld [vmem:[#allocation5 + $0x100] sm:$0xff]
    %v77 = vld [vmem:[#allocation5 + $0x108] sm:$0xff]
    %v78 = vld [vmem:[#allocation5 + $0x110] sm:$0xff]
    %v79 = vld [vmem:[#allocation5 + $0x118] sm:$0xff]
    %v80 = vld [vmem:[#allocation5 + $0x120] sm:$0xff]
    %v81 = vld [vmem:[#allocation5 + $0x128] sm:$0xff]
    %v82 = vld [vmem:[#allocation5 + $0x130] sm:$0xff]
    %v83 = vld [vmem:[#allocation5 + $0x138] sm:$0xff]
    %v84 = vld [vmem:[#allocation5 + $0x140] sm:$0xff]
    %v85 = vld [vmem:[#allocation5 + $0x148] sm:$0xff]
    %v86 = vld [vmem:[#allocation5 + $0x150] sm:$0xff]
    %v87 = vld [vmem:[#allocation5 + $0x158] sm:$0x1]
    %v88 = vld [vmem:[#allocation5 + $0x160] sm:$0x1]
    %v89 = vld [vmem:[#allocation5 + $0x168] sm:$0x1]
    %v90 = vld [vmem:[#allocation5 + $0x170] sm:$0x1]
    %v91 = vld [vmem:[#allocation5 + $0x178] sm:$0x1]
    %v92 = vld [vmem:[#allocation2] sm:$0xff]
    %vm93 = vcmask 64512
    %v95 = vsel %vm93, %v92, 0
    %97 = vmatprep.subr.mxu0 0.0
    %98 = vmatpush1.msra.mxu0 0.0
    %99 = vmatprep.subr.mxu0 0.0
    %100 = vmatpush1.msra.mxu0 0.0
    %101 = vmatprep.subr.mxu0 0.0
    %102 = vmatpush1.msra.mxu0 0.0
    %103 = vmatprep.subr.mxu0 0.0
    %104 = vmatpush1.msra.mxu0 0.0
    %105 = vmatprep.subr.mxu0 0.0
    %106 = vmatpush1.msra.mxu0 0.0
    %107 = vmatprep.subr.mxu0 0.0
    %108 = vmatpush1.msra.mxu0 0.0
    %109 = vmatprep.subr.mxu0 0.0
    %110 = vmatpush1.msra.mxu0 0.0
    %111 = vmatprep.subr.mxu0 0.0
    %112 = vmatpush1.msra.mxu0 0.0
    %113 = vmatprep.subr.mxu0 0.0
    %114 = vmatpush1.msra.mxu0 0.0
    %115 = vmatprep.subr.mxu0 0.0
    %116 = vmatpush1.msra.mxu0 0.0
    %117 = vmatprep.subr.mxu0 0.0
    %118 = vmatpush1.msra.mxu0 0.0
    %119 = vmatprep.subr.mxu0 0.0
    %120 = vmatpush1.msra.mxu0 0.0
    %121 = vmatprep.subr.mxu0 0.0
    %122 = vmatpush1.msra.mxu0 0.0
    %123 = vmatprep.subr.mxu0 0.0
    %124 = vmatpush1.msra.mxu0 0.0
    %125 = vmatprep.subr.mxu0 0.0
    %126 = vmatpush1.msra.mxu0 0.0
    %127 = vmatprep.subr.mxu0 0.0
    %v128 = vand.u32 %v86, 4294901760
    %129 = vmatpush1.msra.mxu0 %v128
    %130 = vmatprep.subr.mxu0 0.0
    %131 = vmatpush2.msra.mxu0 0.0
    %132 = vmatprep.subr.mxu0 0.0
    %133 = vmatpush2.msra.mxu0 0.0
    %134 = vmatprep.subr.mxu0 0.0
    %135 = vmatpush2.msra.mxu0 0.0
    %136 = vmatprep.subr.mxu0 0.0
    %137 = vmatpush2.msra.mxu0 0.0
    %138 = vmatprep.subr.mxu0 0.0
    %139 = vmatpush2.msra.mxu0 0.0
    %140 = vmatprep.subr.mxu0 0.0
    %141 = vmatpush2.msra.mxu0 0.0
    %142 = vmatprep.subr.mxu0 0.0
    %143 = vmatpush2.msra.mxu0 0.0
    %144 = vmatprep.subr.mxu0 0.0
    %145 = vmatpush2.msra.mxu0 0.0
    %146 = vmatprep.subr.mxu0 0.0
    %147 = vmatpush2.msra.mxu0 0.0
    %148 = vmatprep.subr.mxu0 0.0
    %149 = vmatpush2.msra.mxu0 0.0
    %150 = vmatprep.subr.mxu0 0.0
    %151 = vmatpush2.msra.mxu0 0.0
    %152 = vmatprep.subr.mxu0 0.0
    %153 = vmatpush2.msra.mxu0 0.0
    %154 = vmatprep.subr.mxu0 0.0
    %155 = vmatpush2.msra.mxu0 0.0
    %156 = vmatprep.subr.mxu0 0.0
    %157 = vmatpush2.msra.mxu0 0.0
    %158 = vmatprep.subr.mxu0 0.0
    %159 = vmatpush2.msra.mxu0 0.0
    %160 = vmatprep.subr.mxu0 0.0
    %161 = vmatpush2.msra.mxu0 0.0
    %162 = vmatprep.mubr.f32.mxu0 0.0
    %v163 = vand.u32 %v95, 4294901760
    %v164 = vsub.f32 %v95, %v163
    %v165 = vand.u32 %v164, 4294901760
    %v166 = vsub.f32 %v164, %v165
    %v167 = vand.u32 %v166, 4294901760
    %168 = vmatmul.mubr.f32.gmra.mxu0 %v167
    %v169 = vpop.f32.mrf.mxu0
    %v170 = vadd.f32 0.0, %v169
    %v171 = vpop.f32.mrf.mxu0
    %172 = vdwg.mxu0
    %173 = vmatprep.subr.mxu0 0.0
    %174 = vmatpush1.msra.mxu0 0.0
    %175 = vmatprep.subr.mxu0 0.0
    %176 = vmatpush1.msra.mxu0 0.0
    %177 = vmatprep.subr.mxu0 0.0
    %178 = vmatpush1.msra.mxu0 0.0
    %179 = vmatprep.subr.mxu0 0.0
    %180 = vmatpush1.msra.mxu0 0.0
    %181 = vmatprep.subr.mxu0 0.0
    %182 = vmatpush1.msra.mxu0 0.0
    %183 = vmatprep.subr.mxu0 0.0
    %184 = vmatpush1.msra.mxu0 0.0
    %185 = vmatprep.subr.mxu0 0.0
    %186 = vmatpush1.msra.mxu0 0.0
    %187 = vmatprep.subr.mxu0 0.0
    %188 = vmatpush1.msra.mxu0 0.0
    %189 = vmatprep.subr.mxu0 0.0
    %190 = vmatpush1.msra.mxu0 0.0
    %191 = vmatprep.subr.mxu0 0.0
    %192 = vmatpush1.msra.mxu0 0.0
    %193 = vmatprep.subr.mxu0 0.0
    %194 = vmatpush1.msra.mxu0 0.0
    %195 = vmatprep.subr.mxu0 0.0
    %196 = vmatpush1.msra.mxu0 0.0
    %197 = vmatprep.subr.mxu0 0.0
    %198 = vmatpush1.msra.mxu0 0.0
    %199 = vmatprep.subr.mxu0 0.0
    %200 = vmatpush1.msra.mxu0 0.0
    %201 = vmatprep.subr.mxu0 0.0
    %202 = vmatpush1.msra.mxu0 0.0
    %203 = vmatprep.subr.mxu0 0.0
    %v204 = vand.u32 %v86, 4294901760
    %v205 = vsub.f32 %v86, %v204
    %v206 = vand.u32 %v205, 4294901760
    %v207 = vsub.f32 %v205, %v206
    %v208 = vand.u32 %v207, 4294901760
    %209 = vmatpush1.msra.mxu0 %v208
    %210 = vmatprep.subr.mxu0 0.0
    %211 = vmatpush2.msra.mxu0 0.0
    %212 = vmatprep.subr.mxu0 0.0
    %213 = vmatpush2.msra.mxu0 0.0
    %214 = vmatprep.subr.mxu0 0.0
    %215 = vmatpush2.msra.mxu0 0.0
    %216 = vmatprep.subr.mxu0 0.0
    %217 = vmatpush2.msra.mxu0 0.0
    %218 = vmatprep.subr.mxu0 0.0
    %219 = vmatpush2.msra.mxu0 0.0
    %220 = vmatprep.subr.mxu0 0.0
    %221 = vmatpush2.msra.mxu0 0.0
    %222 = vmatprep.subr.mxu0 0.0
    %223 = vmatpush2.msra.mxu0 0.0
    %224 = vmatprep.subr.mxu0 0.0
    %225 = vmatpush2.msra.mxu0 0.0
    %226 = vmatprep.subr.mxu0 0.0
    %227 = vmatpush2.msra.mxu0 0.0
    %228 = vmatprep.subr.mxu0 0.0
    %229 = vmatpush2.msra.mxu0 0.0
    %230 = vmatprep.subr.mxu0 0.0
    %231 = vmatpush2.msra.mxu0 0.0
    %232 = vmatprep.subr.mxu0 0.0
    %233 = vmatpush2.msra.mxu0 0.0
    %234 = vmatprep.subr.mxu0 0.0
    %235 = vmatpush2.msra.mxu0 0.0
    %236 = vmatprep.subr.mxu0 0.0
    %237 = vmatpush2.msra.mxu0 0.0
    %238 = vmatprep.subr.mxu0 0.0
    %239 = vmatpush2.msra.mxu0 0.0
    %240 = vmatprep.subr.mxu0 0.0
    %241 = vmatpush2.msra.mxu0 0.0
    %242 = vmatprep.mubr.f32.mxu0 0.0
    %v243 = vand.u32 %v95, 4294901760
    %244 = vmatmul.mubr.f32.gmra.mxu0 %v243
    %v245 = vpop.f32.mrf.mxu0
    %v246 = vadd.f32 %v170, %v245
    %v247 = vpop.f32.mrf.mxu0
    %248 = vdwg.mxu0
    %249 = vmatprep.subr.mxu0 0.0
    %250 = vmatpush1.msra.mxu0 0.0
    %251 = vmatprep.subr.mxu0 0.0
    %252 = vmatpush1.msra.mxu0 0.0
    %253 = vmatprep.subr.mxu0 0.0
    %254 = vmatpush1.msra.mxu0 0.0
    %255 = vmatprep.subr.mxu0 0.0
    %256 = vmatpush1.msra.mxu0 0.0
    %257 = vmatprep.subr.mxu0 0.0
    %258 = vmatpush1.msra.mxu0 0.0
    %259 = vmatprep.subr.mxu0 0.0
    %260 = vmatpush1.msra.mxu0 0.0
    %261 = vmatprep.subr.mxu0 0.0
    %262 = vmatpush1.msra.mxu0 0.0
    %263 = vmatprep.subr.mxu0 0.0
    %264 = vmatpush1.msra.mxu0 0.0
    %265 = vmatprep.subr.mxu0 0.0
    %266 = vmatpush1.msra.mxu0 0.0
    %267 = vmatprep.subr.mxu0 0.0
    %268 = vmatpush1.msra.mxu0 0.0
    %269 = vmatprep.subr.mxu0 0.0
    %270 = vmatpush1.msra.mxu0 0.0
    %271 = vmatprep.subr.mxu0 0.0
    %272 = vmatpush1.msra.mxu0 0.0
    %273 = vmatprep.subr.mxu0 0.0
    %274 = vmatpush1.msra.mxu0 0.0
    %275 = vmatprep.subr.mxu0 0.0
    %276 = vmatpush1.msra.mxu0 0.0
    %277 = vmatprep.subr.mxu0 0.0
    %278 = vmatpush1.msra.mxu0 0.0
    %279 = vmatprep.subr.mxu0 0.0
    %v280 = vand.u32 %v86, 4294901760
    %v281 = vsub.f32 %v86, %v280
    %282 = vmatpush1.msra.mxu0 %v281
    %283 = vmatprep.subr.mxu0 0.0
    %284 = vmatpush2.msra.mxu0 0.0
    %285 = vmatprep.subr.mxu0 0.0
    %286 = vmatpush2.msra.mxu0 0.0
    %287 = vmatprep.subr.mxu0 0.0
    %288 = vmatpush2.msra.mxu0 0.0
    %289 = vmatprep.subr.mxu0 0.0
    %290 = vmatpush2.msra.mxu0 0.0
    %291 = vmatprep.subr.mxu0 0.0
    %292 = vmatpush2.msra.mxu0 0.0
    %293 = vmatprep.subr.mxu0 0.0
    %294 = vmatpush2.msra.mxu0 0.0
    %295 = vmatprep.subr.mxu0 0.0
    %296 = vmatpush2.msra.mxu0 0.0
    %297 = vmatprep.subr.mxu0 0.0
    %298 = vmatpush2.msra.mxu0 0.0
    %299 = vmatprep.subr.mxu0 0.0
    %300 = vmatpush2.msra.mxu0 0.0
    %301 = vmatprep.subr.mxu0 0.0
    %302 = vmatpush2.msra.mxu0 0.0
    %303 = vmatprep.subr.mxu0 0.0
    %304 = vmatpush2.msra.mxu0 0.0
    %305 = vmatprep.subr.mxu0 0.0
    %306 = vmatpush2.msra.mxu0 0.0
    %307 = vmatprep.subr.mxu0 0.0
    %308 = vmatpush2.msra.mxu0 0.0
    %309 = vmatprep.subr.mxu0 0.0
    %310 = vmatpush2.msra.mxu0 0.0
    %311 = vmatprep.subr.mxu0 0.0
    %312 = vmatpush2.msra.mxu0 0.0
    %313 = vmatprep.subr.mxu0 0.0
    %314 = vmatpush2.msra.mxu0 0.0
    %315 = vmatprep.mubr.f32.mxu0 0.0
    %v316 = vand.u32 %v95, 4294901760
    %v317 = vsub.f32 %v95, %v316
    %318 = vmatmul.mubr.f32.gmra.mxu0 %v317
    %v319 = vpop.f32.mrf.mxu0
    %v320 = vadd.f32 %v246, %v319
    %v321 = vpop.f32.mrf.mxu0
    %322 = vdwg.mxu0
    %323 = vmatprep.subr.mxu0 0.0
    %324 = vmatpush1.msra.mxu0 0.0
    %325 = vmatprep.subr.mxu0 0.0
    %326 = vmatpush1.msra.mxu0 0.0
    %327 = vmatprep.subr.mxu0 0.0
    %328 = vmatpush1.msra.mxu0 0.0
    %329 = vmatprep.subr.mxu0 0.0
    %330 = vmatpush1.msra.mxu0 0.0
    %331 = vmatprep.subr.mxu0 0.0
    %332 = vmatpush1.msra.mxu0 0.0
    %333 = vmatprep.subr.mxu0 0.0
    %334 = vmatpush1.msra.mxu0 0.0
    %335 = vmatprep.subr.mxu0 0.0
    %336 = vmatpush1.msra.mxu0 0.0
    %337 = vmatprep.subr.mxu0 0.0
    %338 = vmatpush1.msra.mxu0 0.0
    %339 = vmatprep.subr.mxu0 0.0
    %340 = vmatpush1.msra.mxu0 0.0
    %341 = vmatprep.subr.mxu0 0.0
    %342 = vmatpush1.msra.mxu0 0.0
    %343 = vmatprep.subr.mxu0 0.0
    %344 = vmatpush1.msra.mxu0 0.0
    %345 = vmatprep.subr.mxu0 0.0
    %346 = vmatpush1.msra.mxu0 0.0
    %347 = vmatprep.subr.mxu0 0.0
    %348 = vmatpush1.msra.mxu0 0.0
    %349 = vmatprep.subr.mxu0 0.0
    %350 = vmatpush1.msra.mxu0 0.0
    %351 = vmatprep.subr.mxu0 0.0
    %352 = vmatpush1.msra.mxu0 0.0
    %353 = vmatprep.subr.mxu0 0.0
    %v354 = vand.u32 %v86, 4294901760
    %355 = vmatpush1.msra.mxu0 %v354
    %356 = vmatprep.subr.mxu0 0.0
    %357 = vmatpush2.msra.mxu0 0.0
    %358 = vmatprep.subr.mxu0 0.0
    %359 = vmatpush2.msra.mxu0 0.0
    %360 = vmatprep.subr.mxu0 0.0
    %361 = vmatpush2.msra.mxu0 0.0
    %362 = vmatprep.subr.mxu0 0.0
    %363 = vmatpush2.msra.mxu0 0.0
    %364 = vmatprep.subr.mxu0 0.0
    %365 = vmatpush2.msra.mxu0 0.0
    %366 = vmatprep.subr.mxu0 0.0
    %367 = vmatpush2.msra.mxu0 0.0
    %368 = vmatprep.subr.mxu0 0.0
    %369 = vmatpush2.msra.mxu0 0.0
    %370 = vmatprep.subr.mxu0 0.0
    %371 = vmatpush2.msra.mxu0 0.0
    %372 = vmatprep.subr.mxu0 0.0
    %373 = vmatpush2.msra.mxu0 0.0
    %374 = vmatprep.subr.mxu0 0.0
    %375 = vmatpush2.msra.mxu0 0.0
    %376 = vmatprep.subr.mxu0 0.0
    %377 = vmatpush2.msra.mxu0 0.0
    %378 = vmatprep.subr.mxu0 0.0
    %379 = vmatpush2.msra.mxu0 0.0
    %380 = vmatprep.subr.mxu0 0.0
    %381 = vmatpush2.msra.mxu0 0.0
    %382 = vmatprep.subr.mxu0 0.0
    %383 = vmatpush2.msra.mxu0 0.0
    %384 = vmatprep.subr.mxu0 0.0
    %385 = vmatpush2.msra.mxu0 0.0
    %386 = vmatprep.subr.mxu0 0.0
    %387 = vmatpush2.msra.mxu0 0.0
    %388 = vmatprep.mubr.f32.mxu0 0.0
    %v389 = vand.u32 %v95, 4294901760
    %v390 = vsub.f32 %v95, %v389
    %v391 = vand.u32 %v390, 4294901760
    %392 = vmatmul.mubr.f32.gmra.mxu0 %v391
    %v393 = vpop.f32.mrf.mxu0
    %v394 = vadd.f32 %v320, %v393
    %v395 = vpop.f32.mrf.mxu0
    %396 = vdwg.mxu0
    %397 = vmatprep.subr.mxu0 0.0
    %398 = vmatpush1.msra.mxu0 0.0
    %399 = vmatprep.subr.mxu0 0.0
    %400 = vmatpush1.msra.mxu0 0.0
    %401 = vmatprep.subr.mxu0 0.0
    %402 = vmatpush1.msra.mxu0 0.0
    %403 = vmatprep.subr.mxu0 0.0
    %404 = vmatpush1.msra.mxu0 0.0
    %405 = vmatprep.subr.mxu0 0.0
    %406 = vmatpush1.msra.mxu0 0.0
    %407 = vmatprep.subr.mxu0 0.0
    %408 = vmatpush1.msra.mxu0 0.0
    %409 = vmatprep.subr.mxu0 0.0
    %410 = vmatpush1.msra.mxu0 0.0
    %411 = vmatprep.subr.mxu0 0.0
    %412 = vmatpush1.msra.mxu0 0.0
    %413 = vmatprep.subr.mxu0 0.0
    %414 = vmatpush1.msra.mxu0 0.0
    %415 = vmatprep.subr.mxu0 0.0
    %416 = vmatpush1.msra.mxu0 0.0
    %417 = vmatprep.subr.mxu0 0.0
    %418 = vmatpush1.msra.mxu0 0.0
    %419 = vmatprep.subr.mxu0 0.0
    %420 = vmatpush1.msra.mxu0 0.0
    %421 = vmatprep.subr.mxu0 0.0
    %422 = vmatpush1.msra.mxu0 0.0
    %423 = vmatprep.subr.mxu0 0.0
    %424 = vmatpush1.msra.mxu0 0.0
    %425 = vmatprep.subr.mxu0 0.0
    %426 = vmatpush1.msra.mxu0 0.0
    %427 = vmatprep.subr.mxu0 0.0
    %v428 = vand.u32 %v86, 4294901760
    %v429 = vsub.f32 %v86, %v428
    %v430 = vand.u32 %v429, 4294901760
    %431 = vmatpush1.msra.mxu0 %v430
    %432 = vmatprep.subr.mxu0 0.0
    %433 = vmatpush2.msra.mxu0 0.0
    %434 = vmatprep.subr.mxu0 0.0
    %435 = vmatpush2.msra.mxu0 0.0
    %436 = vmatprep.subr.mxu0 0.0
    %437 = vmatpush2.msra.mxu0 0.0
    %438 = vmatprep.subr.mxu0 0.0
    %439 = vmatpush2.msra.mxu0 0.0
    %440 = vmatprep.subr.mxu0 0.0
    %441 = vmatpush2.msra.mxu0 0.0
    %442 = vmatprep.subr.mxu0 0.0
    %443 = vmatpush2.msra.mxu0 0.0
    %444 = vmatprep.subr.mxu0 0.0
    %445 = vmatpush2.msra.mxu0 0.0
    %446 = vmatprep.subr.mxu0 0.0
    %447 = vmatpush2.msra.mxu0 0.0
    %448 = vmatprep.subr.mxu0 0.0
    %449 = vmatpush2.msra.mxu0 0.0
    %450 = vmatprep.subr.mxu0 0.0
    %451 = vmatpush2.msra.mxu0 0.0
    %452 = vmatprep.subr.mxu0 0.0
    %453 = vmatpush2.msra.mxu0 0.0
    %454 = vmatprep.subr.mxu0 0.0
    %455 = vmatpush2.msra.mxu0 0.0
    %456 = vmatprep.subr.mxu0 0.0
    %457 = vmatpush2.msra.mxu0 0.0
    %458 = vmatprep.subr.mxu0 0.0
    %459 = vmatpush2.msra.mxu0 0.0
    %460 = vmatprep.subr.mxu0 0.0
    %461 = vmatpush2.msra.mxu0 0.0
    %462 = vmatprep.subr.mxu0 0.0
    %463 = vmatpush2.msra.mxu0 0.0
    %464 = vmatprep.mubr.f32.mxu0 0.0
    %v465 = vand.u32 %v95, 4294901760
    %466 = vmatmul.mubr.f32.gmra.mxu0 %v465
    %v467 = vpop.f32.mrf.mxu0
    %v468 = vadd.f32 %v394, %v467
    %v469 = vpop.f32.mrf.mxu0
    %470 = vdwg.mxu0
    %471 = vmatprep.subr.mxu0 0.0
    %472 = vmatpush1.msra.mxu0 0.0
    %473 = vmatprep.subr.mxu0 0.0
    %474 = vmatpush1.msra.mxu0 0.0
    %475 = vmatprep.subr.mxu0 0.0
    %476 = vmatpush1.msra.mxu0 0.0
    %477 = vmatprep.subr.mxu0 0.0
    %478 = vmatpush1.msra.mxu0 0.0
    %479 = vmatprep.subr.mxu0 0.0
    %480 = vmatpush1.msra.mxu0 0.0
    %481 = vmatprep.subr.mxu0 0.0
    %482 = vmatpush1.msra.mxu0 0.0
    %483 = vmatprep.subr.mxu0 0.0
    %484 = vmatpush1.msra.mxu0 0.0
    %485 = vmatprep.subr.mxu0 0.0
    %486 = vmatpush1.msra.mxu0 0.0
    %487 = vmatprep.subr.mxu0 0.0
    %488 = vmatpush1.msra.mxu0 0.0
    %489 = vmatprep.subr.mxu0 0.0
    %490 = vmatpush1.msra.mxu0 0.0
    %491 = vmatprep.subr.mxu0 0.0
    %492 = vmatpush1.msra.mxu0 0.0
    %493 = vmatprep.subr.mxu0 0.0
    %494 = vmatpush1.msra.mxu0 0.0
    %495 = vmatprep.subr.mxu0 0.0
    %496 = vmatpush1.msra.mxu0 0.0
    %497 = vmatprep.subr.mxu0 0.0
    %498 = vmatpush1.msra.mxu0 0.0
    %499 = vmatprep.subr.mxu0 0.0
    %500 = vmatpush1.msra.mxu0 0.0
    %501 = vmatprep.subr.mxu0 0.0
    %v502 = vand.u32 %v86, 4294901760
    %503 = vmatpush1.msra.mxu0 %v502
    %504 = vmatprep.subr.mxu0 0.0
    %505 = vmatpush2.msra.mxu0 0.0
    %506 = vmatprep.subr.mxu0 0.0
    %507 = vmatpush2.msra.mxu0 0.0
    %508 = vmatprep.subr.mxu0 0.0
    %509 = vmatpush2.msra.mxu0 0.0
    %510 = vmatprep.subr.mxu0 0.0
    %511 = vmatpush2.msra.mxu0 0.0
    %512 = vmatprep.subr.mxu0 0.0
    %513 = vmatpush2.msra.mxu0 0.0
    %514 = vmatprep.subr.mxu0 0.0
    %515 = vmatpush2.msra.mxu0 0.0
    %516 = vmatprep.subr.mxu0 0.0
    %517 = vmatpush2.msra.mxu0 0.0
    %518 = vmatprep.subr.mxu0 0.0
    %519 = vmatpush2.msra.mxu0 0.0
    %520 = vmatprep.subr.mxu0 0.0
    %521 = vmatpush2.msra.mxu0 0.0
    %522 = vmatprep.subr.mxu0 0.0
    %523 = vmatpush2.msra.mxu0 0.0
    %524 = vmatprep.subr.mxu0 0.0
    %525 = vmatpush2.msra.mxu0 0.0
    %526 = vmatprep.subr.mxu0 0.0
    %527 = vmatpush2.msra.mxu0 0.0
    %528 = vmatprep.subr.mxu0 0.0
    %529 = vmatpush2.msra.mxu0 0.0
    %530 = vmatprep.subr.mxu0 0.0
    %531 = vmatpush2.msra.mxu0 0.0
    %532 = vmatprep.subr.mxu0 0.0
    %533 = vmatpush2.msra.mxu0 0.0
    %534 = vmatprep.subr.mxu0 0.0
    %535 = vmatpush2.msra.mxu0 0.0
    %536 = vmatprep.mubr.f32.mxu0 0.0
    %v537 = vand.u32 %v95, 4294901760
    %538 = vmatmul.mubr.f32.gmra.mxu0 %v537
    %v539 = vpop.f32.mrf.mxu0
    %v540 = vadd.f32 %v468, %v539
    %v541 = vpop.f32.mrf.mxu0
    %542 = vdwg.mxu0
    %v543 = vmul.f32 %v540, %v84
    %v544 = vadd.f32 %v543, %v85
    %v545 = vsub.f32 %v544, %v80
    %v546 = vmul.f32 %v81, %v545
    %v547 = vxor.u32 %v546, 2147483648
    %v548 = vmul.f32 %v547, 1.442695
    %v549 = vpow.pop %v548
    %v550 = vadd.f32 %v549, 1.0
    %v551 = vrcp.pop %v550
    %v552 = vmul.f32 1.0, %v551
    %v553 = vmul.f32 %v83, %v552
    %v554 = vrot.slane %v553, 4
    %v555 = vadd.f32 %v553, %v554
    %v556 = vrot.slane %v555, 2
    %v557 = vadd.f32 %v555, %v556
    %v558 = vrot.slane %v557, 1
    %v559 = vadd.f32 %v557, %v558
    %v560 = vmul.f32 %v82, %v552
    %v561 = vrot.slane %v560, 4
    %v562 = vadd.f32 %v560, %v561
    %v563 = vrot.slane %v562, 2
    %v564 = vadd.f32 %v562, %v563
    %v565 = vrot.slane %v564, 1
    %v566 = vadd.f32 %v564, %v565
    %v567 = vld [vmem:[%s1] sm:$0x1]
    %v569 = vlaneseq
    %v570 = vshrl.u32 %v569, 7
    %v571 = vsub.s32 0, %v570
    %v572 = vrot.slane %v567, %v571
    %v574 = vmul.f32 %v60, %v572
    %v575 = vmul.f32 %v61, %v572
    %v576 = vmul.f32 %v62, %v572
    %v577 = vmul.f32 %v63, %v572
    %578 = vmatprep.subr.mxu0 0.0
    %v579 = vand.u32 %v79, 4294901760
    %580 = vmatpush1.msra.mxu0 %v579
    %581 = vmatprep.subr.mxu0 0.0
    %v582 = vand.u32 %v78, 4294901760
    %583 = vmatpush1.msra.mxu0 %v582
    %584 = vmatprep.subr.mxu0 0.0
    %v585 = vand.u32 %v77, 4294901760
    %586 = vmatpush1.msra.mxu0 %v585
    %587 = vmatprep.subr.mxu0 0.0
    %v588 = vand.u32 %v76, 4294901760
    %589 = vmatpush1.msra.mxu0 %v588
    %590 = vmatprep.subr.mxu0 0.0
    %v591 = vand.u32 %v75, 4294901760
    %592 = vmatpush1.msra.mxu0 %v591
    %593 = vmatprep.subr.mxu0 0.0
    %v594 = vand.u32 %v74, 4294901760
    %595 = vmatpush1.msra.mxu0 %v594
    %596 = vmatprep.subr.mxu0 0.0
    %v597 = vand.u32 %v73, 4294901760
    %598 = vmatpush1.msra.mxu0 %v597
    %599 = vmatprep.subr.mxu0 0.0
    %v600 = vand.u32 %v72, 4294901760
    %601 = vmatpush1.msra.mxu0 %v600
    %602 = vmatprep.subr.mxu0 0.0
    %v603 = vand.u32 %v71, 4294901760
    %604 = vmatpush1.msra.mxu0 %v603
    %605 = vmatprep.subr.mxu0 0.0
    %v606 = vand.u32 %v70, 4294901760
    %607 = vmatpush1.msra.mxu0 %v606
    %608 = vmatprep.subr.mxu0 0.0
    %v609 = vand.u32 %v69, 4294901760
    %610 = vmatpush1.msra.mxu0 %v609
    %611 = vmatprep.subr.mxu0 0.0
    %v612 = vand.u32 %v68, 4294901760
    %613 = vmatpush1.msra.mxu0 %v612
    %614 = vmatprep.subr.mxu0 0.0
    %v615 = vand.u32 %v67, 4294901760
    %616 = vmatpush1.msra.mxu0 %v615
    %617 = vmatprep.subr.mxu0 0.0
    %v618 = vand.u32 %v66, 4294901760
    %619 = vmatpush1.msra.mxu0 %v618
    %620 = vmatprep.subr.mxu0 0.0
    %v621 = vand.u32 %v65, 4294901760
    %622 = vmatpush1.msra.mxu0 %v621
    %623 = vmatprep.subr.mxu0 0.0
    %v624 = vand.u32 %v64, 4294901760
    %625 = vmatpush1.msra.mxu0 %v624
    %626 = vmatprep.subr.mxu0 0.0
    %627 = vmatpush2.msra.mxu0 0.0
    %628 = vmatprep.subr.mxu0 0.0
    %629 = vmatpush2.msra.mxu0 0.0
    %630 = vmatprep.subr.mxu0 0.0
    %631 = vmatpush2.msra.mxu0 0.0
    %632 = vmatprep.subr.mxu0 0.0
    %633 = vmatpush2.msra.mxu0 0.0
    %634 = vmatprep.subr.mxu0 0.0
    %635 = vmatpush2.msra.mxu0 0.0
    %636 = vmatprep.subr.mxu0 0.0
    %637 = vmatpush2.msra.mxu0 0.0
    %638 = vmatprep.subr.mxu0 0.0
    %639 = vmatpush2.msra.mxu0 0.0
    %640 = vmatprep.subr.mxu0 0.0
    %641 = vmatpush2.msra.mxu0 0.0
    %642 = vmatprep.subr.mxu0 0.0
    %643 = vmatpush2.msra.mxu0 0.0
    %644 = vmatprep.subr.mxu0 0.0
    %645 = vmatpush2.msra.mxu0 0.0
    %646 = vmatprep.subr.mxu0 0.0
    %647 = vmatpush2.msra.mxu0 0.0
    %648 = vmatprep.subr.mxu0 0.0
    %649 = vmatpush2.msra.mxu0 0.0
    %650 = vmatprep.subr.mxu0 0.0
    %651 = vmatpush2.msra.mxu0 0.0
    %652 = vmatprep.subr.mxu0 0.0
    %653 = vmatpush2.msra.mxu0 0.0
    %654 = vmatprep.subr.mxu0 0.0
    %655 = vmatpush2.msra.mxu0 0.0
    %656 = vmatprep.subr.mxu0 0.0
    %657 = vmatpush2.msra.mxu0 0.0
    %658 = vmatprep.mubr.f32.mxu0 0.0
    %v659 = vand.u32 %v574, 4294901760
    %v660 = vsub.f32 %v574, %v659
    %v661 = vand.u32 %v660, 4294901760
    %v662 = vsub.f32 %v660, %v661
    %v663 = vand.u32 %v662, 4294901760
    %664 = vmatmul.mubr.f32.gmra.mxu0 %v663
    %v665 = vpop.f32.mrf.mxu0
    %v666 = vadd.f32 0.0, %v665
    %v667 = vpop.f32.mrf.mxu0
    %668 = vmatprep.mubr.f32.mxu0 0.0
    %v669 = vand.u32 %v575, 4294901760
    %v670 = vsub.f32 %v575, %v669
    %v671 = vand.u32 %v670, 4294901760
    %v672 = vsub.f32 %v670, %v671
    %v673 = vand.u32 %v672, 4294901760
    %674 = vmatmul.mubr.f32.gmra.mxu0 %v673
    %v675 = vpop.f32.mrf.mxu0
    %v676 = vadd.f32 0.0, %v675
    %v677 = vpop.f32.mrf.mxu0
    %678 = vmatprep.mubr.f32.mxu0 0.0
    %v679 = vand.u32 %v576, 4294901760
    %v680 = vsub.f32 %v576, %v679
    %v681 = vand.u32 %v680, 4294901760
    %v682 = vsub.f32 %v680, %v681
    %v683 = vand.u32 %v682, 4294901760
    %684 = vmatmul.mubr.f32.gmra.mxu0 %v683
    %v685 = vpop.f32.mrf.mxu0
    %v686 = vadd.f32 0.0, %v685
    %v687 = vpop.f32.mrf.mxu0
    %688 = vmatprep.mubr.f32.mxu0 0.0
    %v689 = vand.u32 %v577, 4294901760
    %v690 = vsub.f32 %v577, %v689
    %v691 = vand.u32 %v690, 4294901760
    %v692 = vsub.f32 %v690, %v691
    %v693 = vand.u32 %v692, 4294901760
    %694 = vmatmul.mubr.f32.gmra.mxu0 %v693
    %v695 = vpop.f32.mrf.mxu0
    %v696 = vadd.f32 0.0, %v695
    %v697 = vpop.f32.mrf.mxu0
    %698 = vdwg.mxu0
    %699 = vmatprep.subr.mxu0 0.0
    %v700 = vand.u32 %v79, 4294901760
    %v701 = vsub.f32 %v79, %v700
    %v702 = vand.u32 %v701, 4294901760
    %v703 = vsub.f32 %v701, %v702
    %v704 = vand.u32 %v703, 4294901760
    %705 = vmatpush1.msra.mxu0 %v704
    %706 = vmatprep.subr.mxu0 0.0
    %v707 = vand.u32 %v78, 4294901760
    %v708 = vsub.f32 %v78, %v707
    %v709 = vand.u32 %v708, 4294901760
    %v710 = vsub.f32 %v708, %v709
    %v711 = vand.u32 %v710, 4294901760
    %712 = vmatpush1.msra.mxu0 %v711
    %713 = vmatprep.subr.mxu0 0.0
    %v714 = vand.u32 %v77, 4294901760
    %v715 = vsub.f32 %v77, %v714
    %v716 = vand.u32 %v715, 4294901760
    %v717 = vsub.f32 %v715, %v716
    %v718 = vand.u32 %v717, 4294901760
    %719 = vmatpush1.msra.mxu0 %v718
    %720 = vmatprep.subr.mxu0 0.0
    %v721 = vand.u32 %v76, 4294901760
    %v722 = vsub.f32 %v76, %v721
    %v723 = vand.u32 %v722, 4294901760
    %v724 = vsub.f32 %v722, %v723
    %v725 = vand.u32 %v724, 4294901760
    %726 = vmatpush1.msra.mxu0 %v725
    %727 = vmatprep.subr.mxu0 0.0
    %v728 = vand.u32 %v75, 4294901760
    %v729 = vsub.f32 %v75, %v728
    %v730 = vand.u32 %v729, 4294901760
    %v731 = vsub.f32 %v729, %v730
    %v732 = vand.u32 %v731, 4294901760
    %733 = vmatpush1.msra.mxu0 %v732
    %734 = vmatprep.subr.mxu0 0.0
    %v735 = vand.u32 %v74, 4294901760
    %v736 = vsub.f32 %v74, %v735
    %v737 = vand.u32 %v736, 4294901760
    %v738 = vsub.f32 %v736, %v737
    %v739 = vand.u32 %v738, 4294901760
    %740 = vmatpush1.msra.mxu0 %v739
    %741 = vmatprep.subr.mxu0 0.0
    %v742 = vand.u32 %v73, 4294901760
    %v743 = vsub.f32 %v73, %v742
    %v744 = vand.u32 %v743, 4294901760
    %v745 = vsub.f32 %v743, %v744
    %v746 = vand.u32 %v745, 4294901760
    %747 = vmatpush1.msra.mxu0 %v746
    %748 = vmatprep.subr.mxu0 0.0
    %v749 = vand.u32 %v72, 4294901760
    %v750 = vsub.f32 %v72, %v749
    %v751 = vand.u32 %v750, 4294901760
    %v752 = vsub.f32 %v750, %v751
    %v753 = vand.u32 %v752, 4294901760
    %754 = vmatpush1.msra.mxu0 %v753
    %755 = vmatprep.subr.mxu0 0.0
    %v756 = vand.u32 %v71, 4294901760
    %v757 = vsub.f32 %v71, %v756
    %v758 = vand.u32 %v757, 4294901760
    %v759 = vsub.f32 %v757, %v758
    %v760 = vand.u32 %v759, 4294901760
    %761 = vmatpush1.msra.mxu0 %v760
    %762 = vmatprep.subr.mxu0 0.0
    %v763 = vand.u32 %v70, 4294901760
    %v764 = vsub.f32 %v70, %v763
    %v765 = vand.u32 %v764, 4294901760
    %v766 = vsub.f32 %v764, %v765
    %v767 = vand.u32 %v766, 4294901760
    %768 = vmatpush1.msra.mxu0 %v767
    %769 = vmatprep.subr.mxu0 0.0
    %v770 = vand.u32 %v69, 4294901760
    %v771 = vsub.f32 %v69, %v770
    %v772 = vand.u32 %v771, 4294901760
    %v773 = vsub.f32 %v771, %v772
    %v774 = vand.u32 %v773, 4294901760
    %775 = vmatpush1.msra.mxu0 %v774
    %776 = vmatprep.subr.mxu0 0.0
    %v777 = vand.u32 %v68, 4294901760
    %v778 = vsub.f32 %v68, %v777
    %v779 = vand.u32 %v778, 4294901760
    %v780 = vsub.f32 %v778, %v779
    %v781 = vand.u32 %v780, 4294901760
    %782 = vmatpush1.msra.mxu0 %v781
    %783 = vmatprep.subr.mxu0 0.0
    %v784 = vand.u32 %v67, 4294901760
    %v785 = vsub.f32 %v67, %v784
    %v786 = vand.u32 %v785, 4294901760
    %v787 = vsub.f32 %v785, %v786
    %v788 = vand.u32 %v787, 4294901760
    %789 = vmatpush1.msra.mxu0 %v788
    %790 = vmatprep.subr.mxu0 0.0
    %v791 = vand.u32 %v66, 4294901760
    %v792 = vsub.f32 %v66, %v791
    %v793 = vand.u32 %v792, 4294901760
    %v794 = vsub.f32 %v792, %v793
    %v795 = vand.u32 %v794, 4294901760
    %796 = vmatpush1.msra.mxu0 %v795
    %797 = vmatprep.subr.mxu0 0.0
    %v798 = vand.u32 %v65, 4294901760
    %v799 = vsub.f32 %v65, %v798
    %v800 = vand.u32 %v799, 4294901760
    %v801 = vsub.f32 %v799, %v800
    %v802 = vand.u32 %v801, 4294901760
    %803 = vmatpush1.msra.mxu0 %v802
    %804 = vmatprep.subr.mxu0 0.0
    %v805 = vand.u32 %v64, 4294901760
    %v806 = vsub.f32 %v64, %v805
    %v807 = vand.u32 %v806, 4294901760
    %v808 = vsub.f32 %v806, %v807
    %v809 = vand.u32 %v808, 4294901760
    %810 = vmatpush1.msra.mxu0 %v809
    %811 = vmatprep.subr.mxu0 0.0
    %812 = vmatpush2.msra.mxu0 0.0
    %813 = vmatprep.subr.mxu0 0.0
    %814 = vmatpush2.msra.mxu0 0.0
    %815 = vmatprep.subr.mxu0 0.0
    %816 = vmatpush2.msra.mxu0 0.0
    %817 = vmatprep.subr.mxu0 0.0
    %818 = vmatpush2.msra.mxu0 0.0
    %819 = vmatprep.subr.mxu0 0.0
    %820 = vmatpush2.msra.mxu0 0.0
    %821 = vmatprep.subr.mxu0 0.0
    %822 = vmatpush2.msra.mxu0 0.0
    %823 = vmatprep.subr.mxu0 0.0
    %824 = vmatpush2.msra.mxu0 0.0
    %825 = vmatprep.subr.mxu0 0.0
    %826 = vmatpush2.msra.mxu0 0.0
    %827 = vmatprep.subr.mxu0 0.0
    %828 = vmatpush2.msra.mxu0 0.0
    %829 = vmatprep.subr.mxu0 0.0
    %830 = vmatpush2.msra.mxu0 0.0
    %831 = vmatprep.subr.mxu0 0.0
    %832 = vmatpush2.msra.mxu0 0.0
    %833 = vmatprep.subr.mxu0 0.0
    %834 = vmatpush2.msra.mxu0 0.0
    %835 = vmatprep.subr.mxu0 0.0
    %836 = vmatpush2.msra.mxu0 0.0
    %837 = vmatprep.subr.mxu0 0.0
    %838 = vmatpush2.msra.mxu0 0.0
    %839 = vmatprep.subr.mxu0 0.0
    %840 = vmatpush2.msra.mxu0 0.0
    %841 = vmatprep.subr.mxu0 0.0
    %842 = vmatpush2.msra.mxu0 0.0
    %843 = vmatprep.mubr.f32.mxu0 0.0
    %v844 = vand.u32 %v574, 4294901760
    %845 = vmatmul.mubr.f32.gmra.mxu0 %v844
    %v846 = vpop.f32.mrf.mxu0
    %v847 = vadd.f32 %v666, %v846
    %v848 = vpop.f32.mrf.mxu0
    %849 = vmatprep.mubr.f32.mxu0 0.0
    %v850 = vand.u32 %v575, 4294901760
    %851 = vmatmul.mubr.f32.gmra.mxu0 %v850
    %v852 = vpop.f32.mrf.mxu0
    %v853 = vadd.f32 %v676, %v852
    %v854 = vpop.f32.mrf.mxu0
    %855 = vmatprep.mubr.f32.mxu0 0.0
    %v856 = vand.u32 %v576, 4294901760
    %857 = vmatmul.mubr.f32.gmra.mxu0 %v856
    %v858 = vpop.f32.mrf.mxu0
    %v859 = vadd.f32 %v686, %v858
    %v860 = vpop.f32.mrf.mxu0
    %861 = vmatprep.mubr.f32.mxu0 0.0
    %v862 = vand.u32 %v577, 4294901760
    %863 = vmatmul.mubr.f32.gmra.mxu0 %v862
    %v864 = vpop.f32.mrf.mxu0
    %v865 = vadd.f32 %v696, %v864
    %v866 = vpop.f32.mrf.mxu0
    %867 = vdwg.mxu0
    %868 = vmatprep.subr.mxu0 0.0
    %v869 = vand.u32 %v79, 4294901760
    %v870 = vsub.f32 %v79, %v869
    %871 = vmatpush1.msra.mxu0 %v870
    %872 = vmatprep.subr.mxu0 0.0
    %v873 = vand.u32 %v78, 4294901760
    %v874 = vsub.f32 %v78, %v873
    %875 = vmatpush1.msra.mxu0 %v874
    %876 = vmatprep.subr.mxu0 0.0
    %v877 = vand.u32 %v77, 4294901760
    %v878 = vsub.f32 %v77, %v877
    %879 = vmatpush1.msra.mxu0 %v878
    %880 = vmatprep.subr.mxu0 0.0
    %v881 = vand.u32 %v76, 4294901760
    %v882 = vsub.f32 %v76, %v881
    %883 = vmatpush1.msra.mxu0 %v882
    %884 = vmatprep.subr.mxu0 0.0
    %v885 = vand.u32 %v75, 4294901760
    %v886 = vsub.f32 %v75, %v885
    %887 = vmatpush1.msra.mxu0 %v886
    %888 = vmatprep.subr.mxu0 0.0
    %v889 = vand.u32 %v74, 4294901760
    %v890 = vsub.f32 %v74, %v889
    %891 = vmatpush1.msra.mxu0 %v890
    %892 = vmatprep.subr.mxu0 0.0
    %v893 = vand.u32 %v73, 4294901760
    %v894 = vsub.f32 %v73, %v893
    %895 = vmatpush1.msra.mxu0 %v894
    %896 = vmatprep.subr.mxu0 0.0
    %v897 = vand.u32 %v72, 4294901760
    %v898 = vsub.f32 %v72, %v897
    %899 = vmatpush1.msra.mxu0 %v898
    %900 = vmatprep.subr.mxu0 0.0
    %v901 = vand.u32 %v71, 4294901760
    %v902 = vsub.f32 %v71, %v901
    %903 = vmatpush1.msra.mxu0 %v902
    %904 = vmatprep.subr.mxu0 0.0
    %v905 = vand.u32 %v70, 4294901760
    %v906 = vsub.f32 %v70, %v905
    %907 = vmatpush1.msra.mxu0 %v906
    %908 = vmatprep.subr.mxu0 0.0
    %v909 = vand.u32 %v69, 4294901760
    %v910 = vsub.f32 %v69, %v909
    %911 = vmatpush1.msra.mxu0 %v910
    %912 = vmatprep.subr.mxu0 0.0
    %v913 = vand.u32 %v68, 4294901760
    %v914 = vsub.f32 %v68, %v913
    %915 = vmatpush1.msra.mxu0 %v914
    %916 = vmatprep.subr.mxu0 0.0
    %v917 = vand.u32 %v67, 4294901760
    %v918 = vsub.f32 %v67, %v917
    %919 = vmatpush1.msra.mxu0 %v918
    %920 = vmatprep.subr.mxu0 0.0
    %v921 = vand.u32 %v66, 4294901760
    %v922 = vsub.f32 %v66, %v921
    %923 = vmatpush1.msra.mxu0 %v922
    %924 = vmatprep.subr.mxu0 0.0
    %v925 = vand.u32 %v65, 4294901760
    %v926 = vsub.f32 %v65, %v925
    %927 = vmatpush1.msra.mxu0 %v926
    %928 = vmatprep.subr.mxu0 0.0
    %v929 = vand.u32 %v64, 4294901760
    %v930 = vsub.f32 %v64, %v929
    %931 = vmatpush1.msra.mxu0 %v930
    %932 = vmatprep.subr.mxu0 0.0
    %933 = vmatpush2.msra.mxu0 0.0
    %934 = vmatprep.subr.mxu0 0.0
    %935 = vmatpush2.msra.mxu0 0.0
    %936 = vmatprep.subr.mxu0 0.0
    %937 = vmatpush2.msra.mxu0 0.0
    %938 = vmatprep.subr.mxu0 0.0
    %939 = vmatpush2.msra.mxu0 0.0
    %940 = vmatprep.subr.mxu0 0.0
    %941 = vmatpush2.msra.mxu0 0.0
    %942 = vmatprep.subr.mxu0 0.0
    %943 = vmatpush2.msra.mxu0 0.0
    %944 = vmatprep.subr.mxu0 0.0
    %945 = vmatpush2.msra.mxu0 0.0
    %946 = vmatprep.subr.mxu0 0.0
    %947 = vmatpush2.msra.mxu0 0.0
    %948 = vmatprep.subr.mxu0 0.0
    %949 = vmatpush2.msra.mxu0 0.0
    %950 = vmatprep.subr.mxu0 0.0
    %951 = vmatpush2.msra.mxu0 0.0
    %952 = vmatprep.subr.mxu0 0.0
    %953 = vmatpush2.msra.mxu0 0.0
    %954 = vmatprep.subr.mxu0 0.0
    %955 = vmatpush2.msra.mxu0 0.0
    %956 = vmatprep.subr.mxu0 0.0
    %957 = vmatpush2.msra.mxu0 0.0
    %958 = vmatprep.subr.mxu0 0.0
    %959 = vmatpush2.msra.mxu0 0.0
    %960 = vmatprep.subr.mxu0 0.0
    %961 = vmatpush2.msra.mxu0 0.0
    %962 = vmatprep.subr.mxu0 0.0
    %963 = vmatpush2.msra.mxu0 0.0
    %964 = vmatprep.mubr.f32.mxu0 0.0
    %v965 = vand.u32 %v574, 4294901760
    %v966 = vsub.f32 %v574, %v965
    %967 = vmatmul.mubr.f32.gmra.mxu0 %v966
    %v968 = vpop.f32.mrf.mxu0
    %v969 = vadd.f32 %v847, %v968
    %v970 = vpop.f32.mrf.mxu0
    %971 = vmatprep.mubr.f32.mxu0 0.0
    %v972 = vand.u32 %v575, 4294901760
    %v973 = vsub.f32 %v575, %v972
    %974 = vmatmul.mubr.f32.gmra.mxu0 %v973
    %v975 = vpop.f32.mrf.mxu0
    %v976 = vadd.f32 %v853, %v975
    %v977 = vpop.f32.mrf.mxu0
    %978 = vmatprep.mubr.f32.mxu0 0.0
    %v979 = vand.u32 %v576, 4294901760
    %v980 = vsub.f32 %v576, %v979
    %981 = vmatmul.mubr.f32.gmra.mxu0 %v980
    %v982 = vpop.f32.mrf.mxu0
    %v983 = vadd.f32 %v859, %v982
    %v984 = vpop.f32.mrf.mxu0
    %985 = vmatprep.mubr.f32.mxu0 0.0
    %v986 = vand.u32 %v577, 4294901760
    %v987 = vsub.f32 %v577, %v986
    %988 = vmatmul.mubr.f32.gmra.mxu0 %v987
    %v989 = vpop.f32.mrf.mxu0
    %v990 = vadd.f32 %v865, %v989
    %v991 = vpop.f32.mrf.mxu0
    %992 = vdwg.mxu0
    %993 = vmatprep.subr.mxu0 0.0
    %v994 = vand.u32 %v79, 4294901760
    %995 = vmatpush1.msra.mxu0 %v994
    %996 = vmatprep.subr.mxu0 0.0
    %v997 = vand.u32 %v78, 4294901760
    %998 = vmatpush1.msra.mxu0 %v997
    %999 = vmatprep.subr.mxu0 0.0
    %v1000 = vand.u32 %v77, 4294901760
    %1001 = vmatpush1.msra.mxu0 %v1000
    %1002 = vmatprep.subr.mxu0 0.0
    %v1003 = vand.u32 %v76, 4294901760
    %1004 = vmatpush1.msra.mxu0 %v1003
    %1005 = vmatprep.subr.mxu0 0.0
    %v1006 = vand.u32 %v75, 4294901760
    %1007 = vmatpush1.msra.mxu0 %v1006
    %1008 = vmatprep.subr.mxu0 0.0
    %v1009 = vand.u32 %v74, 4294901760
    %1010 = vmatpush1.msra.mxu0 %v1009
    %1011 = vmatprep.subr.mxu0 0.0
    %v1012 = vand.u32 %v73, 4294901760
    %1013 = vmatpush1.msra.mxu0 %v1012
    %1014 = vmatprep.subr.mxu0 0.0
    %v1015 = vand.u32 %v72, 4294901760
    %1016 = vmatpush1.msra.mxu0 %v1015
    %1017 = vmatprep.subr.mxu0 0.0
    %v1018 = vand.u32 %v71, 4294901760
    %1019 = vmatpush1.msra.mxu0 %v1018
    %1020 = vmatprep.subr.mxu0 0.0
    %v1021 = vand.u32 %v70, 4294901760
    %1022 = vmatpush1.msra.mxu0 %v1021
    %1023 = vmatprep.subr.mxu0 0.0
    %v1024 = vand.u32 %v69, 4294901760
    %1025 = vmatpush1.msra.mxu0 %v1024
    %1026 = vmatprep.subr.mxu0 0.0
    %v1027 = vand.u32 %v68, 4294901760
    %1028 = vmatpush1.msra.mxu0 %v1027
    %1029 = vmatprep.subr.mxu0 0.0
    %v1030 = vand.u32 %v67, 4294901760
    %1031 = vmatpush1.msra.mxu0 %v1030
    %1032 = vmatprep.subr.mxu0 0.0
    %v1033 = vand.u32 %v66, 4294901760
    %1034 = vmatpush1.msra.mxu0 %v1033
    %1035 = vmatprep.subr.mxu0 0.0
    %v1036 = vand.u32 %v65, 4294901760
    %1037 = vmatpush1.msra.mxu0 %v1036
    %1038 = vmatprep.subr.mxu0 0.0
    %v1039 = vand.u32 %v64, 4294901760
    %1040 = vmatpush1.msra.mxu0 %v1039
    %1041 = vmatprep.subr.mxu0 0.0
    %1042 = vmatpush2.msra.mxu0 0.0
    %1043 = vmatprep.subr.mxu0 0.0
    %1044 = vmatpush2.msra.mxu0 0.0
    %1045 = vmatprep.subr.mxu0 0.0
    %1046 = vmatpush2.msra.mxu0 0.0
    %1047 = vmatprep.subr.mxu0 0.0
    %1048 = vmatpush2.msra.mxu0 0.0
    %1049 = vmatprep.subr.mxu0 0.0
    %1050 = vmatpush2.msra.mxu0 0.0
    %1051 = vmatprep.subr.mxu0 0.0
    %1052 = vmatpush2.msra.mxu0 0.0
    %1053 = vmatprep.subr.mxu0 0.0
    %1054 = vmatpush2.msra.mxu0 0.0
    %1055 = vmatprep.subr.mxu0 0.0
    %1056 = vmatpush2.msra.mxu0 0.0
    %1057 = vmatprep.subr.mxu0 0.0
    %1058 = vmatpush2.msra.mxu0 0.0
    %1059 = vmatprep.subr.mxu0 0.0
    %1060 = vmatpush2.msra.mxu0 0.0
    %1061 = vmatprep.subr.mxu0 0.0
    %1062 = vmatpush2.msra.mxu0 0.0
    %1063 = vmatprep.subr.mxu0 0.0
    %1064 = vmatpush2.msra.mxu0 0.0
    %1065 = vmatprep.subr.mxu0 0.0
    %1066 = vmatpush2.msra.mxu0 0.0
    %1067 = vmatprep.subr.mxu0 0.0
    %1068 = vmatpush2.msra.mxu0 0.0
    %1069 = vmatprep.subr.mxu0 0.0
    %1070 = vmatpush2.msra.mxu0 0.0
    %1071 = vmatprep.subr.mxu0 0.0
    %1072 = vmatpush2.msra.mxu0 0.0
    %1073 = vmatprep.mubr.f32.mxu0 0.0
    %v1074 = vand.u32 %v574, 4294901760
    %v1075 = vsub.f32 %v574, %v1074
    %v1076 = vand.u32 %v1075, 4294901760
    %1077 = vmatmul.mubr.f32.gmra.mxu0 %v1076
    %v1078 = vpop.f32.mrf.mxu0
    %v1079 = vadd.f32 %v969, %v1078
    %v1080 = vpop.f32.mrf.mxu0
    %1081 = vmatprep.mubr.f32.mxu0 0.0
    %v1082 = vand.u32 %v575, 4294901760
    %v1083 = vsub.f32 %v575, %v1082
    %v1084 = vand.u32 %v1083, 4294901760
    %1085 = vmatmul.mubr.f32.gmra.mxu0 %v1084
    %v1086 = vpop.f32.mrf.mxu0
    %v1087 = vadd.f32 %v976, %v1086
    %v1088 = vpop.f32.mrf.mxu0
    %1089 = vmatprep.mubr.f32.mxu0 0.0
    %v1090 = vand.u32 %v576, 4294901760
    %v1091 = vsub.f32 %v576, %v1090
    %v1092 = vand.u32 %v1091, 4294901760
    %1093 = vmatmul.mubr.f32.gmra.mxu0 %v1092
    %v1094 = vpop.f32.mrf.mxu0
    %v1095 = vadd.f32 %v983, %v1094
    %v1096 = vpop.f32.mrf.mxu0
    %1097 = vmatprep.mubr.f32.mxu0 0.0
    %v1098 = vand.u32 %v577, 4294901760
    %v1099 = vsub.f32 %v577, %v1098
    %v1100 = vand.u32 %v1099, 4294901760
    %1101 = vmatmul.mubr.f32.gmra.mxu0 %v1100
    %v1102 = vpop.f32.mrf.mxu0
    %v1103 = vadd.f32 %v990, %v1102
    %v1104 = vpop.f32.mrf.mxu0
    %1105 = vdwg.mxu0
    %1106 = vmatprep.subr.mxu0 0.0
    %v1107 = vand.u32 %v79, 4294901760
    %v1108 = vsub.f32 %v79, %v1107
    %v1109 = vand.u32 %v1108, 4294901760
    %1110 = vmatpush1.msra.mxu0 %v1109
    %1111 = vmatprep.subr.mxu0 0.0
    %v1112 = vand.u32 %v78, 4294901760
    %v1113 = vsub.f32 %v78, %v1112
    %v1114 = vand.u32 %v1113, 4294901760
    %1115 = vmatpush1.msra.mxu0 %v1114
    %1116 = vmatprep.subr.mxu0 0.0
    %v1117 = vand.u32 %v77, 4294901760
    %v1118 = vsub.f32 %v77, %v1117
    %v1119 = vand.u32 %v1118, 4294901760
    %1120 = vmatpush1.msra.mxu0 %v1119
    %1121 = vmatprep.subr.mxu0 0.0
    %v1122 = vand.u32 %v76, 4294901760
    %v1123 = vsub.f32 %v76, %v1122
    %v1124 = vand.u32 %v1123, 4294901760
    %1125 = vmatpush1.msra.mxu0 %v1124
    %1126 = vmatprep.subr.mxu0 0.0
    %v1127 = vand.u32 %v75, 4294901760
    %v1128 = vsub.f32 %v75, %v1127
    %v1129 = vand.u32 %v1128, 4294901760
    %1130 = vmatpush1.msra.mxu0 %v1129
    %1131 = vmatprep.subr.mxu0 0.0
    %v1132 = vand.u32 %v74, 4294901760
    %v1133 = vsub.f32 %v74, %v1132
    %v1134 = vand.u32 %v1133, 4294901760
    %1135 = vmatpush1.msra.mxu0 %v1134
    %1136 = vmatprep.subr.mxu0 0.0
    %v1137 = vand.u32 %v73, 4294901760
    %v1138 = vsub.f32 %v73, %v1137
    %v1139 = vand.u32 %v1138, 4294901760
    %1140 = vmatpush1.msra.mxu0 %v1139
    %1141 = vmatprep.subr.mxu0 0.0
    %v1142 = vand.u32 %v72, 4294901760
    %v1143 = vsub.f32 %v72, %v1142
    %v1144 = vand.u32 %v1143, 4294901760
    %1145 = vmatpush1.msra.mxu0 %v1144
    %1146 = vmatprep.subr.mxu0 0.0
    %v1147 = vand.u32 %v71, 4294901760
    %v1148 = vsub.f32 %v71, %v1147
    %v1149 = vand.u32 %v1148, 4294901760
    %1150 = vmatpush1.msra.mxu0 %v1149
    %1151 = vmatprep.subr.mxu0 0.0
    %v1152 = vand.u32 %v70, 4294901760
    %v1153 = vsub.f32 %v70, %v1152
    %v1154 = vand.u32 %v1153, 4294901760
    %1155 = vmatpush1.msra.mxu0 %v1154
    %1156 = vmatprep.subr.mxu0 0.0
    %v1157 = vand.u32 %v69, 4294901760
    %v1158 = vsub.f32 %v69, %v1157
    %v1159 = vand.u32 %v1158, 4294901760
    %1160 = vmatpush1.msra.mxu0 %v1159
    %1161 = vmatprep.subr.mxu0 0.0
    %v1162 = vand.u32 %v68, 4294901760
    %v1163 = vsub.f32 %v68, %v1162
    %v1164 = vand.u32 %v1163, 4294901760
    %1165 = vmatpush1.msra.mxu0 %v1164
    %1166 = vmatprep.subr.mxu0 0.0
    %v1167 = vand.u32 %v67, 4294901760
    %v1168 = vsub.f32 %v67, %v1167
    %v1169 = vand.u32 %v1168, 4294901760
    %1170 = vmatpush1.msra.mxu0 %v1169
    %1171 = vmatprep.subr.mxu0 0.0
    %v1172 = vand.u32 %v66, 4294901760
    %v1173 = vsub.f32 %v66, %v1172
    %v1174 = vand.u32 %v1173, 4294901760
    %1175 = vmatpush1.msra.mxu0 %v1174
    %1176 = vmatprep.subr.mxu0 0.0
    %v1177 = vand.u32 %v65, 4294901760
    %v1178 = vsub.f32 %v65, %v1177
    %v1179 = vand.u32 %v1178, 4294901760
    %1180 = vmatpush1.msra.mxu0 %v1179
    %1181 = vmatprep.subr.mxu0 0.0
    %v1182 = vand.u32 %v64, 4294901760
    %v1183 = vsub.f32 %v64, %v1182
    %v1184 = vand.u32 %v1183, 4294901760
    %1185 = vmatpush1.msra.mxu0 %v1184
    %1186 = vmatprep.subr.mxu0 0.0
    %1187 = vmatpush2.msra.mxu0 0.0
    %1188 = vmatprep.subr.mxu0 0.0
    %1189 = vmatpush2.msra.mxu0 0.0
    %1190 = vmatprep.subr.mxu0 0.0
    %1191 = vmatpush2.msra.mxu0 0.0
    %1192 = vmatprep.subr.mxu0 0.0
    %1193 = vmatpush2.msra.mxu0 0.0
    %1194 = vmatprep.subr.mxu0 0.0
    %1195 = vmatpush2.msra.mxu0 0.0
    %1196 = vmatprep.subr.mxu0 0.0
    %1197 = vmatpush2.msra.mxu0 0.0
    %1198 = vmatprep.subr.mxu0 0.0
    %1199 = vmatpush2.msra.mxu0 0.0
    %1200 = vmatprep.subr.mxu0 0.0
    %1201 = vmatpush2.msra.mxu0 0.0
    %1202 = vmatprep.subr.mxu0 0.0
    %1203 = vmatpush2.msra.mxu0 0.0
    %1204 = vmatprep.subr.mxu0 0.0
    %1205 = vmatpush2.msra.mxu0 0.0
    %1206 = vmatprep.subr.mxu0 0.0
    %1207 = vmatpush2.msra.mxu0 0.0
    %1208 = vmatprep.subr.mxu0 0.0
    %1209 = vmatpush2.msra.mxu0 0.0
    %1210 = vmatprep.subr.mxu0 0.0
    %1211 = vmatpush2.msra.mxu0 0.0
    %1212 = vmatprep.subr.mxu0 0.0
    %1213 = vmatpush2.msra.mxu0 0.0
    %1214 = vmatprep.subr.mxu0 0.0
    %1215 = vmatpush2.msra.mxu0 0.0
    %1216 = vmatprep.subr.mxu0 0.0
    %1217 = vmatpush2.msra.mxu0 0.0
    %1218 = vmatprep.mubr.f32.mxu0 0.0
    %v1219 = vand.u32 %v574, 4294901760
    %1220 = vmatmul.mubr.f32.gmra.mxu0 %v1219
    %v1221 = vpop.f32.mrf.mxu0
    %v1222 = vadd.f32 %v1079, %v1221
    %v1223 = vpop.f32.mrf.mxu0
    %1224 = vmatprep.mubr.f32.mxu0 0.0
    %v1225 = vand.u32 %v575, 4294901760
    %1226 = vmatmul.mubr.f32.gmra.mxu0 %v1225
    %v1227 = vpop.f32.mrf.mxu0
    %v1228 = vadd.f32 %v1087, %v1227
    %v1229 = vpop.f32.mrf.mxu0
    %1230 = vmatprep.mubr.f32.mxu0 0.0
    %v1231 = vand.u32 %v576, 4294901760
    %1232 = vmatmul.mubr.f32.gmra.mxu0 %v1231
    %v1233 = vpop.f32.mrf.mxu0
    %v1234 = vadd.f32 %v1095, %v1233
    %v1235 = vpop.f32.mrf.mxu0
    %1236 = vmatprep.mubr.f32.mxu0 0.0
    %v1237 = vand.u32 %v577, 4294901760
    %1238 = vmatmul.mubr.f32.gmra.mxu0 %v1237
    %v1239 = vpop.f32.mrf.mxu0
    %v1240 = vadd.f32 %v1103, %v1239
    %v1241 = vpop.f32.mrf.mxu0
    %1242 = vdwg.mxu0
    %1243 = vmatprep.subr.mxu0 0.0
    %v1244 = vand.u32 %v79, 4294901760
    %1245 = vmatpush1.msra.mxu0 %v1244
    %1246 = vmatprep.subr.mxu0 0.0
    %v1247 = vand.u32 %v78, 4294901760
    %1248 = vmatpush1.msra.mxu0 %v1247
    %1249 = vmatprep.subr.mxu0 0.0
    %v1250 = vand.u32 %v77, 4294901760
    %1251 = vmatpush1.msra.mxu0 %v1250
    %1252 = vmatprep.subr.mxu0 0.0
    %v1253 = vand.u32 %v76, 4294901760
    %1254 = vmatpush1.msra.mxu0 %v1253
    %1255 = vmatprep.subr.mxu0 0.0
    %v1256 = vand.u32 %v75, 4294901760
    %1257 = vmatpush1.msra.mxu0 %v1256
    %1258 = vmatprep.subr.mxu0 0.0
    %v1259 = vand.u32 %v74, 4294901760
    %1260 = vmatpush1.msra.mxu0 %v1259
    %1261 = vmatprep.subr.mxu0 0.0
    %v1262 = vand.u32 %v73, 4294901760
    %1263 = vmatpush1.msra.mxu0 %v1262
    %1264 = vmatprep.subr.mxu0 0.0
    %v1265 = vand.u32 %v72, 4294901760
    %1266 = vmatpush1.msra.mxu0 %v1265
    %1267 = vmatprep.subr.mxu0 0.0
    %v1268 = vand.u32 %v71, 4294901760
    %1269 = vmatpush1.msra.mxu0 %v1268
    %1270 = vmatprep.subr.mxu0 0.0
    %v1271 = vand.u32 %v70, 4294901760
    %1272 = vmatpush1.msra.mxu0 %v1271
    %1273 = vmatprep.subr.mxu0 0.0
    %v1274 = vand.u32 %v69, 4294901760
    %1275 = vmatpush1.msra.mxu0 %v1274
    %1276 = vmatprep.subr.mxu0 0.0
    %v1277 = vand.u32 %v68, 4294901760
    %1278 = vmatpush1.msra.mxu0 %v1277
    %1279 = vmatprep.subr.mxu0 0.0
    %v1280 = vand.u32 %v67, 4294901760
    %1281 = vmatpush1.msra.mxu0 %v1280
    %1282 = vmatprep.subr.mxu0 0.0
    %v1283 = vand.u32 %v66, 4294901760
    %1284 = vmatpush1.msra.mxu0 %v1283
    %1285 = vmatprep.subr.mxu0 0.0
    %v1286 = vand.u32 %v65, 4294901760
    %1287 = vmatpush1.msra.mxu0 %v1286
    %1288 = vmatprep.subr.mxu0 0.0
    %v1289 = vand.u32 %v64, 4294901760
    %1290 = vmatpush1.msra.mxu0 %v1289
    %1291 = vmatprep.subr.mxu0 0.0
    %1292 = vmatpush2.msra.mxu0 0.0
    %1293 = vmatprep.subr.mxu0 0.0
    %1294 = vmatpush2.msra.mxu0 0.0
    %1295 = vmatprep.subr.mxu0 0.0
    %1296 = vmatpush2.msra.mxu0 0.0
    %1297 = vmatprep.subr.mxu0 0.0
    %1298 = vmatpush2.msra.mxu0 0.0
    %1299 = vmatprep.subr.mxu0 0.0
    %1300 = vmatpush2.msra.mxu0 0.0
    %1301 = vmatprep.subr.mxu0 0.0
    %1302 = vmatpush2.msra.mxu0 0.0
    %1303 = vmatprep.subr.mxu0 0.0
    %1304 = vmatpush2.msra.mxu0 0.0
    %1305 = vmatprep.subr.mxu0 0.0
    %1306 = vmatpush2.msra.mxu0 0.0
    %1307 = vmatprep.subr.mxu0 0.0
    %1308 = vmatpush2.msra.mxu0 0.0
    %1309 = vmatprep.subr.mxu0 0.0
    %1310 = vmatpush2.msra.mxu0 0.0
    %1311 = vmatprep.subr.mxu0 0.0
    %1312 = vmatpush2.msra.mxu0 0.0
    %1313 = vmatprep.subr.mxu0 0.0
    %1314 = vmatpush2.msra.mxu0 0.0
    %1315 = vmatprep.subr.mxu0 0.0
    %1316 = vmatpush2.msra.mxu0 0.0
    %1317 = vmatprep.subr.mxu0 0.0
    %1318 = vmatpush2.msra.mxu0 0.0
    %1319 = vmatprep.subr.mxu0 0.0
    %1320 = vmatpush2.msra.mxu0 0.0
    %1321 = vmatprep.subr.mxu0 0.0
    %1322 = vmatpush2.msra.mxu0 0.0
    %1323 = vmatprep.mubr.f32.mxu0 0.0
    %v1324 = vand.u32 %v574, 4294901760
    %1325 = vmatmul.mubr.f32.gmra.mxu0 %v1324
    %v1326 = vpop.f32.mrf.mxu0
    %v1327 = vadd.f32 %v1222, %v1326
    %v1328 = vpop.f32.mrf.mxu0
    %1329 = vmatprep.mubr.f32.mxu0 0.0
    %v1330 = vand.u32 %v575, 4294901760
    %1331 = vmatmul.mubr.f32.gmra.mxu0 %v1330
    %v1332 = vpop.f32.mrf.mxu0
    %v1333 = vadd.f32 %v1228, %v1332
    %v1334 = vpop.f32.mrf.mxu0
    %1335 = vmatprep.mubr.f32.mxu0 0.0
    %v1336 = vand.u32 %v576, 4294901760
    %1337 = vmatmul.mubr.f32.gmra.mxu0 %v1336
    %v1338 = vpop.f32.mrf.mxu0
    %v1339 = vadd.f32 %v1234, %v1338
    %v1340 = vpop.f32.mrf.mxu0
    %1341 = vmatprep.mubr.f32.mxu0 0.0
    %v1342 = vand.u32 %v577, 4294901760
    %1343 = vmatmul.mubr.f32.gmra.mxu0 %v1342
    %v1344 = vpop.f32.mrf.mxu0
    %v1345 = vadd.f32 %v1240, %v1344
    %v1346 = vpop.f32.mrf.mxu0
    %1347 = vdwg.mxu0
    %v1348 = vsub.f32 %v1327, %v44
    %v1349 = vsub.f32 %v1333, %v45
    %v1350 = vsub.f32 %v1339, %v46
    %v1351 = vsub.f32 %v1345, %v47
    %v1352 = vmul.f32 %v48, %v1348
    %v1353 = vmul.f32 %v49, %v1349
    %v1354 = vmul.f32 %v50, %v1350
    %v1355 = vmul.f32 %v51, %v1351
    %v1356 = vxor.u32 %v1352, 2147483648
    %v1357 = vxor.u32 %v1353, 2147483648
    %v1358 = vxor.u32 %v1354, 2147483648
    %v1359 = vxor.u32 %v1355, 2147483648
    %v1360 = vmul.f32 %v1356, 1.442695
    %v1361 = vpow.pop %v1360
    %v1362 = vmul.f32 %v1357, 1.442695
    %v1363 = vpow.pop %v1362
    %v1364 = vmul.f32 %v1358, 1.442695
    %v1365 = vpow.pop %v1364
    %v1366 = vmul.f32 %v1359, 1.442695
    %v1367 = vpow.pop %v1366
    %v1368 = vadd.f32 %v1361, 1.0
    %v1369 = vadd.f32 %v1363, 1.0
    %v1370 = vadd.f32 %v1365, 1.0
    %v1371 = vadd.f32 %v1367, 1.0
    %v1372 = vrcp.pop %v1368
    %v1373 = vmul.f32 1.0, %v1372
    %v1374 = vrcp.pop %v1369
    %v1375 = vmul.f32 1.0, %v1374
    %v1376 = vrcp.pop %v1370
    %v1377 = vmul.f32 1.0, %v1376
    %v1378 = vrcp.pop %v1371
    %v1379 = vmul.f32 1.0, %v1378
    %v1380 = vmul.f32 %v56, %v1373
    %v1381 = vmul.f32 %v57, %v1375
    %v1382 = vmul.f32 %v58, %v1377
    %v1383 = vmul.f32 %v59, %v1379
    %v1384 = vadd.f32 %v1380, %v1381
    %v1385 = vadd.f32 %v1384, %v1382
    %v1386 = vadd.f32 %v1385, %v1383
    %v1387 = vrot.slane %v1386, 4
    %v1388 = vadd.f32 %v1386, %v1387
    %v1389 = vrot.slane %v1388, 2
    %v1390 = vadd.f32 %v1388, %v1389
    %v1391 = vrot.slane %v1390, 1
    %v1392 = vadd.f32 %v1390, %v1391
    %v1393 = vadd.f32 %v1392, %v559
    %v1394 = vmul.f32 %v52, %v1373
    %v1395 = vmul.f32 %v53, %v1375
    %v1396 = vmul.f32 %v54, %v1377
    %v1397 = vmul.f32 %v55, %v1379
    %v1398 = vadd.f32 %v1394, %v1395
    %v1399 = vadd.f32 %v1398, %v1396
    %v1400 = vadd.f32 %v1399, %v1397
    %v1401 = vrot.slane %v1400, 4
    %v1402 = vadd.f32 %v1400, %v1401
    %v1403 = vrot.slane %v1402, 2
    %v1404 = vadd.f32 %v1402, %v1403
    %v1405 = vrot.slane %v1404, 1
    %v1406 = vadd.f32 %v1404, %v1405
    %v1407 = vadd.f32 %v1406, %v566
    %v1408 = vmul.f32 %v87, %v567
    %v1409 = vmul.f32 %v88, %v1393
    %v1410 = vadd.f32 %v1408, %v1409
    %v1411 = vadd.f32 %v89, %v1407
    %v1412 = vadd.f32 %v1411, 1e-08
    %v1413 = vrcp.pop %v1412
    %v1414 = vmul.f32 %v1410, %v1413
    %v1415 = vlaneseq
    %v1416 = vshrl.u32 %v1415, 7
    %v1417 = vsub.s32 0, %v1416
    %v1418 = vrot.slane %v1414, %v1417
    %v1419 = vmul.f32 %v60, %v1418
    %v1420 = vmul.f32 %v61, %v1418
    %v1421 = vmul.f32 %v62, %v1418
    %v1422 = vmul.f32 %v63, %v1418
    %1423 = vmatprep.subr.mxu0 0.0
    %v1424 = vand.u32 %v79, 4294901760
    %1425 = vmatpush1.msra.mxu0 %v1424
    %1426 = vmatprep.subr.mxu0 0.0
    %v1427 = vand.u32 %v78, 4294901760
    %1428 = vmatpush1.msra.mxu0 %v1427
    %1429 = vmatprep.subr.mxu0 0.0
    %v1430 = vand.u32 %v77, 4294901760
    %1431 = vmatpush1.msra.mxu0 %v1430
    %1432 = vmatprep.subr.mxu0 0.0
    %v1433 = vand.u32 %v76, 4294901760
    %1434 = vmatpush1.msra.mxu0 %v1433
    %1435 = vmatprep.subr.mxu0 0.0
    %v1436 = vand.u32 %v75, 4294901760
    %1437 = vmatpush1.msra.mxu0 %v1436
    %1438 = vmatprep.subr.mxu0 0.0
    %v1439 = vand.u32 %v74, 4294901760
    %1440 = vmatpush1.msra.mxu0 %v1439
    %1441 = vmatprep.subr.mxu0 0.0
    %v1442 = vand.u32 %v73, 4294901760
    %1443 = vmatpush1.msra.mxu0 %v1442
    %1444 = vmatprep.subr.mxu0 0.0
    %v1445 = vand.u32 %v72, 4294901760
    %1446 = vmatpush1.msra.mxu0 %v1445
    %1447 = vmatprep.subr.mxu0 0.0
    %v1448 = vand.u32 %v71, 4294901760
    %1449 = vmatpush1.msra.mxu0 %v1448
    %1450 = vmatprep.subr.mxu0 0.0
    %v1451 = vand.u32 %v70, 4294901760
    %1452 = vmatpush1.msra.mxu0 %v1451
    %1453 = vmatprep.subr.mxu0 0.0
    %v1454 = vand.u32 %v69, 4294901760
    %1455 = vmatpush1.msra.mxu0 %v1454
    %1456 = vmatprep.subr.mxu0 0.0
    %v1457 = vand.u32 %v68, 4294901760
    %1458 = vmatpush1.msra.mxu0 %v1457
    %1459 = vmatprep.subr.mxu0 0.0
    %v1460 = vand.u32 %v67, 4294901760
    %1461 = vmatpush1.msra.mxu0 %v1460
    %1462 = vmatprep.subr.mxu0 0.0
    %v1463 = vand.u32 %v66, 4294901760
    %1464 = vmatpush1.msra.mxu0 %v1463
    %1465 = vmatprep.subr.mxu0 0.0
    %v1466 = vand.u32 %v65, 4294901760
    %1467 = vmatpush1.msra.mxu0 %v1466
    %1468 = vmatprep.subr.mxu0 0.0
    %v1469 = vand.u32 %v64, 4294901760
    %1470 = vmatpush1.msra.mxu0 %v1469
    %1471 = vmatprep.subr.mxu0 0.0
    %1472 = vmatpush2.msra.mxu0 0.0
    %1473 = vmatprep.subr.mxu0 0.0
    %1474 = vmatpush2.msra.mxu0 0.0
    %1475 = vmatprep.subr.mxu0 0.0
    %1476 = vmatpush2.msra.mxu0 0.0
    %1477 = vmatprep.subr.mxu0 0.0
    %1478 = vmatpush2.msra.mxu0 0.0
    %1479 = vmatprep.subr.mxu0 0.0
    %1480 = vmatpush2.msra.mxu0 0.0
    %1481 = vmatprep.subr.mxu0 0.0
    %1482 = vmatpush2.msra.mxu0 0.0
    %1483 = vmatprep.subr.mxu0 0.0
    %1484 = vmatpush2.msra.mxu0 0.0
    %1485 = vmatprep.subr.mxu0 0.0
    %1486 = vmatpush2.msra.mxu0 0.0
    %1487 = vmatprep.subr.mxu0 0.0
    %1488 = vmatpush2.msra.mxu0 0.0
    %1489 = vmatprep.subr.mxu0 0.0
    %1490 = vmatpush2.msra.mxu0 0.0
    %1491 = vmatprep.subr.mxu0 0.0
    %1492 = vmatpush2.msra.mxu0 0.0
    %1493 = vmatprep.subr.mxu0 0.0
    %1494 = vmatpush2.msra.mxu0 0.0
    %1495 = vmatprep.subr.mxu0 0.0
    %1496 = vmatpush2.msra.mxu0 0.0
    %1497 = vmatprep.subr.mxu0 0.0
    %1498 = vmatpush2.msra.mxu0 0.0
    %1499 = vmatprep.subr.mxu0 0.0
    %1500 = vmatpush2.msra.mxu0 0.0
    %1501 = vmatprep.subr.mxu0 0.0
    %1502 = vmatpush2.msra.mxu0 0.0
    %1503 = vmatprep.mubr.f32.mxu0 0.0
    %v1504 = vand.u32 %v1419, 4294901760
    %v1505 = vsub.f32 %v1419, %v1504
    %v1506 = vand.u32 %v1505, 4294901760
    %v1507 = vsub.f32 %v1505, %v1506
    %v1508 = vand.u32 %v1507, 4294901760
    %1509 = vmatmul.mubr.f32.gmra.mxu0 %v1508
    %v1510 = vpop.f32.mrf.mxu0
    %v1511 = vadd.f32 0.0, %v1510
    %v1512 = vpop.f32.mrf.mxu0
    %1513 = vmatprep.mubr.f32.mxu0 0.0
    %v1514 = vand.u32 %v1420, 4294901760
    %v1515 = vsub.f32 %v1420, %v1514
    %v1516 = vand.u32 %v1515, 4294901760
    %v1517 = vsub.f32 %v1515, %v1516
    %v1518 = vand.u32 %v1517, 4294901760
    %1519 = vmatmul.mubr.f32.gmra.mxu0 %v1518
    %v1520 = vpop.f32.mrf.mxu0
    %v1521 = vadd.f32 0.0, %v1520
    %v1522 = vpop.f32.mrf.mxu0
    %1523 = vmatprep.mubr.f32.mxu0 0.0
    %v1524 = vand.u32 %v1421, 4294901760
    %v1525 = vsub.f32 %v1421, %v1524
    %v1526 = vand.u32 %v1525, 4294901760
    %v1527 = vsub.f32 %v1525, %v1526
    %v1528 = vand.u32 %v1527, 4294901760
    %1529 = vmatmul.mubr.f32.gmra.mxu0 %v1528
    %v1530 = vpop.f32.mrf.mxu0
    %v1531 = vadd.f32 0.0, %v1530
    %v1532 = vpop.f32.mrf.mxu0
    %1533 = vmatprep.mubr.f32.mxu0 0.0
    %v1534 = vand.u32 %v1422, 4294901760
    %v1535 = vsub.f32 %v1422, %v1534
    %v1536 = vand.u32 %v1535, 4294901760
    %v1537 = vsub.f32 %v1535, %v1536
    %v1538 = vand.u32 %v1537, 4294901760
    %1539 = vmatmul.mubr.f32.gmra.mxu0 %v1538
    %v1540 = vpop.f32.mrf.mxu0
    %v1541 = vadd.f32 0.0, %v1540
    %v1542 = vpop.f32.mrf.mxu0
    %1543 = vdwg.mxu0
    %1544 = vmatprep.subr.mxu0 0.0
    %v1545 = vand.u32 %v79, 4294901760
    %v1546 = vsub.f32 %v79, %v1545
    %v1547 = vand.u32 %v1546, 4294901760
    %v1548 = vsub.f32 %v1546, %v1547
    %v1549 = vand.u32 %v1548, 4294901760
    %1550 = vmatpush1.msra.mxu0 %v1549
    %1551 = vmatprep.subr.mxu0 0.0
    %v1552 = vand.u32 %v78, 4294901760
    %v1553 = vsub.f32 %v78, %v1552
    %v1554 = vand.u32 %v1553, 4294901760
    %v1555 = vsub.f32 %v1553, %v1554
    %v1556 = vand.u32 %v1555, 4294901760
    %1557 = vmatpush1.msra.mxu0 %v1556
    %1558 = vmatprep.subr.mxu0 0.0
    %v1559 = vand.u32 %v77, 4294901760
    %v1560 = vsub.f32 %v77, %v1559
    %v1561 = vand.u32 %v1560, 4294901760
    %v1562 = vsub.f32 %v1560, %v1561
    %v1563 = vand.u32 %v1562, 4294901760
    %1564 = vmatpush1.msra.mxu0 %v1563
    %1565 = vmatprep.subr.mxu0 0.0
    %v1566 = vand.u32 %v76, 4294901760
    %v1567 = vsub.f32 %v76, %v1566
    %v1568 = vand.u32 %v1567, 4294901760
    %v1569 = vsub.f32 %v1567, %v1568
    %v1570 = vand.u32 %v1569, 4294901760
    %1571 = vmatpush1.msra.mxu0 %v1570
    %1572 = vmatprep.subr.mxu0 0.0
    %v1573 = vand.u32 %v75, 4294901760
    %v1574 = vsub.f32 %v75, %v1573
    %v1575 = vand.u32 %v1574, 4294901760
    %v1576 = vsub.f32 %v1574, %v1575
    %v1577 = vand.u32 %v1576, 4294901760
    %1578 = vmatpush1.msra.mxu0 %v1577
    %1579 = vmatprep.subr.mxu0 0.0
    %v1580 = vand.u32 %v74, 4294901760
    %v1581 = vsub.f32 %v74, %v1580
    %v1582 = vand.u32 %v1581, 4294901760
    %v1583 = vsub.f32 %v1581, %v1582
    %v1584 = vand.u32 %v1583, 4294901760
    %1585 = vmatpush1.msra.mxu0 %v1584
    %1586 = vmatprep.subr.mxu0 0.0
    %v1587 = vand.u32 %v73, 4294901760
    %v1588 = vsub.f32 %v73, %v1587
    %v1589 = vand.u32 %v1588, 4294901760
    %v1590 = vsub.f32 %v1588, %v1589
    %v1591 = vand.u32 %v1590, 4294901760
    %1592 = vmatpush1.msra.mxu0 %v1591
    %1593 = vmatprep.subr.mxu0 0.0
    %v1594 = vand.u32 %v72, 4294901760
    %v1595 = vsub.f32 %v72, %v1594
    %v1596 = vand.u32 %v1595, 4294901760
    %v1597 = vsub.f32 %v1595, %v1596
    %v1598 = vand.u32 %v1597, 4294901760
    %1599 = vmatpush1.msra.mxu0 %v1598
    %1600 = vmatprep.subr.mxu0 0.0
    %v1601 = vand.u32 %v71, 4294901760
    %v1602 = vsub.f32 %v71, %v1601
    %v1603 = vand.u32 %v1602, 4294901760
    %v1604 = vsub.f32 %v1602, %v1603
    %v1605 = vand.u32 %v1604, 4294901760
    %1606 = vmatpush1.msra.mxu0 %v1605
    %1607 = vmatprep.subr.mxu0 0.0
    %v1608 = vand.u32 %v70, 4294901760
    %v1609 = vsub.f32 %v70, %v1608
    %v1610 = vand.u32 %v1609, 4294901760
    %v1611 = vsub.f32 %v1609, %v1610
    %v1612 = vand.u32 %v1611, 4294901760
    %1613 = vmatpush1.msra.mxu0 %v1612
    %1614 = vmatprep.subr.mxu0 0.0
    %v1615 = vand.u32 %v69, 4294901760
    %v1616 = vsub.f32 %v69, %v1615
    %v1617 = vand.u32 %v1616, 4294901760
    %v1618 = vsub.f32 %v1616, %v1617
    %v1619 = vand.u32 %v1618, 4294901760
    %1620 = vmatpush1.msra.mxu0 %v1619
    %1621 = vmatprep.subr.mxu0 0.0
    %v1622 = vand.u32 %v68, 4294901760
    %v1623 = vsub.f32 %v68, %v1622
    %v1624 = vand.u32 %v1623, 4294901760
    %v1625 = vsub.f32 %v1623, %v1624
    %v1626 = vand.u32 %v1625, 4294901760
    %1627 = vmatpush1.msra.mxu0 %v1626
    %1628 = vmatprep.subr.mxu0 0.0
    %v1629 = vand.u32 %v67, 4294901760
    %v1630 = vsub.f32 %v67, %v1629
    %v1631 = vand.u32 %v1630, 4294901760
    %v1632 = vsub.f32 %v1630, %v1631
    %v1633 = vand.u32 %v1632, 4294901760
    %1634 = vmatpush1.msra.mxu0 %v1633
    %1635 = vmatprep.subr.mxu0 0.0
    %v1636 = vand.u32 %v66, 4294901760
    %v1637 = vsub.f32 %v66, %v1636
    %v1638 = vand.u32 %v1637, 4294901760
    %v1639 = vsub.f32 %v1637, %v1638
    %v1640 = vand.u32 %v1639, 4294901760
    %1641 = vmatpush1.msra.mxu0 %v1640
    %1642 = vmatprep.subr.mxu0 0.0
    %v1643 = vand.u32 %v65, 4294901760
    %v1644 = vsub.f32 %v65, %v1643
    %v1645 = vand.u32 %v1644, 4294901760
    %v1646 = vsub.f32 %v1644, %v1645
    %v1647 = vand.u32 %v1646, 4294901760
    %1648 = vmatpush1.msra.mxu0 %v1647
    %1649 = vmatprep.subr.mxu0 0.0
    %v1650 = vand.u32 %v64, 4294901760
    %v1651 = vsub.f32 %v64, %v1650
    %v1652 = vand.u32 %v1651, 4294901760
    %v1653 = vsub.f32 %v1651, %v1652
    %v1654 = vand.u32 %v1653, 4294901760
    %1655 = vmatpush1.msra.mxu0 %v1654
    %1656 = vmatprep.subr.mxu0 0.0
    %1657 = vmatpush2.msra.mxu0 0.0
    %1658 = vmatprep.subr.mxu0 0.0
    %1659 = vmatpush2.msra.mxu0 0.0
    %1660 = vmatprep.subr.mxu0 0.0
    %1661 = vmatpush2.msra.mxu0 0.0
    %1662 = vmatprep.subr.mxu0 0.0
    %1663 = vmatpush2.msra.mxu0 0.0
    %1664 = vmatprep.subr.mxu0 0.0
    %1665 = vmatpush2.msra.mxu0 0.0
    %1666 = vmatprep.subr.mxu0 0.0
    %1667 = vmatpush2.msra.mxu0 0.0
    %1668 = vmatprep.subr.mxu0 0.0
    %1669 = vmatpush2.msra.mxu0 0.0
    %1670 = vmatprep.subr.mxu0 0.0
    %1671 = vmatpush2.msra.mxu0 0.0
    %1672 = vmatprep.subr.mxu0 0.0
    %1673 = vmatpush2.msra.mxu0 0.0
    %1674 = vmatprep.subr.mxu0 0.0
    %1675 = vmatpush2.msra.mxu0 0.0
    %1676 = vmatprep.subr.mxu0 0.0
    %1677 = vmatpush2.msra.mxu0 0.0
    %1678 = vmatprep.subr.mxu0 0.0
    %1679 = vmatpush2.msra.mxu0 0.0
    %1680 = vmatprep.subr.mxu0 0.0
    %1681 = vmatpush2.msra.mxu0 0.0
    %1682 = vmatprep.subr.mxu0 0.0
    %1683 = vmatpush2.msra.mxu0 0.0
    %1684 = vmatprep.subr.mxu0 0.0
    %1685 = vmatpush2.msra.mxu0 0.0
    %1686 = vmatprep.subr.mxu0 0.0
    %1687 = vmatpush2.msra.mxu0 0.0
    %1688 = vmatprep.mubr.f32.mxu0 0.0
    %v1689 = vand.u32 %v1419, 4294901760
    %1690 = vmatmul.mubr.f32.gmra.mxu0 %v1689
    %v1691 = vpop.f32.mrf.mxu0
    %v1692 = vadd.f32 %v1511, %v1691
    %v1693 = vpop.f32.mrf.mxu0
    %1694 = vmatprep.mubr.f32.mxu0 0.0
    %v1695 = vand.u32 %v1420, 4294901760
    %1696 = vmatmul.mubr.f32.gmra.mxu0 %v1695
    %v1697 = vpop.f32.mrf.mxu0
    %v1698 = vadd.f32 %v1521, %v1697
    %v1699 = vpop.f32.mrf.mxu0
    %1700 = vmatprep.mubr.f32.mxu0 0.0
    %v1701 = vand.u32 %v1421, 4294901760
    %1702 = vmatmul.mubr.f32.gmra.mxu0 %v1701
    %v1703 = vpop.f32.mrf.mxu0
    %v1704 = vadd.f32 %v1531, %v1703
    %v1705 = vpop.f32.mrf.mxu0
    %1706 = vmatprep.mubr.f32.mxu0 0.0
    %v1707 = vand.u32 %v1422, 4294901760
    %1708 = vmatmul.mubr.f32.gmra.mxu0 %v1707
    %v1709 = vpop.f32.mrf.mxu0
    %v1710 = vadd.f32 %v1541, %v1709
    %v1711 = vpop.f32.mrf.mxu0
    %1712 = vdwg.mxu0
    %1713 = vmatprep.subr.mxu0 0.0
    %v1714 = vand.u32 %v79, 4294901760
    %v1715 = vsub.f32 %v79, %v1714
    %1716 = vmatpush1.msra.mxu0 %v1715
    %1717 = vmatprep.subr.mxu0 0.0
    %v1718 = vand.u32 %v78, 4294901760
    %v1719 = vsub.f32 %v78, %v1718
    %1720 = vmatpush1.msra.mxu0 %v1719
    %1721 = vmatprep.subr.mxu0 0.0
    %v1722 = vand.u32 %v77, 4294901760
    %v1723 = vsub.f32 %v77, %v1722
    %1724 = vmatpush1.msra.mxu0 %v1723
    %1725 = vmatprep.subr.mxu0 0.0
    %v1726 = vand.u32 %v76, 4294901760
    %v1727 = vsub.f32 %v76, %v1726
    %1728 = vmatpush1.msra.mxu0 %v1727
    %1729 = vmatprep.subr.mxu0 0.0
    %v1730 = vand.u32 %v75, 4294901760
    %v1731 = vsub.f32 %v75, %v1730
    %1732 = vmatpush1.msra.mxu0 %v1731
    %1733 = vmatprep.subr.mxu0 0.0
    %v1734 = vand.u32 %v74, 4294901760
    %v1735 = vsub.f32 %v74, %v1734
    %1736 = vmatpush1.msra.mxu0 %v1735
    %1737 = vmatprep.subr.mxu0 0.0
    %v1738 = vand.u32 %v73, 4294901760
    %v1739 = vsub.f32 %v73, %v1738
    %1740 = vmatpush1.msra.mxu0 %v1739
    %1741 = vmatprep.subr.mxu0 0.0
    %v1742 = vand.u32 %v72, 4294901760
    %v1743 = vsub.f32 %v72, %v1742
    %1744 = vmatpush1.msra.mxu0 %v1743
    %1745 = vmatprep.subr.mxu0 0.0
    %v1746 = vand.u32 %v71, 4294901760
    %v1747 = vsub.f32 %v71, %v1746
    %1748 = vmatpush1.msra.mxu0 %v1747
    %1749 = vmatprep.subr.mxu0 0.0
    %v1750 = vand.u32 %v70, 4294901760
    %v1751 = vsub.f32 %v70, %v1750
    %1752 = vmatpush1.msra.mxu0 %v1751
    %1753 = vmatprep.subr.mxu0 0.0
    %v1754 = vand.u32 %v69, 4294901760
    %v1755 = vsub.f32 %v69, %v1754
    %1756 = vmatpush1.msra.mxu0 %v1755
    %1757 = vmatprep.subr.mxu0 0.0
    %v1758 = vand.u32 %v68, 4294901760
    %v1759 = vsub.f32 %v68, %v1758
    %1760 = vmatpush1.msra.mxu0 %v1759
    %1761 = vmatprep.subr.mxu0 0.0
    %v1762 = vand.u32 %v67, 4294901760
    %v1763 = vsub.f32 %v67, %v1762
    %1764 = vmatpush1.msra.mxu0 %v1763
    %1765 = vmatprep.subr.mxu0 0.0
    %v1766 = vand.u32 %v66, 4294901760
    %v1767 = vsub.f32 %v66, %v1766
    %1768 = vmatpush1.msra.mxu0 %v1767
    %1769 = vmatprep.subr.mxu0 0.0
    %v1770 = vand.u32 %v65, 4294901760
    %v1771 = vsub.f32 %v65, %v1770
    %1772 = vmatpush1.msra.mxu0 %v1771
    %1773 = vmatprep.subr.mxu0 0.0
    %v1774 = vand.u32 %v64, 4294901760
    %v1775 = vsub.f32 %v64, %v1774
    %1776 = vmatpush1.msra.mxu0 %v1775
    %1777 = vmatprep.subr.mxu0 0.0
    %1778 = vmatpush2.msra.mxu0 0.0
    %1779 = vmatprep.subr.mxu0 0.0
    %1780 = vmatpush2.msra.mxu0 0.0
    %1781 = vmatprep.subr.mxu0 0.0
    %1782 = vmatpush2.msra.mxu0 0.0
    %1783 = vmatprep.subr.mxu0 0.0
    %1784 = vmatpush2.msra.mxu0 0.0
    %1785 = vmatprep.subr.mxu0 0.0
    %1786 = vmatpush2.msra.mxu0 0.0
    %1787 = vmatprep.subr.mxu0 0.0
    %1788 = vmatpush2.msra.mxu0 0.0
    %1789 = vmatprep.subr.mxu0 0.0
    %1790 = vmatpush2.msra.mxu0 0.0
    %1791 = vmatprep.subr.mxu0 0.0
    %1792 = vmatpush2.msra.mxu0 0.0
    %1793 = vmatprep.subr.mxu0 0.0
    %1794 = vmatpush2.msra.mxu0 0.0
    %1795 = vmatprep.subr.mxu0 0.0
    %1796 = vmatpush2.msra.mxu0 0.0
    %1797 = vmatprep.subr.mxu0 0.0
    %1798 = vmatpush2.msra.mxu0 0.0
    %1799 = vmatprep.subr.mxu0 0.0
    %1800 = vmatpush2.msra.mxu0 0.0
    %1801 = vmatprep.subr.mxu0 0.0
    %1802 = vmatpush2.msra.mxu0 0.0
    %1803 = vmatprep.subr.mxu0 0.0
    %1804 = vmatpush2.msra.mxu0 0.0
    %1805 = vmatprep.subr.mxu0 0.0
    %1806 = vmatpush2.msra.mxu0 0.0
    %1807 = vmatprep.subr.mxu0 0.0
    %1808 = vmatpush2.msra.mxu0 0.0
    %1809 = vmatprep.mubr.f32.mxu0 0.0
    %v1810 = vand.u32 %v1419, 4294901760
    %v1811 = vsub.f32 %v1419, %v1810
    %1812 = vmatmul.mubr.f32.gmra.mxu0 %v1811
    %v1813 = vpop.f32.mrf.mxu0
    %v1814 = vadd.f32 %v1692, %v1813
    %v1815 = vpop.f32.mrf.mxu0
    %1816 = vmatprep.mubr.f32.mxu0 0.0
    %v1817 = vand.u32 %v1420, 4294901760
    %v1818 = vsub.f32 %v1420, %v1817
    %1819 = vmatmul.mubr.f32.gmra.mxu0 %v1818
    %v1820 = vpop.f32.mrf.mxu0
    %v1821 = vadd.f32 %v1698, %v1820
    %v1822 = vpop.f32.mrf.mxu0
    %1823 = vmatprep.mubr.f32.mxu0 0.0
    %v1824 = vand.u32 %v1421, 4294901760
    %v1825 = vsub.f32 %v1421, %v1824
    %1826 = vmatmul.mubr.f32.gmra.mxu0 %v1825
    %v1827 = vpop.f32.mrf.mxu0
    %v1828 = vadd.f32 %v1704, %v1827
    %v1829 = vpop.f32.mrf.mxu0
    %1830 = vmatprep.mubr.f32.mxu0 0.0
    %v1831 = vand.u32 %v1422, 4294901760
    %v1832 = vsub.f32 %v1422, %v1831
    %1833 = vmatmul.mubr.f32.gmra.mxu0 %v1832
    %v1834 = vpop.f32.mrf.mxu0
    %v1835 = vadd.f32 %v1710, %v1834
    %v1836 = vpop.f32.mrf.mxu0
    %1837 = vdwg.mxu0
    %1838 = vmatprep.subr.mxu0 0.0
    %v1839 = vand.u32 %v79, 4294901760
    %1840 = vmatpush1.msra.mxu0 %v1839
    %1841 = vmatprep.subr.mxu0 0.0
    %v1842 = vand.u32 %v78, 4294901760
    %1843 = vmatpush1.msra.mxu0 %v1842
    %1844 = vmatprep.subr.mxu0 0.0
    %v1845 = vand.u32 %v77, 4294901760
    %1846 = vmatpush1.msra.mxu0 %v1845
    %1847 = vmatprep.subr.mxu0 0.0
    %v1848 = vand.u32 %v76, 4294901760
    %1849 = vmatpush1.msra.mxu0 %v1848
    %1850 = vmatprep.subr.mxu0 0.0
    %v1851 = vand.u32 %v75, 4294901760
    %1852 = vmatpush1.msra.mxu0 %v1851
    %1853 = vmatprep.subr.mxu0 0.0
    %v1854 = vand.u32 %v74, 4294901760
    %1855 = vmatpush1.msra.mxu0 %v1854
    %1856 = vmatprep.subr.mxu0 0.0
    %v1857 = vand.u32 %v73, 4294901760
    %1858 = vmatpush1.msra.mxu0 %v1857
    %1859 = vmatprep.subr.mxu0 0.0
    %v1860 = vand.u32 %v72, 4294901760
    %1861 = vmatpush1.msra.mxu0 %v1860
    %1862 = vmatprep.subr.mxu0 0.0
    %v1863 = vand.u32 %v71, 4294901760
    %1864 = vmatpush1.msra.mxu0 %v1863
    %1865 = vmatprep.subr.mxu0 0.0
    %v1866 = vand.u32 %v70, 4294901760
    %1867 = vmatpush1.msra.mxu0 %v1866
    %1868 = vmatprep.subr.mxu0 0.0
    %v1869 = vand.u32 %v69, 4294901760
    %1870 = vmatpush1.msra.mxu0 %v1869
    %1871 = vmatprep.subr.mxu0 0.0
    %v1872 = vand.u32 %v68, 4294901760
    %1873 = vmatpush1.msra.mxu0 %v1872
    %1874 = vmatprep.subr.mxu0 0.0
    %v1875 = vand.u32 %v67, 4294901760
    %1876 = vmatpush1.msra.mxu0 %v1875
    %1877 = vmatprep.subr.mxu0 0.0
    %v1878 = vand.u32 %v66, 4294901760
    %1879 = vmatpush1.msra.mxu0 %v1878
    %1880 = vmatprep.subr.mxu0 0.0
    %v1881 = vand.u32 %v65, 4294901760
    %1882 = vmatpush1.msra.mxu0 %v1881
    %1883 = vmatprep.subr.mxu0 0.0
    %v1884 = vand.u32 %v64, 4294901760
    %1885 = vmatpush1.msra.mxu0 %v1884
    %1886 = vmatprep.subr.mxu0 0.0
    %1887 = vmatpush2.msra.mxu0 0.0
    %1888 = vmatprep.subr.mxu0 0.0
    %1889 = vmatpush2.msra.mxu0 0.0
    %1890 = vmatprep.subr.mxu0 0.0
    %1891 = vmatpush2.msra.mxu0 0.0
    %1892 = vmatprep.subr.mxu0 0.0
    %1893 = vmatpush2.msra.mxu0 0.0
    %1894 = vmatprep.subr.mxu0 0.0
    %1895 = vmatpush2.msra.mxu0 0.0
    %1896 = vmatprep.subr.mxu0 0.0
    %1897 = vmatpush2.msra.mxu0 0.0
    %1898 = vmatprep.subr.mxu0 0.0
    %1899 = vmatpush2.msra.mxu0 0.0
    %1900 = vmatprep.subr.mxu0 0.0
    %1901 = vmatpush2.msra.mxu0 0.0
    %1902 = vmatprep.subr.mxu0 0.0
    %1903 = vmatpush2.msra.mxu0 0.0
    %1904 = vmatprep.subr.mxu0 0.0
    %1905 = vmatpush2.msra.mxu0 0.0
    %1906 = vmatprep.subr.mxu0 0.0
    %1907 = vmatpush2.msra.mxu0 0.0
    %1908 = vmatprep.subr.mxu0 0.0
    %1909 = vmatpush2.msra.mxu0 0.0
    %1910 = vmatprep.subr.mxu0 0.0
    %1911 = vmatpush2.msra.mxu0 0.0
    %1912 = vmatprep.subr.mxu0 0.0
    %1913 = vmatpush2.msra.mxu0 0.0
    %1914 = vmatprep.subr.mxu0 0.0
    %1915 = vmatpush2.msra.mxu0 0.0
    %1916 = vmatprep.subr.mxu0 0.0
    %1917 = vmatpush2.msra.mxu0 0.0
    %1918 = vmatprep.mubr.f32.mxu0 0.0
    %v1919 = vand.u32 %v1419, 4294901760
    %v1920 = vsub.f32 %v1419, %v1919
    %v1921 = vand.u32 %v1920, 4294901760
    %1922 = vmatmul.mubr.f32.gmra.mxu0 %v1921
    %v1923 = vpop.f32.mrf.mxu0
    %v1924 = vadd.f32 %v1814, %v1923
    %v1925 = vpop.f32.mrf.mxu0
    %1926 = vmatprep.mubr.f32.mxu0 0.0
    %v1927 = vand.u32 %v1420, 4294901760
    %v1928 = vsub.f32 %v1420, %v1927
    %v1929 = vand.u32 %v1928, 4294901760
    %1930 = vmatmul.mubr.f32.gmra.mxu0 %v1929
    %v1931 = vpop.f32.mrf.mxu0
    %v1932 = vadd.f32 %v1821, %v1931
    %v1933 = vpop.f32.mrf.mxu0
    %1934 = vmatprep.mubr.f32.mxu0 0.0
    %v1935 = vand.u32 %v1421, 4294901760
    %v1936 = vsub.f32 %v1421, %v1935
    %v1937 = vand.u32 %v1936, 4294901760
    %1938 = vmatmul.mubr.f32.gmra.mxu0 %v1937
    %v1939 = vpop.f32.mrf.mxu0
    %v1940 = vadd.f32 %v1828, %v1939
    %v1941 = vpop.f32.mrf.mxu0
    %1942 = vmatprep.mubr.f32.mxu0 0.0
    %v1943 = vand.u32 %v1422, 4294901760
    %v1944 = vsub.f32 %v1422, %v1943
    %v1945 = vand.u32 %v1944, 4294901760
    %1946 = vmatmul.mubr.f32.gmra.mxu0 %v1945
    %v1947 = vpop.f32.mrf.mxu0
    %v1948 = vadd.f32 %v1835, %v1947
    %v1949 = vpop.f32.mrf.mxu0
    %1950 = vdwg.mxu0
    %1951 = vmatprep.subr.mxu0 0.0
    %v1952 = vand.u32 %v79, 4294901760
    %v1953 = vsub.f32 %v79, %v1952
    %v1954 = vand.u32 %v1953, 4294901760
    %1955 = vmatpush1.msra.mxu0 %v1954
    %1956 = vmatprep.subr.mxu0 0.0
    %v1957 = vand.u32 %v78, 4294901760
    %v1958 = vsub.f32 %v78, %v1957
    %v1959 = vand.u32 %v1958, 4294901760
    %1960 = vmatpush1.msra.mxu0 %v1959
    %1961 = vmatprep.subr.mxu0 0.0
    %v1962 = vand.u32 %v77, 4294901760
    %v1963 = vsub.f32 %v77, %v1962
    %v1964 = vand.u32 %v1963, 4294901760
    %1965 = vmatpush1.msra.mxu0 %v1964
    %1966 = vmatprep.subr.mxu0 0.0
    %v1967 = vand.u32 %v76, 4294901760
    %v1968 = vsub.f32 %v76, %v1967
    %v1969 = vand.u32 %v1968, 4294901760
    %1970 = vmatpush1.msra.mxu0 %v1969
    %1971 = vmatprep.subr.mxu0 0.0
    %v1972 = vand.u32 %v75, 4294901760
    %v1973 = vsub.f32 %v75, %v1972
    %v1974 = vand.u32 %v1973, 4294901760
    %1975 = vmatpush1.msra.mxu0 %v1974
    %1976 = vmatprep.subr.mxu0 0.0
    %v1977 = vand.u32 %v74, 4294901760
    %v1978 = vsub.f32 %v74, %v1977
    %v1979 = vand.u32 %v1978, 4294901760
    %1980 = vmatpush1.msra.mxu0 %v1979
    %1981 = vmatprep.subr.mxu0 0.0
    %v1982 = vand.u32 %v73, 4294901760
    %v1983 = vsub.f32 %v73, %v1982
    %v1984 = vand.u32 %v1983, 4294901760
    %1985 = vmatpush1.msra.mxu0 %v1984
    %1986 = vmatprep.subr.mxu0 0.0
    %v1987 = vand.u32 %v72, 4294901760
    %v1988 = vsub.f32 %v72, %v1987
    %v1989 = vand.u32 %v1988, 4294901760
    %1990 = vmatpush1.msra.mxu0 %v1989
    %1991 = vmatprep.subr.mxu0 0.0
    %v1992 = vand.u32 %v71, 4294901760
    %v1993 = vsub.f32 %v71, %v1992
    %v1994 = vand.u32 %v1993, 4294901760
    %1995 = vmatpush1.msra.mxu0 %v1994
    %1996 = vmatprep.subr.mxu0 0.0
    %v1997 = vand.u32 %v70, 4294901760
    %v1998 = vsub.f32 %v70, %v1997
    %v1999 = vand.u32 %v1998, 4294901760
    %2000 = vmatpush1.msra.mxu0 %v1999
    %2001 = vmatprep.subr.mxu0 0.0
    %v2002 = vand.u32 %v69, 4294901760
    %v2003 = vsub.f32 %v69, %v2002
    %v2004 = vand.u32 %v2003, 4294901760
    %2005 = vmatpush1.msra.mxu0 %v2004
    %2006 = vmatprep.subr.mxu0 0.0
    %v2007 = vand.u32 %v68, 4294901760
    %v2008 = vsub.f32 %v68, %v2007
    %v2009 = vand.u32 %v2008, 4294901760
    %2010 = vmatpush1.msra.mxu0 %v2009
    %2011 = vmatprep.subr.mxu0 0.0
    %v2012 = vand.u32 %v67, 4294901760
    %v2013 = vsub.f32 %v67, %v2012
    %v2014 = vand.u32 %v2013, 4294901760
    %2015 = vmatpush1.msra.mxu0 %v2014
    %2016 = vmatprep.subr.mxu0 0.0
    %v2017 = vand.u32 %v66, 4294901760
    %v2018 = vsub.f32 %v66, %v2017
    %v2019 = vand.u32 %v2018, 4294901760
    %2020 = vmatpush1.msra.mxu0 %v2019
    %2021 = vmatprep.subr.mxu0 0.0
    %v2022 = vand.u32 %v65, 4294901760
    %v2023 = vsub.f32 %v65, %v2022
    %v2024 = vand.u32 %v2023, 4294901760
    %2025 = vmatpush1.msra.mxu0 %v2024
    %2026 = vmatprep.subr.mxu0 0.0
    %v2027 = vand.u32 %v64, 4294901760
    %v2028 = vsub.f32 %v64, %v2027
    %v2029 = vand.u32 %v2028, 4294901760
    %2030 = vmatpush1.msra.mxu0 %v2029
    %2031 = vmatprep.subr.mxu0 0.0
    %2032 = vmatpush2.msra.mxu0 0.0
    %2033 = vmatprep.subr.mxu0 0.0
    %2034 = vmatpush2.msra.mxu0 0.0
    %2035 = vmatprep.subr.mxu0 0.0
    %2036 = vmatpush2.msra.mxu0 0.0
    %2037 = vmatprep.subr.mxu0 0.0
    %2038 = vmatpush2.msra.mxu0 0.0
    %2039 = vmatprep.subr.mxu0 0.0
    %2040 = vmatpush2.msra.mxu0 0.0
    %2041 = vmatprep.subr.mxu0 0.0
    %2042 = vmatpush2.msra.mxu0 0.0
    %2043 = vmatprep.subr.mxu0 0.0
    %2044 = vmatpush2.msra.mxu0 0.0
    %2045 = vmatprep.subr.mxu0 0.0
    %2046 = vmatpush2.msra.mxu0 0.0
    %2047 = vmatprep.subr.mxu0 0.0
    %2048 = vmatpush2.msra.mxu0 0.0
    %2049 = vmatprep.subr.mxu0 0.0
    %2050 = vmatpush2.msra.mxu0 0.0
    %2051 = vmatprep.subr.mxu0 0.0
    %2052 = vmatpush2.msra.mxu0 0.0
    %2053 = vmatprep.subr.mxu0 0.0
    %2054 = vmatpush2.msra.mxu0 0.0
    %2055 = vmatprep.subr.mxu0 0.0
    %2056 = vmatpush2.msra.mxu0 0.0
    %2057 = vmatprep.subr.mxu0 0.0
    %2058 = vmatpush2.msra.mxu0 0.0
    %2059 = vmatprep.subr.mxu0 0.0
    %2060 = vmatpush2.msra.mxu0 0.0
    %2061 = vmatprep.subr.mxu0 0.0
    %2062 = vmatpush2.msra.mxu0 0.0
    %2063 = vmatprep.mubr.f32.mxu0 0.0
    %v2064 = vand.u32 %v1419, 4294901760
    %2065 = vmatmul.mubr.f32.gmra.mxu0 %v2064
    %v2066 = vpop.f32.mrf.mxu0
    %v2067 = vadd.f32 %v1924, %v2066
    %v2068 = vpop.f32.mrf.mxu0
    %2069 = vmatprep.mubr.f32.mxu0 0.0
    %v2070 = vand.u32 %v1420, 4294901760
    %2071 = vmatmul.mubr.f32.gmra.mxu0 %v2070
    %v2072 = vpop.f32.mrf.mxu0
    %v2073 = vadd.f32 %v1932, %v2072
    %v2074 = vpop.f32.mrf.mxu0
    %2075 = vmatprep.mubr.f32.mxu0 0.0
    %v2076 = vand.u32 %v1421, 4294901760
    %2077 = vmatmul.mubr.f32.gmra.mxu0 %v2076
    %v2078 = vpop.f32.mrf.mxu0
    %v2079 = vadd.f32 %v1940, %v2078
    %v2080 = vpop.f32.mrf.mxu0
    %2081 = vmatprep.mubr.f32.mxu0 0.0
    %v2082 = vand.u32 %v1422, 4294901760
    %2083 = vmatmul.mubr.f32.gmra.mxu0 %v2082
    %v2084 = vpop.f32.mrf.mxu0
    %v2085 = vadd.f32 %v1948, %v2084
    %v2086 = vpop.f32.mrf.mxu0
    %2087 = vdwg.mxu0
    %2088 = vmatprep.subr.mxu0 0.0
    %v2089 = vand.u32 %v79, 4294901760
    %2090 = vmatpush1.msra.mxu0 %v2089
    %2091 = vmatprep.subr.mxu0 0.0
    %v2092 = vand.u32 %v78, 4294901760
    %2093 = vmatpush1.msra.mxu0 %v2092
    %2094 = vmatprep.subr.mxu0 0.0
    %v2095 = vand.u32 %v77, 4294901760
    %2096 = vmatpush1.msra.mxu0 %v2095
    %2097 = vmatprep.subr.mxu0 0.0
    %v2098 = vand.u32 %v76, 4294901760
    %2099 = vmatpush1.msra.mxu0 %v2098
    %2100 = vmatprep.subr.mxu0 0.0
    %v2101 = vand.u32 %v75, 4294901760
    %2102 = vmatpush1.msra.mxu0 %v2101
    %2103 = vmatprep.subr.mxu0 0.0
    %v2104 = vand.u32 %v74, 4294901760
    %2105 = vmatpush1.msra.mxu0 %v2104
    %2106 = vmatprep.subr.mxu0 0.0
    %v2107 = vand.u32 %v73, 4294901760
    %2108 = vmatpush1.msra.mxu0 %v2107
    %2109 = vmatprep.subr.mxu0 0.0
    %v2110 = vand.u32 %v72, 4294901760
    %2111 = vmatpush1.msra.mxu0 %v2110
    %2112 = vmatprep.subr.mxu0 0.0
    %v2113 = vand.u32 %v71, 4294901760
    %2114 = vmatpush1.msra.mxu0 %v2113
    %2115 = vmatprep.subr.mxu0 0.0
    %v2116 = vand.u32 %v70, 4294901760
    %2117 = vmatpush1.msra.mxu0 %v2116
    %2118 = vmatprep.subr.mxu0 0.0
    %v2119 = vand.u32 %v69, 4294901760
    %2120 = vmatpush1.msra.mxu0 %v2119
    %2121 = vmatprep.subr.mxu0 0.0
    %v2122 = vand.u32 %v68, 4294901760
    %2123 = vmatpush1.msra.mxu0 %v2122
    %2124 = vmatprep.subr.mxu0 0.0
    %v2125 = vand.u32 %v67, 4294901760
    %2126 = vmatpush1.msra.mxu0 %v2125
    %2127 = vmatprep.subr.mxu0 0.0
    %v2128 = vand.u32 %v66, 4294901760
    %2129 = vmatpush1.msra.mxu0 %v2128
    %2130 = vmatprep.subr.mxu0 0.0
    %v2131 = vand.u32 %v65, 4294901760
    %2132 = vmatpush1.msra.mxu0 %v2131
    %2133 = vmatprep.subr.mxu0 0.0
    %v2134 = vand.u32 %v64, 4294901760
    %2135 = vmatpush1.msra.mxu0 %v2134
    %2136 = vmatprep.subr.mxu0 0.0
    %2137 = vmatpush2.msra.mxu0 0.0
    %2138 = vmatprep.subr.mxu0 0.0
    %2139 = vmatpush2.msra.mxu0 0.0
    %2140 = vmatprep.subr.mxu0 0.0
    %2141 = vmatpush2.msra.mxu0 0.0
    %2142 = vmatprep.subr.mxu0 0.0
    %2143 = vmatpush2.msra.mxu0 0.0
    %2144 = vmatprep.subr.mxu0 0.0
    %2145 = vmatpush2.msra.mxu0 0.0
    %2146 = vmatprep.subr.mxu0 0.0
    %2147 = vmatpush2.msra.mxu0 0.0
    %2148 = vmatprep.subr.mxu0 0.0
    %2149 = vmatpush2.msra.mxu0 0.0
    %2150 = vmatprep.subr.mxu0 0.0
    %2151 = vmatpush2.msra.mxu0 0.0
    %2152 = vmatprep.subr.mxu0 0.0
    %2153 = vmatpush2.msra.mxu0 0.0
    %2154 = vmatprep.subr.mxu0 0.0
    %2155 = vmatpush2.msra.mxu0 0.0
    %2156 = vmatprep.subr.mxu0 0.0
    %2157 = vmatpush2.msra.mxu0 0.0
    %2158 = vmatprep.subr.mxu0 0.0
    %2159 = vmatpush2.msra.mxu0 0.0
    %2160 = vmatprep.subr.mxu0 0.0
    %2161 = vmatpush2.msra.mxu0 0.0
    %2162 = vmatprep.subr.mxu0 0.0
    %2163 = vmatpush2.msra.mxu0 0.0
    %2164 = vmatprep.subr.mxu0 0.0
    %2165 = vmatpush2.msra.mxu0 0.0
    %2166 = vmatprep.subr.mxu0 0.0
    %2167 = vmatpush2.msra.mxu0 0.0
    %2168 = vmatprep.mubr.f32.mxu0 0.0
    %v2169 = vand.u32 %v1419, 4294901760
    %2170 = vmatmul.mubr.f32.gmra.mxu0 %v2169
    %v2171 = vpop.f32.mrf.mxu0
    %v2172 = vadd.f32 %v2067, %v2171
    %v2173 = vpop.f32.mrf.mxu0
    %2174 = vmatprep.mubr.f32.mxu0 0.0
    %v2175 = vand.u32 %v1420, 4294901760
    %2176 = vmatmul.mubr.f32.gmra.mxu0 %v2175
    %v2177 = vpop.f32.mrf.mxu0
    %v2178 = vadd.f32 %v2073, %v2177
    %v2179 = vpop.f32.mrf.mxu0
    %2180 = vmatprep.mubr.f32.mxu0 0.0
    %v2181 = vand.u32 %v1421, 4294901760
    %2182 = vmatmul.mubr.f32.gmra.mxu0 %v2181
    %v2183 = vpop.f32.mrf.mxu0
    %v2184 = vadd.f32 %v2079, %v2183
    %v2185 = vpop.f32.mrf.mxu0
    %2186 = vmatprep.mubr.f32.mxu0 0.0
    %v2187 = vand.u32 %v1422, 4294901760
    %2188 = vmatmul.mubr.f32.gmra.mxu0 %v2187
    %v2189 = vpop.f32.mrf.mxu0
    %v2190 = vadd.f32 %v2085, %v2189
    %v2191 = vpop.f32.mrf.mxu0
    %2192 = vdwg.mxu0
    %v2193 = vsub.f32 %v2172, %v44
    %v2194 = vsub.f32 %v2178, %v45
    %v2195 = vsub.f32 %v2184, %v46
    %v2196 = vsub.f32 %v2190, %v47
    %v2197 = vmul.f32 %v48, %v2193
    %v2198 = vmul.f32 %v49, %v2194
    %v2199 = vmul.f32 %v50, %v2195
    %v2200 = vmul.f32 %v51, %v2196
    %v2201 = vxor.u32 %v2197, 2147483648
    %v2202 = vxor.u32 %v2198, 2147483648
    %v2203 = vxor.u32 %v2199, 2147483648
    %v2204 = vxor.u32 %v2200, 2147483648
    %v2205 = vmul.f32 %v2201, 1.442695
    %v2206 = vpow.pop %v2205
    %v2207 = vmul.f32 %v2202, 1.442695
    %v2208 = vpow.pop %v2207
    %v2209 = vmul.f32 %v2203, 1.442695
    %v2210 = vpow.pop %v2209
    %v2211 = vmul.f32 %v2204, 1.442695
    %v2212 = vpow.pop %v2211
    %v2213 = vadd.f32 %v2206, 1.0
    %v2214 = vadd.f32 %v2208, 1.0
    %v2215 = vadd.f32 %v2210, 1.0
    %v2216 = vadd.f32 %v2212, 1.0
    %v2217 = vrcp.pop %v2213
    %v2218 = vmul.f32 1.0, %v2217
    %v2219 = vrcp.pop %v2214
    %v2220 = vmul.f32 1.0, %v2219
    %v2221 = vrcp.pop %v2215
    %v2222 = vmul.f32 1.0, %v2221
    %v2223 = vrcp.pop %v2216
    %v2224 = vmul.f32 1.0, %v2223
    %v2225 = vmul.f32 %v56, %v2218
    %v2226 = vmul.f32 %v57, %v2220
    %v2227 = vmul.f32 %v58, %v2222
    %v2228 = vmul.f32 %v59, %v2224
    %v2229 = vadd.f32 %v2225, %v2226
    %v2230 = vadd.f32 %v2229, %v2227
    %v2231 = vadd.f32 %v2230, %v2228
    %v2232 = vrot.slane %v2231, 4
    %v2233 = vadd.f32 %v2231, %v2232
    %v2234 = vrot.slane %v2233, 2
    %v2235 = vadd.f32 %v2233, %v2234
    %v2236 = vrot.slane %v2235, 1
    %v2237 = vadd.f32 %v2235, %v2236
    %v2238 = vadd.f32 %v2237, %v559
    %v2239 = vmul.f32 %v52, %v2218
    %v2240 = vmul.f32 %v53, %v2220
    %v2241 = vmul.f32 %v54, %v2222
    %v2242 = vmul.f32 %v55, %v2224
    %v2243 = vadd.f32 %v2239, %v2240
    %v2244 = vadd.f32 %v2243, %v2241
    %v2245 = vadd.f32 %v2244, %v2242
    %v2246 = vrot.slane %v2245, 4
    %v2247 = vadd.f32 %v2245, %v2246
    %v2248 = vrot.slane %v2247, 2
    %v2249 = vadd.f32 %v2247, %v2248
    %v2250 = vrot.slane %v2249, 1
    %v2251 = vadd.f32 %v2249, %v2250
    %v2252 = vadd.f32 %v2251, %v566
    %v2253 = vmul.f32 %v87, %v1414
    %v2254 = vmul.f32 %v88, %v2238
    %v2255 = vadd.f32 %v2253, %v2254
    %v2256 = vadd.f32 %v89, %v2252
    %v2257 = vadd.f32 %v2256, 1e-08
    %v2258 = vrcp.pop %v2257
    %v2259 = vmul.f32 %v2255, %v2258
    %v2260 = vlaneseq
    %v2261 = vshrl.u32 %v2260, 7
    %v2262 = vsub.s32 0, %v2261
    %v2263 = vrot.slane %v2259, %v2262
    %v2264 = vmul.f32 %v60, %v2263
    %v2265 = vmul.f32 %v61, %v2263
    %v2266 = vmul.f32 %v62, %v2263
    %v2267 = vmul.f32 %v63, %v2263
    %2268 = vmatprep.subr.mxu0 0.0
    %v2269 = vand.u32 %v79, 4294901760
    %2270 = vmatpush1.msra.mxu0 %v2269
    %2271 = vmatprep.subr.mxu0 0.0
    %v2272 = vand.u32 %v78, 4294901760
    %2273 = vmatpush1.msra.mxu0 %v2272
    %2274 = vmatprep.subr.mxu0 0.0
    %v2275 = vand.u32 %v77, 4294901760
    %2276 = vmatpush1.msra.mxu0 %v2275
    %2277 = vmatprep.subr.mxu0 0.0
    %v2278 = vand.u32 %v76, 4294901760
    %2279 = vmatpush1.msra.mxu0 %v2278
    %2280 = vmatprep.subr.mxu0 0.0
    %v2281 = vand.u32 %v75, 4294901760
    %2282 = vmatpush1.msra.mxu0 %v2281
    %2283 = vmatprep.subr.mxu0 0.0
    %v2284 = vand.u32 %v74, 4294901760
    %2285 = vmatpush1.msra.mxu0 %v2284
    %2286 = vmatprep.subr.mxu0 0.0
    %v2287 = vand.u32 %v73, 4294901760
    %2288 = vmatpush1.msra.mxu0 %v2287
    %2289 = vmatprep.subr.mxu0 0.0
    %v2290 = vand.u32 %v72, 4294901760
    %2291 = vmatpush1.msra.mxu0 %v2290
    %2292 = vmatprep.subr.mxu0 0.0
    %v2293 = vand.u32 %v71, 4294901760
    %2294 = vmatpush1.msra.mxu0 %v2293
    %2295 = vmatprep.subr.mxu0 0.0
    %v2296 = vand.u32 %v70, 4294901760
    %2297 = vmatpush1.msra.mxu0 %v2296
    %2298 = vmatprep.subr.mxu0 0.0
    %v2299 = vand.u32 %v69, 4294901760
    %2300 = vmatpush1.msra.mxu0 %v2299
    %2301 = vmatprep.subr.mxu0 0.0
    %v2302 = vand.u32 %v68, 4294901760
    %2303 = vmatpush1.msra.mxu0 %v2302
    %2304 = vmatprep.subr.mxu0 0.0
    %v2305 = vand.u32 %v67, 4294901760
    %2306 = vmatpush1.msra.mxu0 %v2305
    %2307 = vmatprep.subr.mxu0 0.0
    %v2308 = vand.u32 %v66, 4294901760
    %2309 = vmatpush1.msra.mxu0 %v2308
    %2310 = vmatprep.subr.mxu0 0.0
    %v2311 = vand.u32 %v65, 4294901760
    %2312 = vmatpush1.msra.mxu0 %v2311
    %2313 = vmatprep.subr.mxu0 0.0
    %v2314 = vand.u32 %v64, 4294901760
    %2315 = vmatpush1.msra.mxu0 %v2314
    %2316 = vmatprep.subr.mxu0 0.0
    %2317 = vmatpush2.msra.mxu0 0.0
    %2318 = vmatprep.subr.mxu0 0.0
    %2319 = vmatpush2.msra.mxu0 0.0
    %2320 = vmatprep.subr.mxu0 0.0
    %2321 = vmatpush2.msra.mxu0 0.0
    %2322 = vmatprep.subr.mxu0 0.0
    %2323 = vmatpush2.msra.mxu0 0.0
    %2324 = vmatprep.subr.mxu0 0.0
    %2325 = vmatpush2.msra.mxu0 0.0
    %2326 = vmatprep.subr.mxu0 0.0
    %2327 = vmatpush2.msra.mxu0 0.0
    %2328 = vmatprep.subr.mxu0 0.0
    %2329 = vmatpush2.msra.mxu0 0.0
    %2330 = vmatprep.subr.mxu0 0.0
    %2331 = vmatpush2.msra.mxu0 0.0
    %2332 = vmatprep.subr.mxu0 0.0
    %2333 = vmatpush2.msra.mxu0 0.0
    %2334 = vmatprep.subr.mxu0 0.0
    %2335 = vmatpush2.msra.mxu0 0.0
    %2336 = vmatprep.subr.mxu0 0.0
    %2337 = vmatpush2.msra.mxu0 0.0
    %2338 = vmatprep.subr.mxu0 0.0
    %2339 = vmatpush2.msra.mxu0 0.0
    %2340 = vmatprep.subr.mxu0 0.0
    %2341 = vmatpush2.msra.mxu0 0.0
    %2342 = vmatprep.subr.mxu0 0.0
    %2343 = vmatpush2.msra.mxu0 0.0
    %2344 = vmatprep.subr.mxu0 0.0
    %2345 = vmatpush2.msra.mxu0 0.0
    %2346 = vmatprep.subr.mxu0 0.0
    %2347 = vmatpush2.msra.mxu0 0.0
    %2348 = vmatprep.mubr.f32.mxu0 0.0
    %v2349 = vand.u32 %v2264, 4294901760
    %v2350 = vsub.f32 %v2264, %v2349
    %v2351 = vand.u32 %v2350, 4294901760
    %v2352 = vsub.f32 %v2350, %v2351
    %v2353 = vand.u32 %v2352, 4294901760
    %2354 = vmatmul.mubr.f32.gmra.mxu0 %v2353
    %v2355 = vpop.f32.mrf.mxu0
    %v2356 = vadd.f32 0.0, %v2355
    %v2357 = vpop.f32.mrf.mxu0
    %2358 = vmatprep.mubr.f32.mxu0 0.0
    %v2359 = vand.u32 %v2265, 4294901760
    %v2360 = vsub.f32 %v2265, %v2359
    %v2361 = vand.u32 %v2360, 4294901760
    %v2362 = vsub.f32 %v2360, %v2361
    %v2363 = vand.u32 %v2362, 4294901760
    %2364 = vmatmul.mubr.f32.gmra.mxu0 %v2363
    %v2365 = vpop.f32.mrf.mxu0
    %v2366 = vadd.f32 0.0, %v2365
    %v2367 = vpop.f32.mrf.mxu0
    %2368 = vmatprep.mubr.f32.mxu0 0.0
    %v2369 = vand.u32 %v2266, 4294901760
    %v2370 = vsub.f32 %v2266, %v2369
    %v2371 = vand.u32 %v2370, 4294901760
    %v2372 = vsub.f32 %v2370, %v2371
    %v2373 = vand.u32 %v2372, 4294901760
    %2374 = vmatmul.mubr.f32.gmra.mxu0 %v2373
    %v2375 = vpop.f32.mrf.mxu0
    %v2376 = vadd.f32 0.0, %v2375
    %v2377 = vpop.f32.mrf.mxu0
    %2378 = vmatprep.mubr.f32.mxu0 0.0
    %v2379 = vand.u32 %v2267, 4294901760
    %v2380 = vsub.f32 %v2267, %v2379
    %v2381 = vand.u32 %v2380, 4294901760
    %v2382 = vsub.f32 %v2380, %v2381
    %v2383 = vand.u32 %v2382, 4294901760
    %2384 = vmatmul.mubr.f32.gmra.mxu0 %v2383
    %v2385 = vpop.f32.mrf.mxu0
    %v2386 = vadd.f32 0.0, %v2385
    %v2387 = vpop.f32.mrf.mxu0
    %2388 = vdwg.mxu0
    %2389 = vmatprep.subr.mxu0 0.0
    %v2390 = vand.u32 %v79, 4294901760
    %v2391 = vsub.f32 %v79, %v2390
    %v2392 = vand.u32 %v2391, 4294901760
    %v2393 = vsub.f32 %v2391, %v2392
    %v2394 = vand.u32 %v2393, 4294901760
    %2395 = vmatpush1.msra.mxu0 %v2394
    %2396 = vmatprep.subr.mxu0 0.0
    %v2397 = vand.u32 %v78, 4294901760
    %v2398 = vsub.f32 %v78, %v2397
    %v2399 = vand.u32 %v2398, 4294901760
    %v2400 = vsub.f32 %v2398, %v2399
    %v2401 = vand.u32 %v2400, 4294901760
    %2402 = vmatpush1.msra.mxu0 %v2401
    %2403 = vmatprep.subr.mxu0 0.0
    %v2404 = vand.u32 %v77, 4294901760
    %v2405 = vsub.f32 %v77, %v2404
    %v2406 = vand.u32 %v2405, 4294901760
    %v2407 = vsub.f32 %v2405, %v2406
    %v2408 = vand.u32 %v2407, 4294901760
    %2409 = vmatpush1.msra.mxu0 %v2408
    %2410 = vmatprep.subr.mxu0 0.0
    %v2411 = vand.u32 %v76, 4294901760
    %v2412 = vsub.f32 %v76, %v2411
    %v2413 = vand.u32 %v2412, 4294901760
    %v2414 = vsub.f32 %v2412, %v2413
    %v2415 = vand.u32 %v2414, 4294901760
    %2416 = vmatpush1.msra.mxu0 %v2415
    %2417 = vmatprep.subr.mxu0 0.0
    %v2418 = vand.u32 %v75, 4294901760
    %v2419 = vsub.f32 %v75, %v2418
    %v2420 = vand.u32 %v2419, 4294901760
    %v2421 = vsub.f32 %v2419, %v2420
    %v2422 = vand.u32 %v2421, 4294901760
    %2423 = vmatpush1.msra.mxu0 %v2422
    %2424 = vmatprep.subr.mxu0 0.0
    %v2425 = vand.u32 %v74, 4294901760
    %v2426 = vsub.f32 %v74, %v2425
    %v2427 = vand.u32 %v2426, 4294901760
    %v2428 = vsub.f32 %v2426, %v2427
    %v2429 = vand.u32 %v2428, 4294901760
    %2430 = vmatpush1.msra.mxu0 %v2429
    %2431 = vmatprep.subr.mxu0 0.0
    %v2432 = vand.u32 %v73, 4294901760
    %v2433 = vsub.f32 %v73, %v2432
    %v2434 = vand.u32 %v2433, 4294901760
    %v2435 = vsub.f32 %v2433, %v2434
    %v2436 = vand.u32 %v2435, 4294901760
    %2437 = vmatpush1.msra.mxu0 %v2436
    %2438 = vmatprep.subr.mxu0 0.0
    %v2439 = vand.u32 %v72, 4294901760
    %v2440 = vsub.f32 %v72, %v2439
    %v2441 = vand.u32 %v2440, 4294901760
    %v2442 = vsub.f32 %v2440, %v2441
    %v2443 = vand.u32 %v2442, 4294901760
    %2444 = vmatpush1.msra.mxu0 %v2443
    %2445 = vmatprep.subr.mxu0 0.0
    %v2446 = vand.u32 %v71, 4294901760
    %v2447 = vsub.f32 %v71, %v2446
    %v2448 = vand.u32 %v2447, 4294901760
    %v2449 = vsub.f32 %v2447, %v2448
    %v2450 = vand.u32 %v2449, 4294901760
    %2451 = vmatpush1.msra.mxu0 %v2450
    %2452 = vmatprep.subr.mxu0 0.0
    %v2453 = vand.u32 %v70, 4294901760
    %v2454 = vsub.f32 %v70, %v2453
    %v2455 = vand.u32 %v2454, 4294901760
    %v2456 = vsub.f32 %v2454, %v2455
    %v2457 = vand.u32 %v2456, 4294901760
    %2458 = vmatpush1.msra.mxu0 %v2457
    %2459 = vmatprep.subr.mxu0 0.0
    %v2460 = vand.u32 %v69, 4294901760
    %v2461 = vsub.f32 %v69, %v2460
    %v2462 = vand.u32 %v2461, 4294901760
    %v2463 = vsub.f32 %v2461, %v2462
    %v2464 = vand.u32 %v2463, 4294901760
    %2465 = vmatpush1.msra.mxu0 %v2464
    %2466 = vmatprep.subr.mxu0 0.0
    %v2467 = vand.u32 %v68, 4294901760
    %v2468 = vsub.f32 %v68, %v2467
    %v2469 = vand.u32 %v2468, 4294901760
    %v2470 = vsub.f32 %v2468, %v2469
    %v2471 = vand.u32 %v2470, 4294901760
    %2472 = vmatpush1.msra.mxu0 %v2471
    %2473 = vmatprep.subr.mxu0 0.0
    %v2474 = vand.u32 %v67, 4294901760
    %v2475 = vsub.f32 %v67, %v2474
    %v2476 = vand.u32 %v2475, 4294901760
    %v2477 = vsub.f32 %v2475, %v2476
    %v2478 = vand.u32 %v2477, 4294901760
    %2479 = vmatpush1.msra.mxu0 %v2478
    %2480 = vmatprep.subr.mxu0 0.0
    %v2481 = vand.u32 %v66, 4294901760
    %v2482 = vsub.f32 %v66, %v2481
    %v2483 = vand.u32 %v2482, 4294901760
    %v2484 = vsub.f32 %v2482, %v2483
    %v2485 = vand.u32 %v2484, 4294901760
    %2486 = vmatpush1.msra.mxu0 %v2485
    %2487 = vmatprep.subr.mxu0 0.0
    %v2488 = vand.u32 %v65, 4294901760
    %v2489 = vsub.f32 %v65, %v2488
    %v2490 = vand.u32 %v2489, 4294901760
    %v2491 = vsub.f32 %v2489, %v2490
    %v2492 = vand.u32 %v2491, 4294901760
    %2493 = vmatpush1.msra.mxu0 %v2492
    %2494 = vmatprep.subr.mxu0 0.0
    %v2495 = vand.u32 %v64, 4294901760
    %v2496 = vsub.f32 %v64, %v2495
    %v2497 = vand.u32 %v2496, 4294901760
    %v2498 = vsub.f32 %v2496, %v2497
    %v2499 = vand.u32 %v2498, 4294901760
    %2500 = vmatpush1.msra.mxu0 %v2499
    %2501 = vmatprep.subr.mxu0 0.0
    %2502 = vmatpush2.msra.mxu0 0.0
    %2503 = vmatprep.subr.mxu0 0.0
    %2504 = vmatpush2.msra.mxu0 0.0
    %2505 = vmatprep.subr.mxu0 0.0
    %2506 = vmatpush2.msra.mxu0 0.0
    %2507 = vmatprep.subr.mxu0 0.0
    %2508 = vmatpush2.msra.mxu0 0.0
    %2509 = vmatprep.subr.mxu0 0.0
    %2510 = vmatpush2.msra.mxu0 0.0
    %2511 = vmatprep.subr.mxu0 0.0
    %2512 = vmatpush2.msra.mxu0 0.0
    %2513 = vmatprep.subr.mxu0 0.0
    %2514 = vmatpush2.msra.mxu0 0.0
    %2515 = vmatprep.subr.mxu0 0.0
    %2516 = vmatpush2.msra.mxu0 0.0
    %2517 = vmatprep.subr.mxu0 0.0
    %2518 = vmatpush2.msra.mxu0 0.0
    %2519 = vmatprep.subr.mxu0 0.0
    %2520 = vmatpush2.msra.mxu0 0.0
    %2521 = vmatprep.subr.mxu0 0.0
    %2522 = vmatpush2.msra.mxu0 0.0
    %2523 = vmatprep.subr.mxu0 0.0
    %2524 = vmatpush2.msra.mxu0 0.0
    %2525 = vmatprep.subr.mxu0 0.0
    %2526 = vmatpush2.msra.mxu0 0.0
    %2527 = vmatprep.subr.mxu0 0.0
    %2528 = vmatpush2.msra.mxu0 0.0
    %2529 = vmatprep.subr.mxu0 0.0
    %2530 = vmatpush2.msra.mxu0 0.0
    %2531 = vmatprep.subr.mxu0 0.0
    %2532 = vmatpush2.msra.mxu0 0.0
    %2533 = vmatprep.mubr.f32.mxu0 0.0
    %v2534 = vand.u32 %v2264, 4294901760
    %2535 = vmatmul.mubr.f32.gmra.mxu0 %v2534
    %v2536 = vpop.f32.mrf.mxu0
    %v2537 = vadd.f32 %v2356, %v2536
    %v2538 = vpop.f32.mrf.mxu0
    %2539 = vmatprep.mubr.f32.mxu0 0.0
    %v2540 = vand.u32 %v2265, 4294901760
    %2541 = vmatmul.mubr.f32.gmra.mxu0 %v2540
    %v2542 = vpop.f32.mrf.mxu0
    %v2543 = vadd.f32 %v2366, %v2542
    %v2544 = vpop.f32.mrf.mxu0
    %2545 = vmatprep.mubr.f32.mxu0 0.0
    %v2546 = vand.u32 %v2266, 4294901760
    %2547 = vmatmul.mubr.f32.gmra.mxu0 %v2546
    %v2548 = vpop.f32.mrf.mxu0
    %v2549 = vadd.f32 %v2376, %v2548
    %v2550 = vpop.f32.mrf.mxu0
    %2551 = vmatprep.mubr.f32.mxu0 0.0
    %v2552 = vand.u32 %v2267, 4294901760
    %2553 = vmatmul.mubr.f32.gmra.mxu0 %v2552
    %v2554 = vpop.f32.mrf.mxu0
    %v2555 = vadd.f32 %v2386, %v2554
    %v2556 = vpop.f32.mrf.mxu0
    %2557 = vdwg.mxu0
    %2558 = vmatprep.subr.mxu0 0.0
    %v2559 = vand.u32 %v79, 4294901760
    %v2560 = vsub.f32 %v79, %v2559
    %2561 = vmatpush1.msra.mxu0 %v2560
    %2562 = vmatprep.subr.mxu0 0.0
    %v2563 = vand.u32 %v78, 4294901760
    %v2564 = vsub.f32 %v78, %v2563
    %2565 = vmatpush1.msra.mxu0 %v2564
    %2566 = vmatprep.subr.mxu0 0.0
    %v2567 = vand.u32 %v77, 4294901760
    %v2568 = vsub.f32 %v77, %v2567
    %2569 = vmatpush1.msra.mxu0 %v2568
    %2570 = vmatprep.subr.mxu0 0.0
    %v2571 = vand.u32 %v76, 4294901760
    %v2572 = vsub.f32 %v76, %v2571
    %2573 = vmatpush1.msra.mxu0 %v2572
    %2574 = vmatprep.subr.mxu0 0.0
    %v2575 = vand.u32 %v75, 4294901760
    %v2576 = vsub.f32 %v75, %v2575
    %2577 = vmatpush1.msra.mxu0 %v2576
    %2578 = vmatprep.subr.mxu0 0.0
    %v2579 = vand.u32 %v74, 4294901760
    %v2580 = vsub.f32 %v74, %v2579
    %2581 = vmatpush1.msra.mxu0 %v2580
    %2582 = vmatprep.subr.mxu0 0.0
    %v2583 = vand.u32 %v73, 4294901760
    %v2584 = vsub.f32 %v73, %v2583
    %2585 = vmatpush1.msra.mxu0 %v2584
    %2586 = vmatprep.subr.mxu0 0.0
    %v2587 = vand.u32 %v72, 4294901760
    %v2588 = vsub.f32 %v72, %v2587
    %2589 = vmatpush1.msra.mxu0 %v2588
    %2590 = vmatprep.subr.mxu0 0.0
    %v2591 = vand.u32 %v71, 4294901760
    %v2592 = vsub.f32 %v71, %v2591
    %2593 = vmatpush1.msra.mxu0 %v2592
    %2594 = vmatprep.subr.mxu0 0.0
    %v2595 = vand.u32 %v70, 4294901760
    %v2596 = vsub.f32 %v70, %v2595
    %2597 = vmatpush1.msra.mxu0 %v2596
    %2598 = vmatprep.subr.mxu0 0.0
    %v2599 = vand.u32 %v69, 4294901760
    %v2600 = vsub.f32 %v69, %v2599
    %2601 = vmatpush1.msra.mxu0 %v2600
    %2602 = vmatprep.subr.mxu0 0.0
    %v2603 = vand.u32 %v68, 4294901760
    %v2604 = vsub.f32 %v68, %v2603
    %2605 = vmatpush1.msra.mxu0 %v2604
    %2606 = vmatprep.subr.mxu0 0.0
    %v2607 = vand.u32 %v67, 4294901760
    %v2608 = vsub.f32 %v67, %v2607
    %2609 = vmatpush1.msra.mxu0 %v2608
    %2610 = vmatprep.subr.mxu0 0.0
    %v2611 = vand.u32 %v66, 4294901760
    %v2612 = vsub.f32 %v66, %v2611
    %2613 = vmatpush1.msra.mxu0 %v2612
    %2614 = vmatprep.subr.mxu0 0.0
    %v2615 = vand.u32 %v65, 4294901760
    %v2616 = vsub.f32 %v65, %v2615
    %2617 = vmatpush1.msra.mxu0 %v2616
    %2618 = vmatprep.subr.mxu0 0.0
    %v2619 = vand.u32 %v64, 4294901760
    %v2620 = vsub.f32 %v64, %v2619
    %2621 = vmatpush1.msra.mxu0 %v2620
    %2622 = vmatprep.subr.mxu0 0.0
    %2623 = vmatpush2.msra.mxu0 0.0
    %2624 = vmatprep.subr.mxu0 0.0
    %2625 = vmatpush2.msra.mxu0 0.0
    %2626 = vmatprep.subr.mxu0 0.0
    %2627 = vmatpush2.msra.mxu0 0.0
    %2628 = vmatprep.subr.mxu0 0.0
    %2629 = vmatpush2.msra.mxu0 0.0
    %2630 = vmatprep.subr.mxu0 0.0
    %2631 = vmatpush2.msra.mxu0 0.0
    %2632 = vmatprep.subr.mxu0 0.0
    %2633 = vmatpush2.msra.mxu0 0.0
    %2634 = vmatprep.subr.mxu0 0.0
    %2635 = vmatpush2.msra.mxu0 0.0
    %2636 = vmatprep.subr.mxu0 0.0
    %2637 = vmatpush2.msra.mxu0 0.0
    %2638 = vmatprep.subr.mxu0 0.0
    %2639 = vmatpush2.msra.mxu0 0.0
    %2640 = vmatprep.subr.mxu0 0.0
    %2641 = vmatpush2.msra.mxu0 0.0
    %2642 = vmatprep.subr.mxu0 0.0
    %2643 = vmatpush2.msra.mxu0 0.0
    %2644 = vmatprep.subr.mxu0 0.0
    %2645 = vmatpush2.msra.mxu0 0.0
    %2646 = vmatprep.subr.mxu0 0.0
    %2647 = vmatpush2.msra.mxu0 0.0
    %2648 = vmatprep.subr.mxu0 0.0
    %2649 = vmatpush2.msra.mxu0 0.0
    %2650 = vmatprep.subr.mxu0 0.0
    %2651 = vmatpush2.msra.mxu0 0.0
    %2652 = vmatprep.subr.mxu0 0.0
    %2653 = vmatpush2.msra.mxu0 0.0
    %2654 = vmatprep.mubr.f32.mxu0 0.0
    %v2655 = vand.u32 %v2264, 4294901760
    %v2656 = vsub.f32 %v2264, %v2655
    %2657 = vmatmul.mubr.f32.gmra.mxu0 %v2656
    %v2658 = vpop.f32.mrf.mxu0
    %v2659 = vadd.f32 %v2537, %v2658
    %v2660 = vpop.f32.mrf.mxu0
    %2661 = vmatprep.mubr.f32.mxu0 0.0
    %v2662 = vand.u32 %v2265, 4294901760
    %v2663 = vsub.f32 %v2265, %v2662
    %2664 = vmatmul.mubr.f32.gmra.mxu0 %v2663
    %v2665 = vpop.f32.mrf.mxu0
    %v2666 = vadd.f32 %v2543, %v2665
    %v2667 = vpop.f32.mrf.mxu0
    %2668 = vmatprep.mubr.f32.mxu0 0.0
    %v2669 = vand.u32 %v2266, 4294901760
    %v2670 = vsub.f32 %v2266, %v2669
    %2671 = vmatmul.mubr.f32.gmra.mxu0 %v2670
    %v2672 = vpop.f32.mrf.mxu0
    %v2673 = vadd.f32 %v2549, %v2672
    %v2674 = vpop.f32.mrf.mxu0
    %2675 = vmatprep.mubr.f32.mxu0 0.0
    %v2676 = vand.u32 %v2267, 4294901760
    %v2677 = vsub.f32 %v2267, %v2676
    %2678 = vmatmul.mubr.f32.gmra.mxu0 %v2677
    %v2679 = vpop.f32.mrf.mxu0
    %v2680 = vadd.f32 %v2555, %v2679
    %v2681 = vpop.f32.mrf.mxu0
    %2682 = vdwg.mxu0
    %2683 = vmatprep.subr.mxu0 0.0
    %v2684 = vand.u32 %v79, 4294901760
    %2685 = vmatpush1.msra.mxu0 %v2684
    %2686 = vmatprep.subr.mxu0 0.0
    %v2687 = vand.u32 %v78, 4294901760
    %2688 = vmatpush1.msra.mxu0 %v2687
    %2689 = vmatprep.subr.mxu0 0.0
    %v2690 = vand.u32 %v77, 4294901760
    %2691 = vmatpush1.msra.mxu0 %v2690
    %2692 = vmatprep.subr.mxu0 0.0
    %v2693 = vand.u32 %v76, 4294901760
    %2694 = vmatpush1.msra.mxu0 %v2693
    %2695 = vmatprep.subr.mxu0 0.0
    %v2696 = vand.u32 %v75, 4294901760
    %2697 = vmatpush1.msra.mxu0 %v2696
    %2698 = vmatprep.subr.mxu0 0.0
    %v2699 = vand.u32 %v74, 4294901760
    %2700 = vmatpush1.msra.mxu0 %v2699
    %2701 = vmatprep.subr.mxu0 0.0
    %v2702 = vand.u32 %v73, 4294901760
    %2703 = vmatpush1.msra.mxu0 %v2702
    %2704 = vmatprep.subr.mxu0 0.0
    %v2705 = vand.u32 %v72, 4294901760
    %2706 = vmatpush1.msra.mxu0 %v2705
    %2707 = vmatprep.subr.mxu0 0.0
    %v2708 = vand.u32 %v71, 4294901760
    %2709 = vmatpush1.msra.mxu0 %v2708
    %2710 = vmatprep.subr.mxu0 0.0
    %v2711 = vand.u32 %v70, 4294901760
    %2712 = vmatpush1.msra.mxu0 %v2711
    %2713 = vmatprep.subr.mxu0 0.0
    %v2714 = vand.u32 %v69, 4294901760
    %2715 = vmatpush1.msra.mxu0 %v2714
    %2716 = vmatprep.subr.mxu0 0.0
    %v2717 = vand.u32 %v68, 4294901760
    %2718 = vmatpush1.msra.mxu0 %v2717
    %2719 = vmatprep.subr.mxu0 0.0
    %v2720 = vand.u32 %v67, 4294901760
    %2721 = vmatpush1.msra.mxu0 %v2720
    %2722 = vmatprep.subr.mxu0 0.0
    %v2723 = vand.u32 %v66, 4294901760
    %2724 = vmatpush1.msra.mxu0 %v2723
    %2725 = vmatprep.subr.mxu0 0.0
    %v2726 = vand.u32 %v65, 4294901760
    %2727 = vmatpush1.msra.mxu0 %v2726
    %2728 = vmatprep.subr.mxu0 0.0
    %v2729 = vand.u32 %v64, 4294901760
    %2730 = vmatpush1.msra.mxu0 %v2729
    %2731 = vmatprep.subr.mxu0 0.0
    %2732 = vmatpush2.msra.mxu0 0.0
    %2733 = vmatprep.subr.mxu0 0.0
    %2734 = vmatpush2.msra.mxu0 0.0
    %2735 = vmatprep.subr.mxu0 0.0
    %2736 = vmatpush2.msra.mxu0 0.0
    %2737 = vmatprep.subr.mxu0 0.0
    %2738 = vmatpush2.msra.mxu0 0.0
    %2739 = vmatprep.subr.mxu0 0.0
    %2740 = vmatpush2.msra.mxu0 0.0
    %2741 = vmatprep.subr.mxu0 0.0
    %2742 = vmatpush2.msra.mxu0 0.0
    %2743 = vmatprep.subr.mxu0 0.0
    %2744 = vmatpush2.msra.mxu0 0.0
    %2745 = vmatprep.subr.mxu0 0.0
    %2746 = vmatpush2.msra.mxu0 0.0
    %2747 = vmatprep.subr.mxu0 0.0
    %2748 = vmatpush2.msra.mxu0 0.0
    %2749 = vmatprep.subr.mxu0 0.0
    %2750 = vmatpush2.msra.mxu0 0.0
    %2751 = vmatprep.subr.mxu0 0.0
    %2752 = vmatpush2.msra.mxu0 0.0
    %2753 = vmatprep.subr.mxu0 0.0
    %2754 = vmatpush2.msra.mxu0 0.0
    %2755 = vmatprep.subr.mxu0 0.0
    %2756 = vmatpush2.msra.mxu0 0.0
    %2757 = vmatprep.subr.mxu0 0.0
    %2758 = vmatpush2.msra.mxu0 0.0
    %2759 = vmatprep.subr.mxu0 0.0
    %2760 = vmatpush2.msra.mxu0 0.0
    %2761 = vmatprep.subr.mxu0 0.0
    %2762 = vmatpush2.msra.mxu0 0.0
    %2763 = vmatprep.mubr.f32.mxu0 0.0
    %v2764 = vand.u32 %v2264, 4294901760
    %v2765 = vsub.f32 %v2264, %v2764
    %v2766 = vand.u32 %v2765, 4294901760
    %2767 = vmatmul.mubr.f32.gmra.mxu0 %v2766
    %v2768 = vpop.f32.mrf.mxu0
    %v2769 = vadd.f32 %v2659, %v2768
    %v2770 = vpop.f32.mrf.mxu0
    %2771 = vmatprep.mubr.f32.mxu0 0.0
    %v2772 = vand.u32 %v2265, 4294901760
    %v2773 = vsub.f32 %v2265, %v2772
    %v2774 = vand.u32 %v2773, 4294901760
    %2775 = vmatmul.mubr.f32.gmra.mxu0 %v2774
    %v2776 = vpop.f32.mrf.mxu0
    %v2777 = vadd.f32 %v2666, %v2776
    %v2778 = vpop.f32.mrf.mxu0
    %2779 = vmatprep.mubr.f32.mxu0 0.0
    %v2780 = vand.u32 %v2266, 4294901760
    %v2781 = vsub.f32 %v2266, %v2780
    %v2782 = vand.u32 %v2781, 4294901760
    %2783 = vmatmul.mubr.f32.gmra.mxu0 %v2782
    %v2784 = vpop.f32.mrf.mxu0
    %v2785 = vadd.f32 %v2673, %v2784
    %v2786 = vpop.f32.mrf.mxu0
    %2787 = vmatprep.mubr.f32.mxu0 0.0
    %v2788 = vand.u32 %v2267, 4294901760
    %v2789 = vsub.f32 %v2267, %v2788
    %v2790 = vand.u32 %v2789, 4294901760
    %2791 = vmatmul.mubr.f32.gmra.mxu0 %v2790
    %v2792 = vpop.f32.mrf.mxu0
    %v2793 = vadd.f32 %v2680, %v2792
    %v2794 = vpop.f32.mrf.mxu0
    %2795 = vdwg.mxu0
    %2796 = vmatprep.subr.mxu0 0.0
    %v2797 = vand.u32 %v79, 4294901760
    %v2798 = vsub.f32 %v79, %v2797
    %v2799 = vand.u32 %v2798, 4294901760
    %2800 = vmatpush1.msra.mxu0 %v2799
    %2801 = vmatprep.subr.mxu0 0.0
    %v2802 = vand.u32 %v78, 4294901760
    %v2803 = vsub.f32 %v78, %v2802
    %v2804 = vand.u32 %v2803, 4294901760
    %2805 = vmatpush1.msra.mxu0 %v2804
    %2806 = vmatprep.subr.mxu0 0.0
    %v2807 = vand.u32 %v77, 4294901760
    %v2808 = vsub.f32 %v77, %v2807
    %v2809 = vand.u32 %v2808, 4294901760
    %2810 = vmatpush1.msra.mxu0 %v2809
    %2811 = vmatprep.subr.mxu0 0.0
    %v2812 = vand.u32 %v76, 4294901760
    %v2813 = vsub.f32 %v76, %v2812
    %v2814 = vand.u32 %v2813, 4294901760
    %2815 = vmatpush1.msra.mxu0 %v2814
    %2816 = vmatprep.subr.mxu0 0.0
    %v2817 = vand.u32 %v75, 4294901760
    %v2818 = vsub.f32 %v75, %v2817
    %v2819 = vand.u32 %v2818, 4294901760
    %2820 = vmatpush1.msra.mxu0 %v2819
    %2821 = vmatprep.subr.mxu0 0.0
    %v2822 = vand.u32 %v74, 4294901760
    %v2823 = vsub.f32 %v74, %v2822
    %v2824 = vand.u32 %v2823, 4294901760
    %2825 = vmatpush1.msra.mxu0 %v2824
    %2826 = vmatprep.subr.mxu0 0.0
    %v2827 = vand.u32 %v73, 4294901760
    %v2828 = vsub.f32 %v73, %v2827
    %v2829 = vand.u32 %v2828, 4294901760
    %2830 = vmatpush1.msra.mxu0 %v2829
    %2831 = vmatprep.subr.mxu0 0.0
    %v2832 = vand.u32 %v72, 4294901760
    %v2833 = vsub.f32 %v72, %v2832
    %v2834 = vand.u32 %v2833, 4294901760
    %2835 = vmatpush1.msra.mxu0 %v2834
    %2836 = vmatprep.subr.mxu0 0.0
    %v2837 = vand.u32 %v71, 4294901760
    %v2838 = vsub.f32 %v71, %v2837
    %v2839 = vand.u32 %v2838, 4294901760
    %2840 = vmatpush1.msra.mxu0 %v2839
    %2841 = vmatprep.subr.mxu0 0.0
    %v2842 = vand.u32 %v70, 4294901760
    %v2843 = vsub.f32 %v70, %v2842
    %v2844 = vand.u32 %v2843, 4294901760
    %2845 = vmatpush1.msra.mxu0 %v2844
    %2846 = vmatprep.subr.mxu0 0.0
    %v2847 = vand.u32 %v69, 4294901760
    %v2848 = vsub.f32 %v69, %v2847
    %v2849 = vand.u32 %v2848, 4294901760
    %2850 = vmatpush1.msra.mxu0 %v2849
    %2851 = vmatprep.subr.mxu0 0.0
    %v2852 = vand.u32 %v68, 4294901760
    %v2853 = vsub.f32 %v68, %v2852
    %v2854 = vand.u32 %v2853, 4294901760
    %2855 = vmatpush1.msra.mxu0 %v2854
    %2856 = vmatprep.subr.mxu0 0.0
    %v2857 = vand.u32 %v67, 4294901760
    %v2858 = vsub.f32 %v67, %v2857
    %v2859 = vand.u32 %v2858, 4294901760
    %2860 = vmatpush1.msra.mxu0 %v2859
    %2861 = vmatprep.subr.mxu0 0.0
    %v2862 = vand.u32 %v66, 4294901760
    %v2863 = vsub.f32 %v66, %v2862
    %v2864 = vand.u32 %v2863, 4294901760
    %2865 = vmatpush1.msra.mxu0 %v2864
    %2866 = vmatprep.subr.mxu0 0.0
    %v2867 = vand.u32 %v65, 4294901760
    %v2868 = vsub.f32 %v65, %v2867
    %v2869 = vand.u32 %v2868, 4294901760
    %2870 = vmatpush1.msra.mxu0 %v2869
    %2871 = vmatprep.subr.mxu0 0.0
    %v2872 = vand.u32 %v64, 4294901760
    %v2873 = vsub.f32 %v64, %v2872
    %v2874 = vand.u32 %v2873, 4294901760
    %2875 = vmatpush1.msra.mxu0 %v2874
    %2876 = vmatprep.subr.mxu0 0.0
    %2877 = vmatpush2.msra.mxu0 0.0
    %2878 = vmatprep.subr.mxu0 0.0
    %2879 = vmatpush2.msra.mxu0 0.0
    %2880 = vmatprep.subr.mxu0 0.0
    %2881 = vmatpush2.msra.mxu0 0.0
    %2882 = vmatprep.subr.mxu0 0.0
    %2883 = vmatpush2.msra.mxu0 0.0
    %2884 = vmatprep.subr.mxu0 0.0
    %2885 = vmatpush2.msra.mxu0 0.0
    %2886 = vmatprep.subr.mxu0 0.0
    %2887 = vmatpush2.msra.mxu0 0.0
    %2888 = vmatprep.subr.mxu0 0.0
    %2889 = vmatpush2.msra.mxu0 0.0
    %2890 = vmatprep.subr.mxu0 0.0
    %2891 = vmatpush2.msra.mxu0 0.0
    %2892 = vmatprep.subr.mxu0 0.0
    %2893 = vmatpush2.msra.mxu0 0.0
    %2894 = vmatprep.subr.mxu0 0.0
    %2895 = vmatpush2.msra.mxu0 0.0
    %2896 = vmatprep.subr.mxu0 0.0
    %2897 = vmatpush2.msra.mxu0 0.0
    %2898 = vmatprep.subr.mxu0 0.0
    %2899 = vmatpush2.msra.mxu0 0.0
    %2900 = vmatprep.subr.mxu0 0.0
    %2901 = vmatpush2.msra.mxu0 0.0
    %2902 = vmatprep.subr.mxu0 0.0
    %2903 = vmatpush2.msra.mxu0 0.0
    %2904 = vmatprep.subr.mxu0 0.0
    %2905 = vmatpush2.msra.mxu0 0.0
    %2906 = vmatprep.subr.mxu0 0.0
    %2907 = vmatpush2.msra.mxu0 0.0
    %2908 = vmatprep.mubr.f32.mxu0 0.0
    %v2909 = vand.u32 %v2264, 4294901760
    %2910 = vmatmul.mubr.f32.gmra.mxu0 %v2909
    %v2911 = vpop.f32.mrf.mxu0
    %v2912 = vadd.f32 %v2769, %v2911
    %v2913 = vpop.f32.mrf.mxu0
    %2914 = vmatprep.mubr.f32.mxu0 0.0
    %v2915 = vand.u32 %v2265, 4294901760
    %2916 = vmatmul.mubr.f32.gmra.mxu0 %v2915
    %v2917 = vpop.f32.mrf.mxu0
    %v2918 = vadd.f32 %v2777, %v2917
    %v2919 = vpop.f32.mrf.mxu0
    %2920 = vmatprep.mubr.f32.mxu0 0.0
    %v2921 = vand.u32 %v2266, 4294901760
    %2922 = vmatmul.mubr.f32.gmra.mxu0 %v2921
    %v2923 = vpop.f32.mrf.mxu0
    %v2924 = vadd.f32 %v2785, %v2923
    %v2925 = vpop.f32.mrf.mxu0
    %2926 = vmatprep.mubr.f32.mxu0 0.0
    %v2927 = vand.u32 %v2267, 4294901760
    %2928 = vmatmul.mubr.f32.gmra.mxu0 %v2927
    %v2929 = vpop.f32.mrf.mxu0
    %v2930 = vadd.f32 %v2793, %v2929
    %v2931 = vpop.f32.mrf.mxu0
    %2932 = vdwg.mxu0
    %2933 = vmatprep.subr.mxu0 0.0
    %v2934 = vand.u32 %v79, 4294901760
    %2935 = vmatpush1.msra.mxu0 %v2934
    %2936 = vmatprep.subr.mxu0 0.0
    %v2937 = vand.u32 %v78, 4294901760
    %2938 = vmatpush1.msra.mxu0 %v2937
    %2939 = vmatprep.subr.mxu0 0.0
    %v2940 = vand.u32 %v77, 4294901760
    %2941 = vmatpush1.msra.mxu0 %v2940
    %2942 = vmatprep.subr.mxu0 0.0
    %v2943 = vand.u32 %v76, 4294901760
    %2944 = vmatpush1.msra.mxu0 %v2943
    %2945 = vmatprep.subr.mxu0 0.0
    %v2946 = vand.u32 %v75, 4294901760
    %2947 = vmatpush1.msra.mxu0 %v2946
    %2948 = vmatprep.subr.mxu0 0.0
    %v2949 = vand.u32 %v74, 4294901760
    %2950 = vmatpush1.msra.mxu0 %v2949
    %2951 = vmatprep.subr.mxu0 0.0
    %v2952 = vand.u32 %v73, 4294901760
    %2953 = vmatpush1.msra.mxu0 %v2952
    %2954 = vmatprep.subr.mxu0 0.0
    %v2955 = vand.u32 %v72, 4294901760
    %2956 = vmatpush1.msra.mxu0 %v2955
    %2957 = vmatprep.subr.mxu0 0.0
    %v2958 = vand.u32 %v71, 4294901760
    %2959 = vmatpush1.msra.mxu0 %v2958
    %2960 = vmatprep.subr.mxu0 0.0
    %v2961 = vand.u32 %v70, 4294901760
    %2962 = vmatpush1.msra.mxu0 %v2961
    %2963 = vmatprep.subr.mxu0 0.0
    %v2964 = vand.u32 %v69, 4294901760
    %2965 = vmatpush1.msra.mxu0 %v2964
    %2966 = vmatprep.subr.mxu0 0.0
    %v2967 = vand.u32 %v68, 4294901760
    %2968 = vmatpush1.msra.mxu0 %v2967
    %2969 = vmatprep.subr.mxu0 0.0
    %v2970 = vand.u32 %v67, 4294901760
    %2971 = vmatpush1.msra.mxu0 %v2970
    %2972 = vmatprep.subr.mxu0 0.0
    %v2973 = vand.u32 %v66, 4294901760
    %2974 = vmatpush1.msra.mxu0 %v2973
    %2975 = vmatprep.subr.mxu0 0.0
    %v2976 = vand.u32 %v65, 4294901760
    %2977 = vmatpush1.msra.mxu0 %v2976
    %2978 = vmatprep.subr.mxu0 0.0
    %v2979 = vand.u32 %v64, 4294901760
    %2980 = vmatpush1.msra.mxu0 %v2979
    %2981 = vmatprep.subr.mxu0 0.0
    %2982 = vmatpush2.msra.mxu0 0.0
    %2983 = vmatprep.subr.mxu0 0.0
    %2984 = vmatpush2.msra.mxu0 0.0
    %2985 = vmatprep.subr.mxu0 0.0
    %2986 = vmatpush2.msra.mxu0 0.0
    %2987 = vmatprep.subr.mxu0 0.0
    %2988 = vmatpush2.msra.mxu0 0.0
    %2989 = vmatprep.subr.mxu0 0.0
    %2990 = vmatpush2.msra.mxu0 0.0
    %2991 = vmatprep.subr.mxu0 0.0
    %2992 = vmatpush2.msra.mxu0 0.0
    %2993 = vmatprep.subr.mxu0 0.0
    %2994 = vmatpush2.msra.mxu0 0.0
    %2995 = vmatprep.subr.mxu0 0.0
    %2996 = vmatpush2.msra.mxu0 0.0
    %2997 = vmatprep.subr.mxu0 0.0
    %2998 = vmatpush2.msra.mxu0 0.0
    %2999 = vmatprep.subr.mxu0 0.0
    %3000 = vmatpush2.msra.mxu0 0.0
    %3001 = vmatprep.subr.mxu0 0.0
    %3002 = vmatpush2.msra.mxu0 0.0
    %3003 = vmatprep.subr.mxu0 0.0
    %3004 = vmatpush2.msra.mxu0 0.0
    %3005 = vmatprep.subr.mxu0 0.0
    %3006 = vmatpush2.msra.mxu0 0.0
    %3007 = vmatprep.subr.mxu0 0.0
    %3008 = vmatpush2.msra.mxu0 0.0
    %3009 = vmatprep.subr.mxu0 0.0
    %3010 = vmatpush2.msra.mxu0 0.0
    %3011 = vmatprep.subr.mxu0 0.0
    %3012 = vmatpush2.msra.mxu0 0.0
    %3013 = vmatprep.mubr.f32.mxu0 0.0
    %v3014 = vand.u32 %v2264, 4294901760
    %3015 = vmatmul.mubr.f32.gmra.mxu0 %v3014
    %v3016 = vpop.f32.mrf.mxu0
    %v3017 = vadd.f32 %v2912, %v3016
    %v3018 = vpop.f32.mrf.mxu0
    %3019 = vmatprep.mubr.f32.mxu0 0.0
    %v3020 = vand.u32 %v2265, 4294901760
    %3021 = vmatmul.mubr.f32.gmra.mxu0 %v3020
    %v3022 = vpop.f32.mrf.mxu0
    %v3023 = vadd.f32 %v2918, %v3022
    %v3024 = vpop.f32.mrf.mxu0
    %3025 = vmatprep.mubr.f32.mxu0 0.0
    %v3026 = vand.u32 %v2266, 4294901760
    %3027 = vmatmul.mubr.f32.gmra.mxu0 %v3026
    %v3028 = vpop.f32.mrf.mxu0
    %v3029 = vadd.f32 %v2924, %v3028
    %v3030 = vpop.f32.mrf.mxu0
    %3031 = vmatprep.mubr.f32.mxu0 0.0
    %v3032 = vand.u32 %v2267, 4294901760
    %3033 = vmatmul.mubr.f32.gmra.mxu0 %v3032
    %v3034 = vpop.f32.mrf.mxu0
    %v3035 = vadd.f32 %v2930, %v3034
    %v3036 = vpop.f32.mrf.mxu0
    %3037 = vdwg.mxu0
    %v3038 = vsub.f32 %v3017, %v44
    %v3039 = vsub.f32 %v3023, %v45
    %v3040 = vsub.f32 %v3029, %v46
    %v3041 = vsub.f32 %v3035, %v47
    %v3042 = vmul.f32 %v48, %v3038
    %v3043 = vmul.f32 %v49, %v3039
    %v3044 = vmul.f32 %v50, %v3040
    %v3045 = vmul.f32 %v51, %v3041
    %v3046 = vxor.u32 %v3042, 2147483648
    %v3047 = vxor.u32 %v3043, 2147483648
    %v3048 = vxor.u32 %v3044, 2147483648
    %v3049 = vxor.u32 %v3045, 2147483648
    %v3050 = vmul.f32 %v3046, 1.442695
    %v3051 = vpow.pop %v3050
    %v3052 = vmul.f32 %v3047, 1.442695
    %v3053 = vpow.pop %v3052
    %v3054 = vmul.f32 %v3048, 1.442695
    %v3055 = vpow.pop %v3054
    %v3056 = vmul.f32 %v3049, 1.442695
    %v3057 = vpow.pop %v3056
    %v3058 = vadd.f32 %v3051, 1.0
    %v3059 = vadd.f32 %v3053, 1.0
    %v3060 = vadd.f32 %v3055, 1.0
    %v3061 = vadd.f32 %v3057, 1.0
    %v3062 = vrcp.pop %v3058
    %v3063 = vmul.f32 1.0, %v3062
    %v3064 = vrcp.pop %v3059
    %v3065 = vmul.f32 1.0, %v3064
    %v3066 = vrcp.pop %v3060
    %v3067 = vmul.f32 1.0, %v3066
    %v3068 = vrcp.pop %v3061
    %v3069 = vmul.f32 1.0, %v3068
    %v3070 = vmul.f32 %v56, %v3063
    %v3071 = vmul.f32 %v57, %v3065
    %v3072 = vmul.f32 %v58, %v3067
    %v3073 = vmul.f32 %v59, %v3069
    %v3074 = vadd.f32 %v3070, %v3071
    %v3075 = vadd.f32 %v3074, %v3072
    %v3076 = vadd.f32 %v3075, %v3073
    %v3077 = vrot.slane %v3076, 4
    %v3078 = vadd.f32 %v3076, %v3077
    %v3079 = vrot.slane %v3078, 2
    %v3080 = vadd.f32 %v3078, %v3079
    %v3081 = vrot.slane %v3080, 1
    %v3082 = vadd.f32 %v3080, %v3081
    %v3083 = vadd.f32 %v3082, %v559
    %v3084 = vmul.f32 %v52, %v3063
    %v3085 = vmul.f32 %v53, %v3065
    %v3086 = vmul.f32 %v54, %v3067
    %v3087 = vmul.f32 %v55, %v3069
    %v3088 = vadd.f32 %v3084, %v3085
    %v3089 = vadd.f32 %v3088, %v3086
    %v3090 = vadd.f32 %v3089, %v3087
    %v3091 = vrot.slane %v3090, 4
    %v3092 = vadd.f32 %v3090, %v3091
    %v3093 = vrot.slane %v3092, 2
    %v3094 = vadd.f32 %v3092, %v3093
    %v3095 = vrot.slane %v3094, 1
    %v3096 = vadd.f32 %v3094, %v3095
    %v3097 = vadd.f32 %v3096, %v566
    %v3098 = vmul.f32 %v87, %v2259
    %v3099 = vmul.f32 %v88, %v3083
    %v3100 = vadd.f32 %v3098, %v3099
    %v3101 = vadd.f32 %v89, %v3097
    %v3102 = vadd.f32 %v3101, 1e-08
    %v3103 = vrcp.pop %v3102
    %v3104 = vmul.f32 %v3100, %v3103
    %v3105 = vlaneseq
    %v3106 = vshrl.u32 %v3105, 7
    %v3107 = vsub.s32 0, %v3106
    %v3108 = vrot.slane %v3104, %v3107
    %v3109 = vmul.f32 %v60, %v3108
    %v3110 = vmul.f32 %v61, %v3108
    %v3111 = vmul.f32 %v62, %v3108
    %v3112 = vmul.f32 %v63, %v3108
    %3113 = vmatprep.subr.mxu0 0.0
    %v3114 = vand.u32 %v79, 4294901760
    %3115 = vmatpush1.msra.mxu0 %v3114
    %3116 = vmatprep.subr.mxu0 0.0
    %v3117 = vand.u32 %v78, 4294901760
    %3118 = vmatpush1.msra.mxu0 %v3117
    %3119 = vmatprep.subr.mxu0 0.0
    %v3120 = vand.u32 %v77, 4294901760
    %3121 = vmatpush1.msra.mxu0 %v3120
    %3122 = vmatprep.subr.mxu0 0.0
    %v3123 = vand.u32 %v76, 4294901760
    %3124 = vmatpush1.msra.mxu0 %v3123
    %3125 = vmatprep.subr.mxu0 0.0
    %v3126 = vand.u32 %v75, 4294901760
    %3127 = vmatpush1.msra.mxu0 %v3126
    %3128 = vmatprep.subr.mxu0 0.0
    %v3129 = vand.u32 %v74, 4294901760
    %3130 = vmatpush1.msra.mxu0 %v3129
    %3131 = vmatprep.subr.mxu0 0.0
    %v3132 = vand.u32 %v73, 4294901760
    %3133 = vmatpush1.msra.mxu0 %v3132
    %3134 = vmatprep.subr.mxu0 0.0
    %v3135 = vand.u32 %v72, 4294901760
    %3136 = vmatpush1.msra.mxu0 %v3135
    %3137 = vmatprep.subr.mxu0 0.0
    %v3138 = vand.u32 %v71, 4294901760
    %3139 = vmatpush1.msra.mxu0 %v3138
    %3140 = vmatprep.subr.mxu0 0.0
    %v3141 = vand.u32 %v70, 4294901760
    %3142 = vmatpush1.msra.mxu0 %v3141
    %3143 = vmatprep.subr.mxu0 0.0
    %v3144 = vand.u32 %v69, 4294901760
    %3145 = vmatpush1.msra.mxu0 %v3144
    %3146 = vmatprep.subr.mxu0 0.0
    %v3147 = vand.u32 %v68, 4294901760
    %3148 = vmatpush1.msra.mxu0 %v3147
    %3149 = vmatprep.subr.mxu0 0.0
    %v3150 = vand.u32 %v67, 4294901760
    %3151 = vmatpush1.msra.mxu0 %v3150
    %3152 = vmatprep.subr.mxu0 0.0
    %v3153 = vand.u32 %v66, 4294901760
    %3154 = vmatpush1.msra.mxu0 %v3153
    %3155 = vmatprep.subr.mxu0 0.0
    %v3156 = vand.u32 %v65, 4294901760
    %3157 = vmatpush1.msra.mxu0 %v3156
    %3158 = vmatprep.subr.mxu0 0.0
    %v3159 = vand.u32 %v64, 4294901760
    %3160 = vmatpush1.msra.mxu0 %v3159
    %3161 = vmatprep.subr.mxu0 0.0
    %3162 = vmatpush2.msra.mxu0 0.0
    %3163 = vmatprep.subr.mxu0 0.0
    %3164 = vmatpush2.msra.mxu0 0.0
    %3165 = vmatprep.subr.mxu0 0.0
    %3166 = vmatpush2.msra.mxu0 0.0
    %3167 = vmatprep.subr.mxu0 0.0
    %3168 = vmatpush2.msra.mxu0 0.0
    %3169 = vmatprep.subr.mxu0 0.0
    %3170 = vmatpush2.msra.mxu0 0.0
    %3171 = vmatprep.subr.mxu0 0.0
    %3172 = vmatpush2.msra.mxu0 0.0
    %3173 = vmatprep.subr.mxu0 0.0
    %3174 = vmatpush2.msra.mxu0 0.0
    %3175 = vmatprep.subr.mxu0 0.0
    %3176 = vmatpush2.msra.mxu0 0.0
    %3177 = vmatprep.subr.mxu0 0.0
    %3178 = vmatpush2.msra.mxu0 0.0
    %3179 = vmatprep.subr.mxu0 0.0
    %3180 = vmatpush2.msra.mxu0 0.0
    %3181 = vmatprep.subr.mxu0 0.0
    %3182 = vmatpush2.msra.mxu0 0.0
    %3183 = vmatprep.subr.mxu0 0.0
    %3184 = vmatpush2.msra.mxu0 0.0
    %3185 = vmatprep.subr.mxu0 0.0
    %3186 = vmatpush2.msra.mxu0 0.0
    %3187 = vmatprep.subr.mxu0 0.0
    %3188 = vmatpush2.msra.mxu0 0.0
    %3189 = vmatprep.subr.mxu0 0.0
    %3190 = vmatpush2.msra.mxu0 0.0
    %3191 = vmatprep.subr.mxu0 0.0
    %3192 = vmatpush2.msra.mxu0 0.0
    %3193 = vmatprep.mubr.f32.mxu0 0.0
    %v3194 = vand.u32 %v3109, 4294901760
    %v3195 = vsub.f32 %v3109, %v3194
    %v3196 = vand.u32 %v3195, 4294901760
    %v3197 = vsub.f32 %v3195, %v3196
    %v3198 = vand.u32 %v3197, 4294901760
    %3199 = vmatmul.mubr.f32.gmra.mxu0 %v3198
    %v3200 = vpop.f32.mrf.mxu0
    %v3201 = vadd.f32 0.0, %v3200
    %v3202 = vpop.f32.mrf.mxu0
    %3203 = vmatprep.mubr.f32.mxu0 0.0
    %v3204 = vand.u32 %v3110, 4294901760
    %v3205 = vsub.f32 %v3110, %v3204
    %v3206 = vand.u32 %v3205, 4294901760
    %v3207 = vsub.f32 %v3205, %v3206
    %v3208 = vand.u32 %v3207, 4294901760
    %3209 = vmatmul.mubr.f32.gmra.mxu0 %v3208
    %v3210 = vpop.f32.mrf.mxu0
    %v3211 = vadd.f32 0.0, %v3210
    %v3212 = vpop.f32.mrf.mxu0
    %3213 = vmatprep.mubr.f32.mxu0 0.0
    %v3214 = vand.u32 %v3111, 4294901760
    %v3215 = vsub.f32 %v3111, %v3214
    %v3216 = vand.u32 %v3215, 4294901760
    %v3217 = vsub.f32 %v3215, %v3216
    %v3218 = vand.u32 %v3217, 4294901760
    %3219 = vmatmul.mubr.f32.gmra.mxu0 %v3218
    %v3220 = vpop.f32.mrf.mxu0
    %v3221 = vadd.f32 0.0, %v3220
    %v3222 = vpop.f32.mrf.mxu0
    %3223 = vmatprep.mubr.f32.mxu0 0.0
    %v3224 = vand.u32 %v3112, 4294901760
    %v3225 = vsub.f32 %v3112, %v3224
    %v3226 = vand.u32 %v3225, 4294901760
    %v3227 = vsub.f32 %v3225, %v3226
    %v3228 = vand.u32 %v3227, 4294901760
    %3229 = vmatmul.mubr.f32.gmra.mxu0 %v3228
    %v3230 = vpop.f32.mrf.mxu0
    %v3231 = vadd.f32 0.0, %v3230
    %v3232 = vpop.f32.mrf.mxu0
    %3233 = vdwg.mxu0
    %3234 = vmatprep.subr.mxu0 0.0
    %v3235 = vand.u32 %v79, 4294901760
    %v3236 = vsub.f32 %v79, %v3235
    %v3237 = vand.u32 %v3236, 4294901760
    %v3238 = vsub.f32 %v3236, %v3237
    %v3239 = vand.u32 %v3238, 4294901760
    %3240 = vmatpush1.msra.mxu0 %v3239
    %3241 = vmatprep.subr.mxu0 0.0
    %v3242 = vand.u32 %v78, 4294901760
    %v3243 = vsub.f32 %v78, %v3242
    %v3244 = vand.u32 %v3243, 4294901760
    %v3245 = vsub.f32 %v3243, %v3244
    %v3246 = vand.u32 %v3245, 4294901760
    %3247 = vmatpush1.msra.mxu0 %v3246
    %3248 = vmatprep.subr.mxu0 0.0
    %v3249 = vand.u32 %v77, 4294901760
    %v3250 = vsub.f32 %v77, %v3249
    %v3251 = vand.u32 %v3250, 4294901760
    %v3252 = vsub.f32 %v3250, %v3251
    %v3253 = vand.u32 %v3252, 4294901760
    %3254 = vmatpush1.msra.mxu0 %v3253
    %3255 = vmatprep.subr.mxu0 0.0
    %v3256 = vand.u32 %v76, 4294901760
    %v3257 = vsub.f32 %v76, %v3256
    %v3258 = vand.u32 %v3257, 4294901760
    %v3259 = vsub.f32 %v3257, %v3258
    %v3260 = vand.u32 %v3259, 4294901760
    %3261 = vmatpush1.msra.mxu0 %v3260
    %3262 = vmatprep.subr.mxu0 0.0
    %v3263 = vand.u32 %v75, 4294901760
    %v3264 = vsub.f32 %v75, %v3263
    %v3265 = vand.u32 %v3264, 4294901760
    %v3266 = vsub.f32 %v3264, %v3265
    %v3267 = vand.u32 %v3266, 4294901760
    %3268 = vmatpush1.msra.mxu0 %v3267
    %3269 = vmatprep.subr.mxu0 0.0
    %v3270 = vand.u32 %v74, 4294901760
    %v3271 = vsub.f32 %v74, %v3270
    %v3272 = vand.u32 %v3271, 4294901760
    %v3273 = vsub.f32 %v3271, %v3272
    %v3274 = vand.u32 %v3273, 4294901760
    %3275 = vmatpush1.msra.mxu0 %v3274
    %3276 = vmatprep.subr.mxu0 0.0
    %v3277 = vand.u32 %v73, 4294901760
    %v3278 = vsub.f32 %v73, %v3277
    %v3279 = vand.u32 %v3278, 4294901760
    %v3280 = vsub.f32 %v3278, %v3279
    %v3281 = vand.u32 %v3280, 4294901760
    %3282 = vmatpush1.msra.mxu0 %v3281
    %3283 = vmatprep.subr.mxu0 0.0
    %v3284 = vand.u32 %v72, 4294901760
    %v3285 = vsub.f32 %v72, %v3284
    %v3286 = vand.u32 %v3285, 4294901760
    %v3287 = vsub.f32 %v3285, %v3286
    %v3288 = vand.u32 %v3287, 4294901760
    %3289 = vmatpush1.msra.mxu0 %v3288
    %3290 = vmatprep.subr.mxu0 0.0
    %v3291 = vand.u32 %v71, 4294901760
    %v3292 = vsub.f32 %v71, %v3291
    %v3293 = vand.u32 %v3292, 4294901760
    %v3294 = vsub.f32 %v3292, %v3293
    %v3295 = vand.u32 %v3294, 4294901760
    %3296 = vmatpush1.msra.mxu0 %v3295
    %3297 = vmatprep.subr.mxu0 0.0
    %v3298 = vand.u32 %v70, 4294901760
    %v3299 = vsub.f32 %v70, %v3298
    %v3300 = vand.u32 %v3299, 4294901760
    %v3301 = vsub.f32 %v3299, %v3300
    %v3302 = vand.u32 %v3301, 4294901760
    %3303 = vmatpush1.msra.mxu0 %v3302
    %3304 = vmatprep.subr.mxu0 0.0
    %v3305 = vand.u32 %v69, 4294901760
    %v3306 = vsub.f32 %v69, %v3305
    %v3307 = vand.u32 %v3306, 4294901760
    %v3308 = vsub.f32 %v3306, %v3307
    %v3309 = vand.u32 %v3308, 4294901760
    %3310 = vmatpush1.msra.mxu0 %v3309
    %3311 = vmatprep.subr.mxu0 0.0
    %v3312 = vand.u32 %v68, 4294901760
    %v3313 = vsub.f32 %v68, %v3312
    %v3314 = vand.u32 %v3313, 4294901760
    %v3315 = vsub.f32 %v3313, %v3314
    %v3316 = vand.u32 %v3315, 4294901760
    %3317 = vmatpush1.msra.mxu0 %v3316
    %3318 = vmatprep.subr.mxu0 0.0
    %v3319 = vand.u32 %v67, 4294901760
    %v3320 = vsub.f32 %v67, %v3319
    %v3321 = vand.u32 %v3320, 4294901760
    %v3322 = vsub.f32 %v3320, %v3321
    %v3323 = vand.u32 %v3322, 4294901760
    %3324 = vmatpush1.msra.mxu0 %v3323
    %3325 = vmatprep.subr.mxu0 0.0
    %v3326 = vand.u32 %v66, 4294901760
    %v3327 = vsub.f32 %v66, %v3326
    %v3328 = vand.u32 %v3327, 4294901760
    %v3329 = vsub.f32 %v3327, %v3328
    %v3330 = vand.u32 %v3329, 4294901760
    %3331 = vmatpush1.msra.mxu0 %v3330
    %3332 = vmatprep.subr.mxu0 0.0
    %v3333 = vand.u32 %v65, 4294901760
    %v3334 = vsub.f32 %v65, %v3333
    %v3335 = vand.u32 %v3334, 4294901760
    %v3336 = vsub.f32 %v3334, %v3335
    %v3337 = vand.u32 %v3336, 4294901760
    %3338 = vmatpush1.msra.mxu0 %v3337
    %3339 = vmatprep.subr.mxu0 0.0
    %v3340 = vand.u32 %v64, 4294901760
    %v3341 = vsub.f32 %v64, %v3340
    %v3342 = vand.u32 %v3341, 4294901760
    %v3343 = vsub.f32 %v3341, %v3342
    %v3344 = vand.u32 %v3343, 4294901760
    %3345 = vmatpush1.msra.mxu0 %v3344
    %3346 = vmatprep.subr.mxu0 0.0
    %3347 = vmatpush2.msra.mxu0 0.0
    %3348 = vmatprep.subr.mxu0 0.0
    %3349 = vmatpush2.msra.mxu0 0.0
    %3350 = vmatprep.subr.mxu0 0.0
    %3351 = vmatpush2.msra.mxu0 0.0
    %3352 = vmatprep.subr.mxu0 0.0
    %3353 = vmatpush2.msra.mxu0 0.0
    %3354 = vmatprep.subr.mxu0 0.0
    %3355 = vmatpush2.msra.mxu0 0.0
    %3356 = vmatprep.subr.mxu0 0.0
    %3357 = vmatpush2.msra.mxu0 0.0
    %3358 = vmatprep.subr.mxu0 0.0
    %3359 = vmatpush2.msra.mxu0 0.0
    %3360 = vmatprep.subr.mxu0 0.0
    %3361 = vmatpush2.msra.mxu0 0.0
    %3362 = vmatprep.subr.mxu0 0.0
    %3363 = vmatpush2.msra.mxu0 0.0
    %3364 = vmatprep.subr.mxu0 0.0
    %3365 = vmatpush2.msra.mxu0 0.0
    %3366 = vmatprep.subr.mxu0 0.0
    %3367 = vmatpush2.msra.mxu0 0.0
    %3368 = vmatprep.subr.mxu0 0.0
    %3369 = vmatpush2.msra.mxu0 0.0
    %3370 = vmatprep.subr.mxu0 0.0
    %3371 = vmatpush2.msra.mxu0 0.0
    %3372 = vmatprep.subr.mxu0 0.0
    %3373 = vmatpush2.msra.mxu0 0.0
    %3374 = vmatprep.subr.mxu0 0.0
    %3375 = vmatpush2.msra.mxu0 0.0
    %3376 = vmatprep.subr.mxu0 0.0
    %3377 = vmatpush2.msra.mxu0 0.0
    %3378 = vmatprep.mubr.f32.mxu0 0.0
    %v3379 = vand.u32 %v3109, 4294901760
    %3380 = vmatmul.mubr.f32.gmra.mxu0 %v3379
    %v3381 = vpop.f32.mrf.mxu0
    %v3382 = vadd.f32 %v3201, %v3381
    %v3383 = vpop.f32.mrf.mxu0
    %3384 = vmatprep.mubr.f32.mxu0 0.0
    %v3385 = vand.u32 %v3110, 4294901760
    %3386 = vmatmul.mubr.f32.gmra.mxu0 %v3385
    %v3387 = vpop.f32.mrf.mxu0
    %v3388 = vadd.f32 %v3211, %v3387
    %v3389 = vpop.f32.mrf.mxu0
    %3390 = vmatprep.mubr.f32.mxu0 0.0
    %v3391 = vand.u32 %v3111, 4294901760
    %3392 = vmatmul.mubr.f32.gmra.mxu0 %v3391
    %v3393 = vpop.f32.mrf.mxu0
    %v3394 = vadd.f32 %v3221, %v3393
    %v3395 = vpop.f32.mrf.mxu0
    %3396 = vmatprep.mubr.f32.mxu0 0.0
    %v3397 = vand.u32 %v3112, 4294901760
    %3398 = vmatmul.mubr.f32.gmra.mxu0 %v3397
    %v3399 = vpop.f32.mrf.mxu0
    %v3400 = vadd.f32 %v3231, %v3399
    %v3401 = vpop.f32.mrf.mxu0
    %3402 = vdwg.mxu0
    %3403 = vmatprep.subr.mxu0 0.0
    %v3404 = vand.u32 %v79, 4294901760
    %v3405 = vsub.f32 %v79, %v3404
    %3406 = vmatpush1.msra.mxu0 %v3405
    %3407 = vmatprep.subr.mxu0 0.0
    %v3408 = vand.u32 %v78, 4294901760
    %v3409 = vsub.f32 %v78, %v3408
    %3410 = vmatpush1.msra.mxu0 %v3409
    %3411 = vmatprep.subr.mxu0 0.0
    %v3412 = vand.u32 %v77, 4294901760
    %v3413 = vsub.f32 %v77, %v3412
    %3414 = vmatpush1.msra.mxu0 %v3413
    %3415 = vmatprep.subr.mxu0 0.0
    %v3416 = vand.u32 %v76, 4294901760
    %v3417 = vsub.f32 %v76, %v3416
    %3418 = vmatpush1.msra.mxu0 %v3417
    %3419 = vmatprep.subr.mxu0 0.0
    %v3420 = vand.u32 %v75, 4294901760
    %v3421 = vsub.f32 %v75, %v3420
    %3422 = vmatpush1.msra.mxu0 %v3421
    %3423 = vmatprep.subr.mxu0 0.0
    %v3424 = vand.u32 %v74, 4294901760
    %v3425 = vsub.f32 %v74, %v3424
    %3426 = vmatpush1.msra.mxu0 %v3425
    %3427 = vmatprep.subr.mxu0 0.0
    %v3428 = vand.u32 %v73, 4294901760
    %v3429 = vsub.f32 %v73, %v3428
    %3430 = vmatpush1.msra.mxu0 %v3429
    %3431 = vmatprep.subr.mxu0 0.0
    %v3432 = vand.u32 %v72, 4294901760
    %v3433 = vsub.f32 %v72, %v3432
    %3434 = vmatpush1.msra.mxu0 %v3433
    %3435 = vmatprep.subr.mxu0 0.0
    %v3436 = vand.u32 %v71, 4294901760
    %v3437 = vsub.f32 %v71, %v3436
    %3438 = vmatpush1.msra.mxu0 %v3437
    %3439 = vmatprep.subr.mxu0 0.0
    %v3440 = vand.u32 %v70, 4294901760
    %v3441 = vsub.f32 %v70, %v3440
    %3442 = vmatpush1.msra.mxu0 %v3441
    %3443 = vmatprep.subr.mxu0 0.0
    %v3444 = vand.u32 %v69, 4294901760
    %v3445 = vsub.f32 %v69, %v3444
    %3446 = vmatpush1.msra.mxu0 %v3445
    %3447 = vmatprep.subr.mxu0 0.0
    %v3448 = vand.u32 %v68, 4294901760
    %v3449 = vsub.f32 %v68, %v3448
    %3450 = vmatpush1.msra.mxu0 %v3449
    %3451 = vmatprep.subr.mxu0 0.0
    %v3452 = vand.u32 %v67, 4294901760
    %v3453 = vsub.f32 %v67, %v3452
    %3454 = vmatpush1.msra.mxu0 %v3453
    %3455 = vmatprep.subr.mxu0 0.0
    %v3456 = vand.u32 %v66, 4294901760
    %v3457 = vsub.f32 %v66, %v3456
    %3458 = vmatpush1.msra.mxu0 %v3457
    %3459 = vmatprep.subr.mxu0 0.0
    %v3460 = vand.u32 %v65, 4294901760
    %v3461 = vsub.f32 %v65, %v3460
    %3462 = vmatpush1.msra.mxu0 %v3461
    %3463 = vmatprep.subr.mxu0 0.0
    %v3464 = vand.u32 %v64, 4294901760
    %v3465 = vsub.f32 %v64, %v3464
    %3466 = vmatpush1.msra.mxu0 %v3465
    %3467 = vmatprep.subr.mxu0 0.0
    %3468 = vmatpush2.msra.mxu0 0.0
    %3469 = vmatprep.subr.mxu0 0.0
    %3470 = vmatpush2.msra.mxu0 0.0
    %3471 = vmatprep.subr.mxu0 0.0
    %3472 = vmatpush2.msra.mxu0 0.0
    %3473 = vmatprep.subr.mxu0 0.0
    %3474 = vmatpush2.msra.mxu0 0.0
    %3475 = vmatprep.subr.mxu0 0.0
    %3476 = vmatpush2.msra.mxu0 0.0
    %3477 = vmatprep.subr.mxu0 0.0
    %3478 = vmatpush2.msra.mxu0 0.0
    %3479 = vmatprep.subr.mxu0 0.0
    %3480 = vmatpush2.msra.mxu0 0.0
    %3481 = vmatprep.subr.mxu0 0.0
    %3482 = vmatpush2.msra.mxu0 0.0
    %3483 = vmatprep.subr.mxu0 0.0
    %3484 = vmatpush2.msra.mxu0 0.0
    %3485 = vmatprep.subr.mxu0 0.0
    %3486 = vmatpush2.msra.mxu0 0.0
    %3487 = vmatprep.subr.mxu0 0.0
    %3488 = vmatpush2.msra.mxu0 0.0
    %3489 = vmatprep.subr.mxu0 0.0
    %3490 = vmatpush2.msra.mxu0 0.0
    %3491 = vmatprep.subr.mxu0 0.0
    %3492 = vmatpush2.msra.mxu0 0.0
    %3493 = vmatprep.subr.mxu0 0.0
    %3494 = vmatpush2.msra.mxu0 0.0
    %3495 = vmatprep.subr.mxu0 0.0
    %3496 = vmatpush2.msra.mxu0 0.0
    %3497 = vmatprep.subr.mxu0 0.0
    %3498 = vmatpush2.msra.mxu0 0.0
    %3499 = vmatprep.mubr.f32.mxu0 0.0
    %v3500 = vand.u32 %v3109, 4294901760
    %v3501 = vsub.f32 %v3109, %v3500
    %3502 = vmatmul.mubr.f32.gmra.mxu0 %v3501
    %v3503 = vpop.f32.mrf.mxu0
    %v3504 = vadd.f32 %v3382, %v3503
    %v3505 = vpop.f32.mrf.mxu0
    %3506 = vmatprep.mubr.f32.mxu0 0.0
    %v3507 = vand.u32 %v3110, 4294901760
    %v3508 = vsub.f32 %v3110, %v3507
    %3509 = vmatmul.mubr.f32.gmra.mxu0 %v3508
    %v3510 = vpop.f32.mrf.mxu0
    %v3511 = vadd.f32 %v3388, %v3510
    %v3512 = vpop.f32.mrf.mxu0
    %3513 = vmatprep.mubr.f32.mxu0 0.0
    %v3514 = vand.u32 %v3111, 4294901760
    %v3515 = vsub.f32 %v3111, %v3514
    %3516 = vmatmul.mubr.f32.gmra.mxu0 %v3515
    %v3517 = vpop.f32.mrf.mxu0
    %v3518 = vadd.f32 %v3394, %v3517
    %v3519 = vpop.f32.mrf.mxu0
    %3520 = vmatprep.mubr.f32.mxu0 0.0
    %v3521 = vand.u32 %v3112, 4294901760
    %v3522 = vsub.f32 %v3112, %v3521
    %3523 = vmatmul.mubr.f32.gmra.mxu0 %v3522
    %v3524 = vpop.f32.mrf.mxu0
    %v3525 = vadd.f32 %v3400, %v3524
    %v3526 = vpop.f32.mrf.mxu0
    %3527 = vdwg.mxu0
    %3528 = vmatprep.subr.mxu0 0.0
    %v3529 = vand.u32 %v79, 4294901760
    %3530 = vmatpush1.msra.mxu0 %v3529
    %3531 = vmatprep.subr.mxu0 0.0
    %v3532 = vand.u32 %v78, 4294901760
    %3533 = vmatpush1.msra.mxu0 %v3532
    %3534 = vmatprep.subr.mxu0 0.0
    %v3535 = vand.u32 %v77, 4294901760
    %3536 = vmatpush1.msra.mxu0 %v3535
    %3537 = vmatprep.subr.mxu0 0.0
    %v3538 = vand.u32 %v76, 4294901760
    %3539 = vmatpush1.msra.mxu0 %v3538
    %3540 = vmatprep.subr.mxu0 0.0
    %v3541 = vand.u32 %v75, 4294901760
    %3542 = vmatpush1.msra.mxu0 %v3541
    %3543 = vmatprep.subr.mxu0 0.0
    %v3544 = vand.u32 %v74, 4294901760
    %3545 = vmatpush1.msra.mxu0 %v3544
    %3546 = vmatprep.subr.mxu0 0.0
    %v3547 = vand.u32 %v73, 4294901760
    %3548 = vmatpush1.msra.mxu0 %v3547
    %3549 = vmatprep.subr.mxu0 0.0
    %v3550 = vand.u32 %v72, 4294901760
    %3551 = vmatpush1.msra.mxu0 %v3550
    %3552 = vmatprep.subr.mxu0 0.0
    %v3553 = vand.u32 %v71, 4294901760
    %3554 = vmatpush1.msra.mxu0 %v3553
    %3555 = vmatprep.subr.mxu0 0.0
    %v3556 = vand.u32 %v70, 4294901760
    %3557 = vmatpush1.msra.mxu0 %v3556
    %3558 = vmatprep.subr.mxu0 0.0
    %v3559 = vand.u32 %v69, 4294901760
    %3560 = vmatpush1.msra.mxu0 %v3559
    %3561 = vmatprep.subr.mxu0 0.0
    %v3562 = vand.u32 %v68, 4294901760
    %3563 = vmatpush1.msra.mxu0 %v3562
    %3564 = vmatprep.subr.mxu0 0.0
    %v3565 = vand.u32 %v67, 4294901760
    %3566 = vmatpush1.msra.mxu0 %v3565
    %3567 = vmatprep.subr.mxu0 0.0
    %v3568 = vand.u32 %v66, 4294901760
    %3569 = vmatpush1.msra.mxu0 %v3568
    %3570 = vmatprep.subr.mxu0 0.0
    %v3571 = vand.u32 %v65, 4294901760
    %3572 = vmatpush1.msra.mxu0 %v3571
    %3573 = vmatprep.subr.mxu0 0.0
    %v3574 = vand.u32 %v64, 4294901760
    %3575 = vmatpush1.msra.mxu0 %v3574
    %3576 = vmatprep.subr.mxu0 0.0
    %3577 = vmatpush2.msra.mxu0 0.0
    %3578 = vmatprep.subr.mxu0 0.0
    %3579 = vmatpush2.msra.mxu0 0.0
    %3580 = vmatprep.subr.mxu0 0.0
    %3581 = vmatpush2.msra.mxu0 0.0
    %3582 = vmatprep.subr.mxu0 0.0
    %3583 = vmatpush2.msra.mxu0 0.0
    %3584 = vmatprep.subr.mxu0 0.0
    %3585 = vmatpush2.msra.mxu0 0.0
    %3586 = vmatprep.subr.mxu0 0.0
    %3587 = vmatpush2.msra.mxu0 0.0
    %3588 = vmatprep.subr.mxu0 0.0
    %3589 = vmatpush2.msra.mxu0 0.0
    %3590 = vmatprep.subr.mxu0 0.0
    %3591 = vmatpush2.msra.mxu0 0.0
    %3592 = vmatprep.subr.mxu0 0.0
    %3593 = vmatpush2.msra.mxu0 0.0
    %3594 = vmatprep.subr.mxu0 0.0
    %3595 = vmatpush2.msra.mxu0 0.0
    %3596 = vmatprep.subr.mxu0 0.0
    %3597 = vmatpush2.msra.mxu0 0.0
    %3598 = vmatprep.subr.mxu0 0.0
    %3599 = vmatpush2.msra.mxu0 0.0
    %3600 = vmatprep.subr.mxu0 0.0
    %3601 = vmatpush2.msra.mxu0 0.0
    %3602 = vmatprep.subr.mxu0 0.0
    %3603 = vmatpush2.msra.mxu0 0.0
    %3604 = vmatprep.subr.mxu0 0.0
    %3605 = vmatpush2.msra.mxu0 0.0
    %3606 = vmatprep.subr.mxu0 0.0
    %3607 = vmatpush2.msra.mxu0 0.0
    %3608 = vmatprep.mubr.f32.mxu0 0.0
    %v3609 = vand.u32 %v3109, 4294901760
    %v3610 = vsub.f32 %v3109, %v3609
    %v3611 = vand.u32 %v3610, 4294901760
    %3612 = vmatmul.mubr.f32.gmra.mxu0 %v3611
    %v3613 = vpop.f32.mrf.mxu0
    %v3614 = vadd.f32 %v3504, %v3613
    %v3615 = vpop.f32.mrf.mxu0
    %3616 = vmatprep.mubr.f32.mxu0 0.0
    %v3617 = vand.u32 %v3110, 4294901760
    %v3618 = vsub.f32 %v3110, %v3617
    %v3619 = vand.u32 %v3618, 4294901760
    %3620 = vmatmul.mubr.f32.gmra.mxu0 %v3619
    %v3621 = vpop.f32.mrf.mxu0
    %v3622 = vadd.f32 %v3511, %v3621
    %v3623 = vpop.f32.mrf.mxu0
    %3624 = vmatprep.mubr.f32.mxu0 0.0
    %v3625 = vand.u32 %v3111, 4294901760
    %v3626 = vsub.f32 %v3111, %v3625
    %v3627 = vand.u32 %v3626, 4294901760
    %3628 = vmatmul.mubr.f32.gmra.mxu0 %v3627
    %v3629 = vpop.f32.mrf.mxu0
    %v3630 = vadd.f32 %v3518, %v3629
    %v3631 = vpop.f32.mrf.mxu0
    %3632 = vmatprep.mubr.f32.mxu0 0.0
    %v3633 = vand.u32 %v3112, 4294901760
    %v3634 = vsub.f32 %v3112, %v3633
    %v3635 = vand.u32 %v3634, 4294901760
    %3636 = vmatmul.mubr.f32.gmra.mxu0 %v3635
    %v3637 = vpop.f32.mrf.mxu0
    %v3638 = vadd.f32 %v3525, %v3637
    %v3639 = vpop.f32.mrf.mxu0
    %3640 = vdwg.mxu0
    %3641 = vmatprep.subr.mxu0 0.0
    %v3642 = vand.u32 %v79, 4294901760
    %v3643 = vsub.f32 %v79, %v3642
    %v3644 = vand.u32 %v3643, 4294901760
    %3645 = vmatpush1.msra.mxu0 %v3644
    %3646 = vmatprep.subr.mxu0 0.0
    %v3647 = vand.u32 %v78, 4294901760
    %v3648 = vsub.f32 %v78, %v3647
    %v3649 = vand.u32 %v3648, 4294901760
    %3650 = vmatpush1.msra.mxu0 %v3649
    %3651 = vmatprep.subr.mxu0 0.0
    %v3652 = vand.u32 %v77, 4294901760
    %v3653 = vsub.f32 %v77, %v3652
    %v3654 = vand.u32 %v3653, 4294901760
    %3655 = vmatpush1.msra.mxu0 %v3654
    %3656 = vmatprep.subr.mxu0 0.0
    %v3657 = vand.u32 %v76, 4294901760
    %v3658 = vsub.f32 %v76, %v3657
    %v3659 = vand.u32 %v3658, 4294901760
    %3660 = vmatpush1.msra.mxu0 %v3659
    %3661 = vmatprep.subr.mxu0 0.0
    %v3662 = vand.u32 %v75, 4294901760
    %v3663 = vsub.f32 %v75, %v3662
    %v3664 = vand.u32 %v3663, 4294901760
    %3665 = vmatpush1.msra.mxu0 %v3664
    %3666 = vmatprep.subr.mxu0 0.0
    %v3667 = vand.u32 %v74, 4294901760
    %v3668 = vsub.f32 %v74, %v3667
    %v3669 = vand.u32 %v3668, 4294901760
    %3670 = vmatpush1.msra.mxu0 %v3669
    %3671 = vmatprep.subr.mxu0 0.0
    %v3672 = vand.u32 %v73, 4294901760
    %v3673 = vsub.f32 %v73, %v3672
    %v3674 = vand.u32 %v3673, 4294901760
    %3675 = vmatpush1.msra.mxu0 %v3674
    %3676 = vmatprep.subr.mxu0 0.0
    %v3677 = vand.u32 %v72, 4294901760
    %v3678 = vsub.f32 %v72, %v3677
    %v3679 = vand.u32 %v3678, 4294901760
    %3680 = vmatpush1.msra.mxu0 %v3679
    %3681 = vmatprep.subr.mxu0 0.0
    %v3682 = vand.u32 %v71, 4294901760
    %v3683 = vsub.f32 %v71, %v3682
    %v3684 = vand.u32 %v3683, 4294901760
    %3685 = vmatpush1.msra.mxu0 %v3684
    %3686 = vmatprep.subr.mxu0 0.0
    %v3687 = vand.u32 %v70, 4294901760
    %v3688 = vsub.f32 %v70, %v3687
    %v3689 = vand.u32 %v3688, 4294901760
    %3690 = vmatpush1.msra.mxu0 %v3689
    %3691 = vmatprep.subr.mxu0 0.0
    %v3692 = vand.u32 %v69, 4294901760
    %v3693 = vsub.f32 %v69, %v3692
    %v3694 = vand.u32 %v3693, 4294901760
    %3695 = vmatpush1.msra.mxu0 %v3694
    %3696 = vmatprep.subr.mxu0 0.0
    %v3697 = vand.u32 %v68, 4294901760
    %v3698 = vsub.f32 %v68, %v3697
    %v3699 = vand.u32 %v3698, 4294901760
    %3700 = vmatpush1.msra.mxu0 %v3699
    %3701 = vmatprep.subr.mxu0 0.0
    %v3702 = vand.u32 %v67, 4294901760
    %v3703 = vsub.f32 %v67, %v3702
    %v3704 = vand.u32 %v3703, 4294901760
    %3705 = vmatpush1.msra.mxu0 %v3704
    %3706 = vmatprep.subr.mxu0 0.0
    %v3707 = vand.u32 %v66, 4294901760
    %v3708 = vsub.f32 %v66, %v3707
    %v3709 = vand.u32 %v3708, 4294901760
    %3710 = vmatpush1.msra.mxu0 %v3709
    %3711 = vmatprep.subr.mxu0 0.0
    %v3712 = vand.u32 %v65, 4294901760
    %v3713 = vsub.f32 %v65, %v3712
    %v3714 = vand.u32 %v3713, 4294901760
    %3715 = vmatpush1.msra.mxu0 %v3714
    %3716 = vmatprep.subr.mxu0 0.0
    %v3717 = vand.u32 %v64, 4294901760
    %v3718 = vsub.f32 %v64, %v3717
    %v3719 = vand.u32 %v3718, 4294901760
    %3720 = vmatpush1.msra.mxu0 %v3719
    %3721 = vmatprep.subr.mxu0 0.0
    %3722 = vmatpush2.msra.mxu0 0.0
    %3723 = vmatprep.subr.mxu0 0.0
    %3724 = vmatpush2.msra.mxu0 0.0
    %3725 = vmatprep.subr.mxu0 0.0
    %3726 = vmatpush2.msra.mxu0 0.0
    %3727 = vmatprep.subr.mxu0 0.0
    %3728 = vmatpush2.msra.mxu0 0.0
    %3729 = vmatprep.subr.mxu0 0.0
    %3730 = vmatpush2.msra.mxu0 0.0
    %3731 = vmatprep.subr.mxu0 0.0
    %3732 = vmatpush2.msra.mxu0 0.0
    %3733 = vmatprep.subr.mxu0 0.0
    %3734 = vmatpush2.msra.mxu0 0.0
    %3735 = vmatprep.subr.mxu0 0.0
    %3736 = vmatpush2.msra.mxu0 0.0
    %3737 = vmatprep.subr.mxu0 0.0
    %3738 = vmatpush2.msra.mxu0 0.0
    %3739 = vmatprep.subr.mxu0 0.0
    %3740 = vmatpush2.msra.mxu0 0.0
    %3741 = vmatprep.subr.mxu0 0.0
    %3742 = vmatpush2.msra.mxu0 0.0
    %3743 = vmatprep.subr.mxu0 0.0
    %3744 = vmatpush2.msra.mxu0 0.0
    %3745 = vmatprep.subr.mxu0 0.0
    %3746 = vmatpush2.msra.mxu0 0.0
    %3747 = vmatprep.subr.mxu0 0.0
    %3748 = vmatpush2.msra.mxu0 0.0
    %3749 = vmatprep.subr.mxu0 0.0
    %3750 = vmatpush2.msra.mxu0 0.0
    %3751 = vmatprep.subr.mxu0 0.0
    %3752 = vmatpush2.msra.mxu0 0.0
    %3753 = vmatprep.mubr.f32.mxu0 0.0
    %v3754 = vand.u32 %v3109, 4294901760
    %3755 = vmatmul.mubr.f32.gmra.mxu0 %v3754
    %v3756 = vpop.f32.mrf.mxu0
    %v3757 = vadd.f32 %v3614, %v3756
    %v3758 = vpop.f32.mrf.mxu0
    %3759 = vmatprep.mubr.f32.mxu0 0.0
    %v3760 = vand.u32 %v3110, 4294901760
    %3761 = vmatmul.mubr.f32.gmra.mxu0 %v3760
    %v3762 = vpop.f32.mrf.mxu0
    %v3763 = vadd.f32 %v3622, %v3762
    %v3764 = vpop.f32.mrf.mxu0
    %3765 = vmatprep.mubr.f32.mxu0 0.0
    %v3766 = vand.u32 %v3111, 4294901760
    %3767 = vmatmul.mubr.f32.gmra.mxu0 %v3766
    %v3768 = vpop.f32.mrf.mxu0
    %v3769 = vadd.f32 %v3630, %v3768
    %v3770 = vpop.f32.mrf.mxu0
    %3771 = vmatprep.mubr.f32.mxu0 0.0
    %v3772 = vand.u32 %v3112, 4294901760
    %3773 = vmatmul.mubr.f32.gmra.mxu0 %v3772
    %v3774 = vpop.f32.mrf.mxu0
    %v3775 = vadd.f32 %v3638, %v3774
    %v3776 = vpop.f32.mrf.mxu0
    %3777 = vdwg.mxu0
    %3778 = vmatprep.subr.mxu0 0.0
    %v3779 = vand.u32 %v79, 4294901760
    %3780 = vmatpush1.msra.mxu0 %v3779
    %3781 = vmatprep.subr.mxu0 0.0
    %v3782 = vand.u32 %v78, 4294901760
    %3783 = vmatpush1.msra.mxu0 %v3782
    %3784 = vmatprep.subr.mxu0 0.0
    %v3785 = vand.u32 %v77, 4294901760
    %3786 = vmatpush1.msra.mxu0 %v3785
    %3787 = vmatprep.subr.mxu0 0.0
    %v3788 = vand.u32 %v76, 4294901760
    %3789 = vmatpush1.msra.mxu0 %v3788
    %3790 = vmatprep.subr.mxu0 0.0
    %v3791 = vand.u32 %v75, 4294901760
    %3792 = vmatpush1.msra.mxu0 %v3791
    %3793 = vmatprep.subr.mxu0 0.0
    %v3794 = vand.u32 %v74, 4294901760
    %3795 = vmatpush1.msra.mxu0 %v3794
    %3796 = vmatprep.subr.mxu0 0.0
    %v3797 = vand.u32 %v73, 4294901760
    %3798 = vmatpush1.msra.mxu0 %v3797
    %3799 = vmatprep.subr.mxu0 0.0
    %v3800 = vand.u32 %v72, 4294901760
    %3801 = vmatpush1.msra.mxu0 %v3800
    %3802 = vmatprep.subr.mxu0 0.0
    %v3803 = vand.u32 %v71, 4294901760
    %3804 = vmatpush1.msra.mxu0 %v3803
    %3805 = vmatprep.subr.mxu0 0.0
    %v3806 = vand.u32 %v70, 4294901760
    %3807 = vmatpush1.msra.mxu0 %v3806
    %3808 = vmatprep.subr.mxu0 0.0
    %v3809 = vand.u32 %v69, 4294901760
    %3810 = vmatpush1.msra.mxu0 %v3809
    %3811 = vmatprep.subr.mxu0 0.0
    %v3812 = vand.u32 %v68, 4294901760
    %3813 = vmatpush1.msra.mxu0 %v3812
    %3814 = vmatprep.subr.mxu0 0.0
    %v3815 = vand.u32 %v67, 4294901760
    %3816 = vmatpush1.msra.mxu0 %v3815
    %3817 = vmatprep.subr.mxu0 0.0
    %v3818 = vand.u32 %v66, 4294901760
    %3819 = vmatpush1.msra.mxu0 %v3818
    %3820 = vmatprep.subr.mxu0 0.0
    %v3821 = vand.u32 %v65, 4294901760
    %3822 = vmatpush1.msra.mxu0 %v3821
    %3823 = vmatprep.subr.mxu0 0.0
    %v3824 = vand.u32 %v64, 4294901760
    %3825 = vmatpush1.msra.mxu0 %v3824
    %3826 = vmatprep.subr.mxu0 0.0
    %3827 = vmatpush2.msra.mxu0 0.0
    %3828 = vmatprep.subr.mxu0 0.0
    %3829 = vmatpush2.msra.mxu0 0.0
    %3830 = vmatprep.subr.mxu0 0.0
    %3831 = vmatpush2.msra.mxu0 0.0
    %3832 = vmatprep.subr.mxu0 0.0
    %3833 = vmatpush2.msra.mxu0 0.0
    %3834 = vmatprep.subr.mxu0 0.0
    %3835 = vmatpush2.msra.mxu0 0.0
    %3836 = vmatprep.subr.mxu0 0.0
    %3837 = vmatpush2.msra.mxu0 0.0
    %3838 = vmatprep.subr.mxu0 0.0
    %3839 = vmatpush2.msra.mxu0 0.0
    %3840 = vmatprep.subr.mxu0 0.0
    %3841 = vmatpush2.msra.mxu0 0.0
    %3842 = vmatprep.subr.mxu0 0.0
    %3843 = vmatpush2.msra.mxu0 0.0
    %3844 = vmatprep.subr.mxu0 0.0
    %3845 = vmatpush2.msra.mxu0 0.0
    %3846 = vmatprep.subr.mxu0 0.0
    %3847 = vmatpush2.msra.mxu0 0.0
    %3848 = vmatprep.subr.mxu0 0.0
    %3849 = vmatpush2.msra.mxu0 0.0
    %3850 = vmatprep.subr.mxu0 0.0
    %3851 = vmatpush2.msra.mxu0 0.0
    %3852 = vmatprep.subr.mxu0 0.0
    %3853 = vmatpush2.msra.mxu0 0.0
    %3854 = vmatprep.subr.mxu0 0.0
    %3855 = vmatpush2.msra.mxu0 0.0
    %3856 = vmatprep.subr.mxu0 0.0
    %3857 = vmatpush2.msra.mxu0 0.0
    %3858 = vmatprep.mubr.f32.mxu0 0.0
    %v3859 = vand.u32 %v3109, 4294901760
    %3860 = vmatmul.mubr.f32.gmra.mxu0 %v3859
    %v3861 = vpop.f32.mrf.mxu0
    %v3862 = vadd.f32 %v3757, %v3861
    %v3863 = vpop.f32.mrf.mxu0
    %3864 = vmatprep.mubr.f32.mxu0 0.0
    %v3865 = vand.u32 %v3110, 4294901760
    %3866 = vmatmul.mubr.f32.gmra.mxu0 %v3865
    %v3867 = vpop.f32.mrf.mxu0
    %v3868 = vadd.f32 %v3763, %v3867
    %v3869 = vpop.f32.mrf.mxu0
    %3870 = vmatprep.mubr.f32.mxu0 0.0
    %v3871 = vand.u32 %v3111, 4294901760
    %3872 = vmatmul.mubr.f32.gmra.mxu0 %v3871
    %v3873 = vpop.f32.mrf.mxu0
    %v3874 = vadd.f32 %v3769, %v3873
    %v3875 = vpop.f32.mrf.mxu0
    %3876 = vmatprep.mubr.f32.mxu0 0.0
    %v3877 = vand.u32 %v3112, 4294901760
    %3878 = vmatmul.mubr.f32.gmra.mxu0 %v3877
    %v3879 = vpop.f32.mrf.mxu0
    %v3880 = vadd.f32 %v3775, %v3879
    %v3881 = vpop.f32.mrf.mxu0
    %3882 = vdwg.mxu0
    %v3883 = vsub.f32 %v3862, %v44
    %v3884 = vsub.f32 %v3868, %v45
    %v3885 = vsub.f32 %v3874, %v46
    %v3886 = vsub.f32 %v3880, %v47
    %v3887 = vmul.f32 %v48, %v3883
    %v3888 = vmul.f32 %v49, %v3884
    %v3889 = vmul.f32 %v50, %v3885
    %v3890 = vmul.f32 %v51, %v3886
    %v3891 = vxor.u32 %v3887, 2147483648
    %v3892 = vxor.u32 %v3888, 2147483648
    %v3893 = vxor.u32 %v3889, 2147483648
    %v3894 = vxor.u32 %v3890, 2147483648
    %v3895 = vmul.f32 %v3891, 1.442695
    %v3896 = vpow.pop %v3895
    %v3897 = vmul.f32 %v3892, 1.442695
    %v3898 = vpow.pop %v3897
    %v3899 = vmul.f32 %v3893, 1.442695
    %v3900 = vpow.pop %v3899
    %v3901 = vmul.f32 %v3894, 1.442695
    %v3902 = vpow.pop %v3901
    %v3903 = vadd.f32 %v3896, 1.0
    %v3904 = vadd.f32 %v3898, 1.0
    %v3905 = vadd.f32 %v3900, 1.0
    %v3906 = vadd.f32 %v3902, 1.0
    %v3907 = vrcp.pop %v3903
    %v3908 = vmul.f32 1.0, %v3907
    %v3909 = vrcp.pop %v3904
    %v3910 = vmul.f32 1.0, %v3909
    %v3911 = vrcp.pop %v3905
    %v3912 = vmul.f32 1.0, %v3911
    %v3913 = vrcp.pop %v3906
    %v3914 = vmul.f32 1.0, %v3913
    %v3915 = vmul.f32 %v56, %v3908
    %v3916 = vmul.f32 %v57, %v3910
    %v3917 = vmul.f32 %v58, %v3912
    %v3918 = vmul.f32 %v59, %v3914
    %v3919 = vadd.f32 %v3915, %v3916
    %v3920 = vadd.f32 %v3919, %v3917
    %v3921 = vadd.f32 %v3920, %v3918
    %v3922 = vrot.slane %v3921, 4
    %v3923 = vadd.f32 %v3921, %v3922
    %v3924 = vrot.slane %v3923, 2
    %v3925 = vadd.f32 %v3923, %v3924
    %v3926 = vrot.slane %v3925, 1
    %v3927 = vadd.f32 %v3925, %v3926
    %v3928 = vadd.f32 %v3927, %v559
    %v3929 = vmul.f32 %v52, %v3908
    %v3930 = vmul.f32 %v53, %v3910
    %v3931 = vmul.f32 %v54, %v3912
    %v3932 = vmul.f32 %v55, %v3914
    %v3933 = vadd.f32 %v3929, %v3930
    %v3934 = vadd.f32 %v3933, %v3931
    %v3935 = vadd.f32 %v3934, %v3932
    %v3936 = vrot.slane %v3935, 4
    %v3937 = vadd.f32 %v3935, %v3936
    %v3938 = vrot.slane %v3937, 2
    %v3939 = vadd.f32 %v3937, %v3938
    %v3940 = vrot.slane %v3939, 1
    %v3941 = vadd.f32 %v3939, %v3940
    %v3942 = vadd.f32 %v3941, %v566
    %v3943 = vmul.f32 %v87, %v3104
    %v3944 = vmul.f32 %v88, %v3928
    %v3945 = vadd.f32 %v3943, %v3944
    %v3946 = vadd.f32 %v89, %v3942
    %v3947 = vadd.f32 %v3946, 1e-08
    %v3948 = vrcp.pop %v3947
    %v3949 = vmul.f32 %v3945, %v3948
    %v3950 = vlaneseq
    %v3951 = vshrl.u32 %v3950, 7
    %v3952 = vsub.s32 0, %v3951
    %v3953 = vrot.slane %v3949, %v3952
    %v3954 = vmul.f32 %v60, %v3953
    %v3955 = vmul.f32 %v61, %v3953
    %v3956 = vmul.f32 %v62, %v3953
    %v3957 = vmul.f32 %v63, %v3953
    %3958 = vmatprep.subr.mxu0 0.0
    %v3959 = vand.u32 %v79, 4294901760
    %3960 = vmatpush1.msra.mxu0 %v3959
    %3961 = vmatprep.subr.mxu0 0.0
    %v3962 = vand.u32 %v78, 4294901760
    %3963 = vmatpush1.msra.mxu0 %v3962
    %3964 = vmatprep.subr.mxu0 0.0
    %v3965 = vand.u32 %v77, 4294901760
    %3966 = vmatpush1.msra.mxu0 %v3965
    %3967 = vmatprep.subr.mxu0 0.0
    %v3968 = vand.u32 %v76, 4294901760
    %3969 = vmatpush1.msra.mxu0 %v3968
    %3970 = vmatprep.subr.mxu0 0.0
    %v3971 = vand.u32 %v75, 4294901760
    %3972 = vmatpush1.msra.mxu0 %v3971
    %3973 = vmatprep.subr.mxu0 0.0
    %v3974 = vand.u32 %v74, 4294901760
    %3975 = vmatpush1.msra.mxu0 %v3974
    %3976 = vmatprep.subr.mxu0 0.0
    %v3977 = vand.u32 %v73, 4294901760
    %3978 = vmatpush1.msra.mxu0 %v3977
    %3979 = vmatprep.subr.mxu0 0.0
    %v3980 = vand.u32 %v72, 4294901760
    %3981 = vmatpush1.msra.mxu0 %v3980
    %3982 = vmatprep.subr.mxu0 0.0
    %v3983 = vand.u32 %v71, 4294901760
    %3984 = vmatpush1.msra.mxu0 %v3983
    %3985 = vmatprep.subr.mxu0 0.0
    %v3986 = vand.u32 %v70, 4294901760
    %3987 = vmatpush1.msra.mxu0 %v3986
    %3988 = vmatprep.subr.mxu0 0.0
    %v3989 = vand.u32 %v69, 4294901760
    %3990 = vmatpush1.msra.mxu0 %v3989
    %3991 = vmatprep.subr.mxu0 0.0
    %v3992 = vand.u32 %v68, 4294901760
    %3993 = vmatpush1.msra.mxu0 %v3992
    %3994 = vmatprep.subr.mxu0 0.0
    %v3995 = vand.u32 %v67, 4294901760
    %3996 = vmatpush1.msra.mxu0 %v3995
    %3997 = vmatprep.subr.mxu0 0.0
    %v3998 = vand.u32 %v66, 4294901760
    %3999 = vmatpush1.msra.mxu0 %v3998
    %4000 = vmatprep.subr.mxu0 0.0
    %v4001 = vand.u32 %v65, 4294901760
    %4002 = vmatpush1.msra.mxu0 %v4001
    %4003 = vmatprep.subr.mxu0 0.0
    %v4004 = vand.u32 %v64, 4294901760
    %4005 = vmatpush1.msra.mxu0 %v4004
    %4006 = vmatprep.subr.mxu0 0.0
    %4007 = vmatpush2.msra.mxu0 0.0
    %4008 = vmatprep.subr.mxu0 0.0
    %4009 = vmatpush2.msra.mxu0 0.0
    %4010 = vmatprep.subr.mxu0 0.0
    %4011 = vmatpush2.msra.mxu0 0.0
    %4012 = vmatprep.subr.mxu0 0.0
    %4013 = vmatpush2.msra.mxu0 0.0
    %4014 = vmatprep.subr.mxu0 0.0
    %4015 = vmatpush2.msra.mxu0 0.0
    %4016 = vmatprep.subr.mxu0 0.0
    %4017 = vmatpush2.msra.mxu0 0.0
    %4018 = vmatprep.subr.mxu0 0.0
    %4019 = vmatpush2.msra.mxu0 0.0
    %4020 = vmatprep.subr.mxu0 0.0
    %4021 = vmatpush2.msra.mxu0 0.0
    %4022 = vmatprep.subr.mxu0 0.0
    %4023 = vmatpush2.msra.mxu0 0.0
    %4024 = vmatprep.subr.mxu0 0.0
    %4025 = vmatpush2.msra.mxu0 0.0
    %4026 = vmatprep.subr.mxu0 0.0
    %4027 = vmatpush2.msra.mxu0 0.0
    %4028 = vmatprep.subr.mxu0 0.0
    %4029 = vmatpush2.msra.mxu0 0.0
    %4030 = vmatprep.subr.mxu0 0.0
    %4031 = vmatpush2.msra.mxu0 0.0
    %4032 = vmatprep.subr.mxu0 0.0
    %4033 = vmatpush2.msra.mxu0 0.0
    %4034 = vmatprep.subr.mxu0 0.0
    %4035 = vmatpush2.msra.mxu0 0.0
    %4036 = vmatprep.subr.mxu0 0.0
    %4037 = vmatpush2.msra.mxu0 0.0
    %4038 = vmatprep.mubr.f32.mxu0 0.0
    %v4039 = vand.u32 %v3954, 4294901760
    %v4040 = vsub.f32 %v3954, %v4039
    %v4041 = vand.u32 %v4040, 4294901760
    %v4042 = vsub.f32 %v4040, %v4041
    %v4043 = vand.u32 %v4042, 4294901760
    %4044 = vmatmul.mubr.f32.gmra.mxu0 %v4043
    %v4045 = vpop.f32.mrf.mxu0
    %v4046 = vadd.f32 0.0, %v4045
    %v4047 = vpop.f32.mrf.mxu0
    %4048 = vmatprep.mubr.f32.mxu0 0.0
    %v4049 = vand.u32 %v3955, 4294901760
    %v4050 = vsub.f32 %v3955, %v4049
    %v4051 = vand.u32 %v4050, 4294901760
    %v4052 = vsub.f32 %v4050, %v4051
    %v4053 = vand.u32 %v4052, 4294901760
    %4054 = vmatmul.mubr.f32.gmra.mxu0 %v4053
    %v4055 = vpop.f32.mrf.mxu0
    %v4056 = vadd.f32 0.0, %v4055
    %v4057 = vpop.f32.mrf.mxu0
    %4058 = vmatprep.mubr.f32.mxu0 0.0
    %v4059 = vand.u32 %v3956, 4294901760
    %v4060 = vsub.f32 %v3956, %v4059
    %v4061 = vand.u32 %v4060, 4294901760
    %v4062 = vsub.f32 %v4060, %v4061
    %v4063 = vand.u32 %v4062, 4294901760
    %4064 = vmatmul.mubr.f32.gmra.mxu0 %v4063
    %v4065 = vpop.f32.mrf.mxu0
    %v4066 = vadd.f32 0.0, %v4065
    %v4067 = vpop.f32.mrf.mxu0
    %4068 = vmatprep.mubr.f32.mxu0 0.0
    %v4069 = vand.u32 %v3957, 4294901760
    %v4070 = vsub.f32 %v3957, %v4069
    %v4071 = vand.u32 %v4070, 4294901760
    %v4072 = vsub.f32 %v4070, %v4071
    %v4073 = vand.u32 %v4072, 4294901760
    %4074 = vmatmul.mubr.f32.gmra.mxu0 %v4073
    %v4075 = vpop.f32.mrf.mxu0
    %v4076 = vadd.f32 0.0, %v4075
    %v4077 = vpop.f32.mrf.mxu0
    %4078 = vdwg.mxu0
    %4079 = vmatprep.subr.mxu0 0.0
    %v4080 = vand.u32 %v79, 4294901760
    %v4081 = vsub.f32 %v79, %v4080
    %v4082 = vand.u32 %v4081, 4294901760
    %v4083 = vsub.f32 %v4081, %v4082
    %v4084 = vand.u32 %v4083, 4294901760
    %4085 = vmatpush1.msra.mxu0 %v4084
    %4086 = vmatprep.subr.mxu0 0.0
    %v4087 = vand.u32 %v78, 4294901760
    %v4088 = vsub.f32 %v78, %v4087
    %v4089 = vand.u32 %v4088, 4294901760
    %v4090 = vsub.f32 %v4088, %v4089
    %v4091 = vand.u32 %v4090, 4294901760
    %4092 = vmatpush1.msra.mxu0 %v4091
    %4093 = vmatprep.subr.mxu0 0.0
    %v4094 = vand.u32 %v77, 4294901760
    %v4095 = vsub.f32 %v77, %v4094
    %v4096 = vand.u32 %v4095, 4294901760
    %v4097 = vsub.f32 %v4095, %v4096
    %v4098 = vand.u32 %v4097, 4294901760
    %4099 = vmatpush1.msra.mxu0 %v4098
    %4100 = vmatprep.subr.mxu0 0.0
    %v4101 = vand.u32 %v76, 4294901760
    %v4102 = vsub.f32 %v76, %v4101
    %v4103 = vand.u32 %v4102, 4294901760
    %v4104 = vsub.f32 %v4102, %v4103
    %v4105 = vand.u32 %v4104, 4294901760
    %4106 = vmatpush1.msra.mxu0 %v4105
    %4107 = vmatprep.subr.mxu0 0.0
    %v4108 = vand.u32 %v75, 4294901760
    %v4109 = vsub.f32 %v75, %v4108
    %v4110 = vand.u32 %v4109, 4294901760
    %v4111 = vsub.f32 %v4109, %v4110
    %v4112 = vand.u32 %v4111, 4294901760
    %4113 = vmatpush1.msra.mxu0 %v4112
    %4114 = vmatprep.subr.mxu0 0.0
    %v4115 = vand.u32 %v74, 4294901760
    %v4116 = vsub.f32 %v74, %v4115
    %v4117 = vand.u32 %v4116, 4294901760
    %v4118 = vsub.f32 %v4116, %v4117
    %v4119 = vand.u32 %v4118, 4294901760
    %4120 = vmatpush1.msra.mxu0 %v4119
    %4121 = vmatprep.subr.mxu0 0.0
    %v4122 = vand.u32 %v73, 4294901760
    %v4123 = vsub.f32 %v73, %v4122
    %v4124 = vand.u32 %v4123, 4294901760
    %v4125 = vsub.f32 %v4123, %v4124
    %v4126 = vand.u32 %v4125, 4294901760
    %4127 = vmatpush1.msra.mxu0 %v4126
    %4128 = vmatprep.subr.mxu0 0.0
    %v4129 = vand.u32 %v72, 4294901760
    %v4130 = vsub.f32 %v72, %v4129
    %v4131 = vand.u32 %v4130, 4294901760
    %v4132 = vsub.f32 %v4130, %v4131
    %v4133 = vand.u32 %v4132, 4294901760
    %4134 = vmatpush1.msra.mxu0 %v4133
    %4135 = vmatprep.subr.mxu0 0.0
    %v4136 = vand.u32 %v71, 4294901760
    %v4137 = vsub.f32 %v71, %v4136
    %v4138 = vand.u32 %v4137, 4294901760
    %v4139 = vsub.f32 %v4137, %v4138
    %v4140 = vand.u32 %v4139, 4294901760
    %4141 = vmatpush1.msra.mxu0 %v4140
    %4142 = vmatprep.subr.mxu0 0.0
    %v4143 = vand.u32 %v70, 4294901760
    %v4144 = vsub.f32 %v70, %v4143
    %v4145 = vand.u32 %v4144, 4294901760
    %v4146 = vsub.f32 %v4144, %v4145
    %v4147 = vand.u32 %v4146, 4294901760
    %4148 = vmatpush1.msra.mxu0 %v4147
    %4149 = vmatprep.subr.mxu0 0.0
    %v4150 = vand.u32 %v69, 4294901760
    %v4151 = vsub.f32 %v69, %v4150
    %v4152 = vand.u32 %v4151, 4294901760
    %v4153 = vsub.f32 %v4151, %v4152
    %v4154 = vand.u32 %v4153, 4294901760
    %4155 = vmatpush1.msra.mxu0 %v4154
    %4156 = vmatprep.subr.mxu0 0.0
    %v4157 = vand.u32 %v68, 4294901760
    %v4158 = vsub.f32 %v68, %v4157
    %v4159 = vand.u32 %v4158, 4294901760
    %v4160 = vsub.f32 %v4158, %v4159
    %v4161 = vand.u32 %v4160, 4294901760
    %4162 = vmatpush1.msra.mxu0 %v4161
    %4163 = vmatprep.subr.mxu0 0.0
    %v4164 = vand.u32 %v67, 4294901760
    %v4165 = vsub.f32 %v67, %v4164
    %v4166 = vand.u32 %v4165, 4294901760
    %v4167 = vsub.f32 %v4165, %v4166
    %v4168 = vand.u32 %v4167, 4294901760
    %4169 = vmatpush1.msra.mxu0 %v4168
    %4170 = vmatprep.subr.mxu0 0.0
    %v4171 = vand.u32 %v66, 4294901760
    %v4172 = vsub.f32 %v66, %v4171
    %v4173 = vand.u32 %v4172, 4294901760
    %v4174 = vsub.f32 %v4172, %v4173
    %v4175 = vand.u32 %v4174, 4294901760
    %4176 = vmatpush1.msra.mxu0 %v4175
    %4177 = vmatprep.subr.mxu0 0.0
    %v4178 = vand.u32 %v65, 4294901760
    %v4179 = vsub.f32 %v65, %v4178
    %v4180 = vand.u32 %v4179, 4294901760
    %v4181 = vsub.f32 %v4179, %v4180
    %v4182 = vand.u32 %v4181, 4294901760
    %4183 = vmatpush1.msra.mxu0 %v4182
    %4184 = vmatprep.subr.mxu0 0.0
    %v4185 = vand.u32 %v64, 4294901760
    %v4186 = vsub.f32 %v64, %v4185
    %v4187 = vand.u32 %v4186, 4294901760
    %v4188 = vsub.f32 %v4186, %v4187
    %v4189 = vand.u32 %v4188, 4294901760
    %4190 = vmatpush1.msra.mxu0 %v4189
    %4191 = vmatprep.subr.mxu0 0.0
    %4192 = vmatpush2.msra.mxu0 0.0
    %4193 = vmatprep.subr.mxu0 0.0
    %4194 = vmatpush2.msra.mxu0 0.0
    %4195 = vmatprep.subr.mxu0 0.0
    %4196 = vmatpush2.msra.mxu0 0.0
    %4197 = vmatprep.subr.mxu0 0.0
    %4198 = vmatpush2.msra.mxu0 0.0
    %4199 = vmatprep.subr.mxu0 0.0
    %4200 = vmatpush2.msra.mxu0 0.0
    %4201 = vmatprep.subr.mxu0 0.0
    %4202 = vmatpush2.msra.mxu0 0.0
    %4203 = vmatprep.subr.mxu0 0.0
    %4204 = vmatpush2.msra.mxu0 0.0
    %4205 = vmatprep.subr.mxu0 0.0
    %4206 = vmatpush2.msra.mxu0 0.0
    %4207 = vmatprep.subr.mxu0 0.0
    %4208 = vmatpush2.msra.mxu0 0.0
    %4209 = vmatprep.subr.mxu0 0.0
    %4210 = vmatpush2.msra.mxu0 0.0
    %4211 = vmatprep.subr.mxu0 0.0
    %4212 = vmatpush2.msra.mxu0 0.0
    %4213 = vmatprep.subr.mxu0 0.0
    %4214 = vmatpush2.msra.mxu0 0.0
    %4215 = vmatprep.subr.mxu0 0.0
    %4216 = vmatpush2.msra.mxu0 0.0
    %4217 = vmatprep.subr.mxu0 0.0
    %4218 = vmatpush2.msra.mxu0 0.0
    %4219 = vmatprep.subr.mxu0 0.0
    %4220 = vmatpush2.msra.mxu0 0.0
    %4221 = vmatprep.subr.mxu0 0.0
    %4222 = vmatpush2.msra.mxu0 0.0
    %4223 = vmatprep.mubr.f32.mxu0 0.0
    %v4224 = vand.u32 %v3954, 4294901760
    %4225 = vmatmul.mubr.f32.gmra.mxu0 %v4224
    %v4226 = vpop.f32.mrf.mxu0
    %v4227 = vadd.f32 %v4046, %v4226
    %v4228 = vpop.f32.mrf.mxu0
    %4229 = vmatprep.mubr.f32.mxu0 0.0
    %v4230 = vand.u32 %v3955, 4294901760
    %4231 = vmatmul.mubr.f32.gmra.mxu0 %v4230
    %v4232 = vpop.f32.mrf.mxu0
    %v4233 = vadd.f32 %v4056, %v4232
    %v4234 = vpop.f32.mrf.mxu0
    %4235 = vmatprep.mubr.f32.mxu0 0.0
    %v4236 = vand.u32 %v3956, 4294901760
    %4237 = vmatmul.mubr.f32.gmra.mxu0 %v4236
    %v4238 = vpop.f32.mrf.mxu0
    %v4239 = vadd.f32 %v4066, %v4238
    %v4240 = vpop.f32.mrf.mxu0
    %4241 = vmatprep.mubr.f32.mxu0 0.0
    %v4242 = vand.u32 %v3957, 4294901760
    %4243 = vmatmul.mubr.f32.gmra.mxu0 %v4242
    %v4244 = vpop.f32.mrf.mxu0
    %v4245 = vadd.f32 %v4076, %v4244
    %v4246 = vpop.f32.mrf.mxu0
    %4247 = vdwg.mxu0
    %4248 = vmatprep.subr.mxu0 0.0
    %v4249 = vand.u32 %v79, 4294901760
    %v4250 = vsub.f32 %v79, %v4249
    %4251 = vmatpush1.msra.mxu0 %v4250
    %4252 = vmatprep.subr.mxu0 0.0
    %v4253 = vand.u32 %v78, 4294901760
    %v4254 = vsub.f32 %v78, %v4253
    %4255 = vmatpush1.msra.mxu0 %v4254
    %4256 = vmatprep.subr.mxu0 0.0
    %v4257 = vand.u32 %v77, 4294901760
    %v4258 = vsub.f32 %v77, %v4257
    %4259 = vmatpush1.msra.mxu0 %v4258
    %4260 = vmatprep.subr.mxu0 0.0
    %v4261 = vand.u32 %v76, 4294901760
    %v4262 = vsub.f32 %v76, %v4261
    %4263 = vmatpush1.msra.mxu0 %v4262
    %4264 = vmatprep.subr.mxu0 0.0
    %v4265 = vand.u32 %v75, 4294901760
    %v4266 = vsub.f32 %v75, %v4265
    %4267 = vmatpush1.msra.mxu0 %v4266
    %4268 = vmatprep.subr.mxu0 0.0
    %v4269 = vand.u32 %v74, 4294901760
    %v4270 = vsub.f32 %v74, %v4269
    %4271 = vmatpush1.msra.mxu0 %v4270
    %4272 = vmatprep.subr.mxu0 0.0
    %v4273 = vand.u32 %v73, 4294901760
    %v4274 = vsub.f32 %v73, %v4273
    %4275 = vmatpush1.msra.mxu0 %v4274
    %4276 = vmatprep.subr.mxu0 0.0
    %v4277 = vand.u32 %v72, 4294901760
    %v4278 = vsub.f32 %v72, %v4277
    %4279 = vmatpush1.msra.mxu0 %v4278
    %4280 = vmatprep.subr.mxu0 0.0
    %v4281 = vand.u32 %v71, 4294901760
    %v4282 = vsub.f32 %v71, %v4281
    %4283 = vmatpush1.msra.mxu0 %v4282
    %4284 = vmatprep.subr.mxu0 0.0
    %v4285 = vand.u32 %v70, 4294901760
    %v4286 = vsub.f32 %v70, %v4285
    %4287 = vmatpush1.msra.mxu0 %v4286
    %4288 = vmatprep.subr.mxu0 0.0
    %v4289 = vand.u32 %v69, 4294901760
    %v4290 = vsub.f32 %v69, %v4289
    %4291 = vmatpush1.msra.mxu0 %v4290
    %4292 = vmatprep.subr.mxu0 0.0
    %v4293 = vand.u32 %v68, 4294901760
    %v4294 = vsub.f32 %v68, %v4293
    %4295 = vmatpush1.msra.mxu0 %v4294
    %4296 = vmatprep.subr.mxu0 0.0
    %v4297 = vand.u32 %v67, 4294901760
    %v4298 = vsub.f32 %v67, %v4297
    %4299 = vmatpush1.msra.mxu0 %v4298
    %4300 = vmatprep.subr.mxu0 0.0
    %v4301 = vand.u32 %v66, 4294901760
    %v4302 = vsub.f32 %v66, %v4301
    %4303 = vmatpush1.msra.mxu0 %v4302
    %4304 = vmatprep.subr.mxu0 0.0
    %v4305 = vand.u32 %v65, 4294901760
    %v4306 = vsub.f32 %v65, %v4305
    %4307 = vmatpush1.msra.mxu0 %v4306
    %4308 = vmatprep.subr.mxu0 0.0
    %v4309 = vand.u32 %v64, 4294901760
    %v4310 = vsub.f32 %v64, %v4309
    %4311 = vmatpush1.msra.mxu0 %v4310
    %4312 = vmatprep.subr.mxu0 0.0
    %4313 = vmatpush2.msra.mxu0 0.0
    %4314 = vmatprep.subr.mxu0 0.0
    %4315 = vmatpush2.msra.mxu0 0.0
    %4316 = vmatprep.subr.mxu0 0.0
    %4317 = vmatpush2.msra.mxu0 0.0
    %4318 = vmatprep.subr.mxu0 0.0
    %4319 = vmatpush2.msra.mxu0 0.0
    %4320 = vmatprep.subr.mxu0 0.0
    %4321 = vmatpush2.msra.mxu0 0.0
    %4322 = vmatprep.subr.mxu0 0.0
    %4323 = vmatpush2.msra.mxu0 0.0
    %4324 = vmatprep.subr.mxu0 0.0
    %4325 = vmatpush2.msra.mxu0 0.0
    %4326 = vmatprep.subr.mxu0 0.0
    %4327 = vmatpush2.msra.mxu0 0.0
    %4328 = vmatprep.subr.mxu0 0.0
    %4329 = vmatpush2.msra.mxu0 0.0
    %4330 = vmatprep.subr.mxu0 0.0
    %4331 = vmatpush2.msra.mxu0 0.0
    %4332 = vmatprep.subr.mxu0 0.0
    %4333 = vmatpush2.msra.mxu0 0.0
    %4334 = vmatprep.subr.mxu0 0.0
    %4335 = vmatpush2.msra.mxu0 0.0
    %4336 = vmatprep.subr.mxu0 0.0
    %4337 = vmatpush2.msra.mxu0 0.0
    %4338 = vmatprep.subr.mxu0 0.0
    %4339 = vmatpush2.msra.mxu0 0.0
    %4340 = vmatprep.subr.mxu0 0.0
    %4341 = vmatpush2.msra.mxu0 0.0
    %4342 = vmatprep.subr.mxu0 0.0
    %4343 = vmatpush2.msra.mxu0 0.0
    %4344 = vmatprep.mubr.f32.mxu0 0.0
    %v4345 = vand.u32 %v3954, 4294901760
    %v4346 = vsub.f32 %v3954, %v4345
    %4347 = vmatmul.mubr.f32.gmra.mxu0 %v4346
    %v4348 = vpop.f32.mrf.mxu0
    %v4349 = vadd.f32 %v4227, %v4348
    %v4350 = vpop.f32.mrf.mxu0
    %4351 = vmatprep.mubr.f32.mxu0 0.0
    %v4352 = vand.u32 %v3955, 4294901760
    %v4353 = vsub.f32 %v3955, %v4352
    %4354 = vmatmul.mubr.f32.gmra.mxu0 %v4353
    %v4355 = vpop.f32.mrf.mxu0
    %v4356 = vadd.f32 %v4233, %v4355
    %v4357 = vpop.f32.mrf.mxu0
    %4358 = vmatprep.mubr.f32.mxu0 0.0
    %v4359 = vand.u32 %v3956, 4294901760
    %v4360 = vsub.f32 %v3956, %v4359
    %4361 = vmatmul.mubr.f32.gmra.mxu0 %v4360
    %v4362 = vpop.f32.mrf.mxu0
    %v4363 = vadd.f32 %v4239, %v4362
    %v4364 = vpop.f32.mrf.mxu0
    %4365 = vmatprep.mubr.f32.mxu0 0.0
    %v4366 = vand.u32 %v3957, 4294901760
    %v4367 = vsub.f32 %v3957, %v4366
    %4368 = vmatmul.mubr.f32.gmra.mxu0 %v4367
    %v4369 = vpop.f32.mrf.mxu0
    %v4370 = vadd.f32 %v4245, %v4369
    %v4371 = vpop.f32.mrf.mxu0
    %4372 = vdwg.mxu0
    %4373 = vmatprep.subr.mxu0 0.0
    %v4374 = vand.u32 %v79, 4294901760
    %4375 = vmatpush1.msra.mxu0 %v4374
    %4376 = vmatprep.subr.mxu0 0.0
    %v4377 = vand.u32 %v78, 4294901760
    %4378 = vmatpush1.msra.mxu0 %v4377
    %4379 = vmatprep.subr.mxu0 0.0
    %v4380 = vand.u32 %v77, 4294901760
    %4381 = vmatpush1.msra.mxu0 %v4380
    %4382 = vmatprep.subr.mxu0 0.0
    %v4383 = vand.u32 %v76, 4294901760
    %4384 = vmatpush1.msra.mxu0 %v4383
    %4385 = vmatprep.subr.mxu0 0.0
    %v4386 = vand.u32 %v75, 4294901760
    %4387 = vmatpush1.msra.mxu0 %v4386
    %4388 = vmatprep.subr.mxu0 0.0
    %v4389 = vand.u32 %v74, 4294901760
    %4390 = vmatpush1.msra.mxu0 %v4389
    %4391 = vmatprep.subr.mxu0 0.0
    %v4392 = vand.u32 %v73, 4294901760
    %4393 = vmatpush1.msra.mxu0 %v4392
    %4394 = vmatprep.subr.mxu0 0.0
    %v4395 = vand.u32 %v72, 4294901760
    %4396 = vmatpush1.msra.mxu0 %v4395
    %4397 = vmatprep.subr.mxu0 0.0
    %v4398 = vand.u32 %v71, 4294901760
    %4399 = vmatpush1.msra.mxu0 %v4398
    %4400 = vmatprep.subr.mxu0 0.0
    %v4401 = vand.u32 %v70, 4294901760
    %4402 = vmatpush1.msra.mxu0 %v4401
    %4403 = vmatprep.subr.mxu0 0.0
    %v4404 = vand.u32 %v69, 4294901760
    %4405 = vmatpush1.msra.mxu0 %v4404
    %4406 = vmatprep.subr.mxu0 0.0
    %v4407 = vand.u32 %v68, 4294901760
    %4408 = vmatpush1.msra.mxu0 %v4407
    %4409 = vmatprep.subr.mxu0 0.0
    %v4410 = vand.u32 %v67, 4294901760
    %4411 = vmatpush1.msra.mxu0 %v4410
    %4412 = vmatprep.subr.mxu0 0.0
    %v4413 = vand.u32 %v66, 4294901760
    %4414 = vmatpush1.msra.mxu0 %v4413
    %4415 = vmatprep.subr.mxu0 0.0
    %v4416 = vand.u32 %v65, 4294901760
    %4417 = vmatpush1.msra.mxu0 %v4416
    %4418 = vmatprep.subr.mxu0 0.0
    %v4419 = vand.u32 %v64, 4294901760
    %4420 = vmatpush1.msra.mxu0 %v4419
    %4421 = vmatprep.subr.mxu0 0.0
    %4422 = vmatpush2.msra.mxu0 0.0
    %4423 = vmatprep.subr.mxu0 0.0
    %4424 = vmatpush2.msra.mxu0 0.0
    %4425 = vmatprep.subr.mxu0 0.0
    %4426 = vmatpush2.msra.mxu0 0.0
    %4427 = vmatprep.subr.mxu0 0.0
    %4428 = vmatpush2.msra.mxu0 0.0
    %4429 = vmatprep.subr.mxu0 0.0
    %4430 = vmatpush2.msra.mxu0 0.0
    %4431 = vmatprep.subr.mxu0 0.0
    %4432 = vmatpush2.msra.mxu0 0.0
    %4433 = vmatprep.subr.mxu0 0.0
    %4434 = vmatpush2.msra.mxu0 0.0
    %4435 = vmatprep.subr.mxu0 0.0
    %4436 = vmatpush2.msra.mxu0 0.0
    %4437 = vmatprep.subr.mxu0 0.0
    %4438 = vmatpush2.msra.mxu0 0.0
    %4439 = vmatprep.subr.mxu0 0.0
    %4440 = vmatpush2.msra.mxu0 0.0
    %4441 = vmatprep.subr.mxu0 0.0
    %4442 = vmatpush2.msra.mxu0 0.0
    %4443 = vmatprep.subr.mxu0 0.0
    %4444 = vmatpush2.msra.mxu0 0.0
    %4445 = vmatprep.subr.mxu0 0.0
    %4446 = vmatpush2.msra.mxu0 0.0
    %4447 = vmatprep.subr.mxu0 0.0
    %4448 = vmatpush2.msra.mxu0 0.0
    %4449 = vmatprep.subr.mxu0 0.0
    %4450 = vmatpush2.msra.mxu0 0.0
    %4451 = vmatprep.subr.mxu0 0.0
    %4452 = vmatpush2.msra.mxu0 0.0
    %4453 = vmatprep.mubr.f32.mxu0 0.0
    %v4454 = vand.u32 %v3954, 4294901760
    %v4455 = vsub.f32 %v3954, %v4454
    %v4456 = vand.u32 %v4455, 4294901760
    %4457 = vmatmul.mubr.f32.gmra.mxu0 %v4456
    %v4458 = vpop.f32.mrf.mxu0
    %v4459 = vadd.f32 %v4349, %v4458
    %v4460 = vpop.f32.mrf.mxu0
    %4461 = vmatprep.mubr.f32.mxu0 0.0
    %v4462 = vand.u32 %v3955, 4294901760
    %v4463 = vsub.f32 %v3955, %v4462
    %v4464 = vand.u32 %v4463, 4294901760
    %4465 = vmatmul.mubr.f32.gmra.mxu0 %v4464
    %v4466 = vpop.f32.mrf.mxu0
    %v4467 = vadd.f32 %v4356, %v4466
    %v4468 = vpop.f32.mrf.mxu0
    %4469 = vmatprep.mubr.f32.mxu0 0.0
    %v4470 = vand.u32 %v3956, 4294901760
    %v4471 = vsub.f32 %v3956, %v4470
    %v4472 = vand.u32 %v4471, 4294901760
    %4473 = vmatmul.mubr.f32.gmra.mxu0 %v4472
    %v4474 = vpop.f32.mrf.mxu0
    %v4475 = vadd.f32 %v4363, %v4474
    %v4476 = vpop.f32.mrf.mxu0
    %4477 = vmatprep.mubr.f32.mxu0 0.0
    %v4478 = vand.u32 %v3957, 4294901760
    %v4479 = vsub.f32 %v3957, %v4478
    %v4480 = vand.u32 %v4479, 4294901760
    %4481 = vmatmul.mubr.f32.gmra.mxu0 %v4480
    %v4482 = vpop.f32.mrf.mxu0
    %v4483 = vadd.f32 %v4370, %v4482
    %v4484 = vpop.f32.mrf.mxu0
    %4485 = vdwg.mxu0
    %4486 = vmatprep.subr.mxu0 0.0
    %v4487 = vand.u32 %v79, 4294901760
    %v4488 = vsub.f32 %v79, %v4487
    %v4489 = vand.u32 %v4488, 4294901760
    %4490 = vmatpush1.msra.mxu0 %v4489
    %4491 = vmatprep.subr.mxu0 0.0
    %v4492 = vand.u32 %v78, 4294901760
    %v4493 = vsub.f32 %v78, %v4492
    %v4494 = vand.u32 %v4493, 4294901760
    %4495 = vmatpush1.msra.mxu0 %v4494
    %4496 = vmatprep.subr.mxu0 0.0
    %v4497 = vand.u32 %v77, 4294901760
    %v4498 = vsub.f32 %v77, %v4497
    %v4499 = vand.u32 %v4498, 4294901760
    %4500 = vmatpush1.msra.mxu0 %v4499
    %4501 = vmatprep.subr.mxu0 0.0
    %v4502 = vand.u32 %v76, 4294901760
    %v4503 = vsub.f32 %v76, %v4502
    %v4504 = vand.u32 %v4503, 4294901760
    %4505 = vmatpush1.msra.mxu0 %v4504
    %4506 = vmatprep.subr.mxu0 0.0
    %v4507 = vand.u32 %v75, 4294901760
    %v4508 = vsub.f32 %v75, %v4507
    %v4509 = vand.u32 %v4508, 4294901760
    %4510 = vmatpush1.msra.mxu0 %v4509
    %4511 = vmatprep.subr.mxu0 0.0
    %v4512 = vand.u32 %v74, 4294901760
    %v4513 = vsub.f32 %v74, %v4512
    %v4514 = vand.u32 %v4513, 4294901760
    %4515 = vmatpush1.msra.mxu0 %v4514
    %4516 = vmatprep.subr.mxu0 0.0
    %v4517 = vand.u32 %v73, 4294901760
    %v4518 = vsub.f32 %v73, %v4517
    %v4519 = vand.u32 %v4518, 4294901760
    %4520 = vmatpush1.msra.mxu0 %v4519
    %4521 = vmatprep.subr.mxu0 0.0
    %v4522 = vand.u32 %v72, 4294901760
    %v4523 = vsub.f32 %v72, %v4522
    %v4524 = vand.u32 %v4523, 4294901760
    %4525 = vmatpush1.msra.mxu0 %v4524
    %4526 = vmatprep.subr.mxu0 0.0
    %v4527 = vand.u32 %v71, 4294901760
    %v4528 = vsub.f32 %v71, %v4527
    %v4529 = vand.u32 %v4528, 4294901760
    %4530 = vmatpush1.msra.mxu0 %v4529
    %4531 = vmatprep.subr.mxu0 0.0
    %v4532 = vand.u32 %v70, 4294901760
    %v4533 = vsub.f32 %v70, %v4532
    %v4534 = vand.u32 %v4533, 4294901760
    %4535 = vmatpush1.msra.mxu0 %v4534
    %4536 = vmatprep.subr.mxu0 0.0
    %v4537 = vand.u32 %v69, 4294901760
    %v4538 = vsub.f32 %v69, %v4537
    %v4539 = vand.u32 %v4538, 4294901760
    %4540 = vmatpush1.msra.mxu0 %v4539
    %4541 = vmatprep.subr.mxu0 0.0
    %v4542 = vand.u32 %v68, 4294901760
    %v4543 = vsub.f32 %v68, %v4542
    %v4544 = vand.u32 %v4543, 4294901760
    %4545 = vmatpush1.msra.mxu0 %v4544
    %4546 = vmatprep.subr.mxu0 0.0
    %v4547 = vand.u32 %v67, 4294901760
    %v4548 = vsub.f32 %v67, %v4547
    %v4549 = vand.u32 %v4548, 4294901760
    %4550 = vmatpush1.msra.mxu0 %v4549
    %4551 = vmatprep.subr.mxu0 0.0
    %v4552 = vand.u32 %v66, 4294901760
    %v4553 = vsub.f32 %v66, %v4552
    %v4554 = vand.u32 %v4553, 4294901760
    %4555 = vmatpush1.msra.mxu0 %v4554
    %4556 = vmatprep.subr.mxu0 0.0
    %v4557 = vand.u32 %v65, 4294901760
    %v4558 = vsub.f32 %v65, %v4557
    %v4559 = vand.u32 %v4558, 4294901760
    %4560 = vmatpush1.msra.mxu0 %v4559
    %4561 = vmatprep.subr.mxu0 0.0
    %v4562 = vand.u32 %v64, 4294901760
    %v4563 = vsub.f32 %v64, %v4562
    %v4564 = vand.u32 %v4563, 4294901760
    %4565 = vmatpush1.msra.mxu0 %v4564
    %4566 = vmatprep.subr.mxu0 0.0
    %4567 = vmatpush2.msra.mxu0 0.0
    %4568 = vmatprep.subr.mxu0 0.0
    %4569 = vmatpush2.msra.mxu0 0.0
    %4570 = vmatprep.subr.mxu0 0.0
    %4571 = vmatpush2.msra.mxu0 0.0
    %4572 = vmatprep.subr.mxu0 0.0
    %4573 = vmatpush2.msra.mxu0 0.0
    %4574 = vmatprep.subr.mxu0 0.0
    %4575 = vmatpush2.msra.mxu0 0.0
    %4576 = vmatprep.subr.mxu0 0.0
    %4577 = vmatpush2.msra.mxu0 0.0
    %4578 = vmatprep.subr.mxu0 0.0
    %4579 = vmatpush2.msra.mxu0 0.0
    %4580 = vmatprep.subr.mxu0 0.0
    %4581 = vmatpush2.msra.mxu0 0.0
    %4582 = vmatprep.subr.mxu0 0.0
    %4583 = vmatpush2.msra.mxu0 0.0
    %4584 = vmatprep.subr.mxu0 0.0
    %4585 = vmatpush2.msra.mxu0 0.0
    %4586 = vmatprep.subr.mxu0 0.0
    %4587 = vmatpush2.msra.mxu0 0.0
    %4588 = vmatprep.subr.mxu0 0.0
    %4589 = vmatpush2.msra.mxu0 0.0
    %4590 = vmatprep.subr.mxu0 0.0
    %4591 = vmatpush2.msra.mxu0 0.0
    %4592 = vmatprep.subr.mxu0 0.0
    %4593 = vmatpush2.msra.mxu0 0.0
    %4594 = vmatprep.subr.mxu0 0.0
    %4595 = vmatpush2.msra.mxu0 0.0
    %4596 = vmatprep.subr.mxu0 0.0
    %4597 = vmatpush2.msra.mxu0 0.0
    %4598 = vmatprep.mubr.f32.mxu0 0.0
    %v4599 = vand.u32 %v3954, 4294901760
    %4600 = vmatmul.mubr.f32.gmra.mxu0 %v4599
    %v4601 = vpop.f32.mrf.mxu0
    %v4602 = vadd.f32 %v4459, %v4601
    %v4603 = vpop.f32.mrf.mxu0
    %4604 = vmatprep.mubr.f32.mxu0 0.0
    %v4605 = vand.u32 %v3955, 4294901760
    %4606 = vmatmul.mubr.f32.gmra.mxu0 %v4605
    %v4607 = vpop.f32.mrf.mxu0
    %v4608 = vadd.f32 %v4467, %v4607
    %v4609 = vpop.f32.mrf.mxu0
    %4610 = vmatprep.mubr.f32.mxu0 0.0
    %v4611 = vand.u32 %v3956, 4294901760
    %4612 = vmatmul.mubr.f32.gmra.mxu0 %v4611
    %v4613 = vpop.f32.mrf.mxu0
    %v4614 = vadd.f32 %v4475, %v4613
    %v4615 = vpop.f32.mrf.mxu0
    %4616 = vmatprep.mubr.f32.mxu0 0.0
    %v4617 = vand.u32 %v3957, 4294901760
    %4618 = vmatmul.mubr.f32.gmra.mxu0 %v4617
    %v4619 = vpop.f32.mrf.mxu0
    %v4620 = vadd.f32 %v4483, %v4619
    %v4621 = vpop.f32.mrf.mxu0
    %4622 = vdwg.mxu0
    %4623 = vmatprep.subr.mxu0 0.0
    %v4624 = vand.u32 %v79, 4294901760
    %4625 = vmatpush1.msra.mxu0 %v4624
    %4626 = vmatprep.subr.mxu0 0.0
    %v4627 = vand.u32 %v78, 4294901760
    %4628 = vmatpush1.msra.mxu0 %v4627
    %4629 = vmatprep.subr.mxu0 0.0
    %v4630 = vand.u32 %v77, 4294901760
    %4631 = vmatpush1.msra.mxu0 %v4630
    %4632 = vmatprep.subr.mxu0 0.0
    %v4633 = vand.u32 %v76, 4294901760
    %4634 = vmatpush1.msra.mxu0 %v4633
    %4635 = vmatprep.subr.mxu0 0.0
    %v4636 = vand.u32 %v75, 4294901760
    %4637 = vmatpush1.msra.mxu0 %v4636
    %4638 = vmatprep.subr.mxu0 0.0
    %v4639 = vand.u32 %v74, 4294901760
    %4640 = vmatpush1.msra.mxu0 %v4639
    %4641 = vmatprep.subr.mxu0 0.0
    %v4642 = vand.u32 %v73, 4294901760
    %4643 = vmatpush1.msra.mxu0 %v4642
    %4644 = vmatprep.subr.mxu0 0.0
    %v4645 = vand.u32 %v72, 4294901760
    %4646 = vmatpush1.msra.mxu0 %v4645
    %4647 = vmatprep.subr.mxu0 0.0
    %v4648 = vand.u32 %v71, 4294901760
    %4649 = vmatpush1.msra.mxu0 %v4648
    %4650 = vmatprep.subr.mxu0 0.0
    %v4651 = vand.u32 %v70, 4294901760
    %4652 = vmatpush1.msra.mxu0 %v4651
    %4653 = vmatprep.subr.mxu0 0.0
    %v4654 = vand.u32 %v69, 4294901760
    %4655 = vmatpush1.msra.mxu0 %v4654
    %4656 = vmatprep.subr.mxu0 0.0
    %v4657 = vand.u32 %v68, 4294901760
    %4658 = vmatpush1.msra.mxu0 %v4657
    %4659 = vmatprep.subr.mxu0 0.0
    %v4660 = vand.u32 %v67, 4294901760
    %4661 = vmatpush1.msra.mxu0 %v4660
    %4662 = vmatprep.subr.mxu0 0.0
    %v4663 = vand.u32 %v66, 4294901760
    %4664 = vmatpush1.msra.mxu0 %v4663
    %4665 = vmatprep.subr.mxu0 0.0
    %v4666 = vand.u32 %v65, 4294901760
    %4667 = vmatpush1.msra.mxu0 %v4666
    %4668 = vmatprep.subr.mxu0 0.0
    %v4669 = vand.u32 %v64, 4294901760
    %4670 = vmatpush1.msra.mxu0 %v4669
    %4671 = vmatprep.subr.mxu0 0.0
    %4672 = vmatpush2.msra.mxu0 0.0
    %4673 = vmatprep.subr.mxu0 0.0
    %4674 = vmatpush2.msra.mxu0 0.0
    %4675 = vmatprep.subr.mxu0 0.0
    %4676 = vmatpush2.msra.mxu0 0.0
    %4677 = vmatprep.subr.mxu0 0.0
    %4678 = vmatpush2.msra.mxu0 0.0
    %4679 = vmatprep.subr.mxu0 0.0
    %4680 = vmatpush2.msra.mxu0 0.0
    %4681 = vmatprep.subr.mxu0 0.0
    %4682 = vmatpush2.msra.mxu0 0.0
    %4683 = vmatprep.subr.mxu0 0.0
    %4684 = vmatpush2.msra.mxu0 0.0
    %4685 = vmatprep.subr.mxu0 0.0
    %4686 = vmatpush2.msra.mxu0 0.0
    %4687 = vmatprep.subr.mxu0 0.0
    %4688 = vmatpush2.msra.mxu0 0.0
    %4689 = vmatprep.subr.mxu0 0.0
    %4690 = vmatpush2.msra.mxu0 0.0
    %4691 = vmatprep.subr.mxu0 0.0
    %4692 = vmatpush2.msra.mxu0 0.0
    %4693 = vmatprep.subr.mxu0 0.0
    %4694 = vmatpush2.msra.mxu0 0.0
    %4695 = vmatprep.subr.mxu0 0.0
    %4696 = vmatpush2.msra.mxu0 0.0
    %4697 = vmatprep.subr.mxu0 0.0
    %4698 = vmatpush2.msra.mxu0 0.0
    %4699 = vmatprep.subr.mxu0 0.0
    %4700 = vmatpush2.msra.mxu0 0.0
    %4701 = vmatprep.subr.mxu0 0.0
    %4702 = vmatpush2.msra.mxu0 0.0
    %4703 = vmatprep.mubr.f32.mxu0 0.0
    %v4704 = vand.u32 %v3954, 4294901760
    %4705 = vmatmul.mubr.f32.gmra.mxu0 %v4704
    %v4706 = vpop.f32.mrf.mxu0
    %v4707 = vadd.f32 %v4602, %v4706
    %v4708 = vpop.f32.mrf.mxu0
    %4709 = vmatprep.mubr.f32.mxu0 0.0
    %v4710 = vand.u32 %v3955, 4294901760
    %4711 = vmatmul.mubr.f32.gmra.mxu0 %v4710
    %v4712 = vpop.f32.mrf.mxu0
    %v4713 = vadd.f32 %v4608, %v4712
    %v4714 = vpop.f32.mrf.mxu0
    %4715 = vmatprep.mubr.f32.mxu0 0.0
    %v4716 = vand.u32 %v3956, 4294901760
    %4717 = vmatmul.mubr.f32.gmra.mxu0 %v4716
    %v4718 = vpop.f32.mrf.mxu0
    %v4719 = vadd.f32 %v4614, %v4718
    %v4720 = vpop.f32.mrf.mxu0
    %4721 = vmatprep.mubr.f32.mxu0 0.0
    %v4722 = vand.u32 %v3957, 4294901760
    %4723 = vmatmul.mubr.f32.gmra.mxu0 %v4722
    %v4724 = vpop.f32.mrf.mxu0
    %v4725 = vadd.f32 %v4620, %v4724
    %v4726 = vpop.f32.mrf.mxu0
    %4727 = vdwg.mxu0
    %v4728 = vsub.f32 %v4707, %v44
    %v4729 = vsub.f32 %v4713, %v45
    %v4730 = vsub.f32 %v4719, %v46
    %v4731 = vsub.f32 %v4725, %v47
    %v4732 = vmul.f32 %v48, %v4728
    %v4733 = vmul.f32 %v49, %v4729
    %v4734 = vmul.f32 %v50, %v4730
    %v4735 = vmul.f32 %v51, %v4731
    %v4736 = vxor.u32 %v4732, 2147483648
    %v4737 = vxor.u32 %v4733, 2147483648
    %v4738 = vxor.u32 %v4734, 2147483648
    %v4739 = vxor.u32 %v4735, 2147483648
    %v4740 = vmul.f32 %v4736, 1.442695
    %v4741 = vpow.pop %v4740
    %v4742 = vmul.f32 %v4737, 1.442695
    %v4743 = vpow.pop %v4742
    %v4744 = vmul.f32 %v4738, 1.442695
    %v4745 = vpow.pop %v4744
    %v4746 = vmul.f32 %v4739, 1.442695
    %v4747 = vpow.pop %v4746
    %v4748 = vadd.f32 %v4741, 1.0
    %v4749 = vadd.f32 %v4743, 1.0
    %v4750 = vadd.f32 %v4745, 1.0
    %v4751 = vadd.f32 %v4747, 1.0
    %v4752 = vrcp.pop %v4748
    %v4753 = vmul.f32 1.0, %v4752
    %v4754 = vrcp.pop %v4749
    %v4755 = vmul.f32 1.0, %v4754
    %v4756 = vrcp.pop %v4750
    %v4757 = vmul.f32 1.0, %v4756
    %v4758 = vrcp.pop %v4751
    %v4759 = vmul.f32 1.0, %v4758
    %v4760 = vmul.f32 %v56, %v4753
    %v4761 = vmul.f32 %v57, %v4755
    %v4762 = vmul.f32 %v58, %v4757
    %v4763 = vmul.f32 %v59, %v4759
    %v4764 = vadd.f32 %v4760, %v4761
    %v4765 = vadd.f32 %v4764, %v4762
    %v4766 = vadd.f32 %v4765, %v4763
    %v4767 = vrot.slane %v4766, 4
    %v4768 = vadd.f32 %v4766, %v4767
    %v4769 = vrot.slane %v4768, 2
    %v4770 = vadd.f32 %v4768, %v4769
    %v4771 = vrot.slane %v4770, 1
    %v4772 = vadd.f32 %v4770, %v4771
    %v4773 = vadd.f32 %v4772, %v559
    %v4774 = vmul.f32 %v52, %v4753
    %v4775 = vmul.f32 %v53, %v4755
    %v4776 = vmul.f32 %v54, %v4757
    %v4777 = vmul.f32 %v55, %v4759
    %v4778 = vadd.f32 %v4774, %v4775
    %v4779 = vadd.f32 %v4778, %v4776
    %v4780 = vadd.f32 %v4779, %v4777
    %v4781 = vrot.slane %v4780, 4
    %v4782 = vadd.f32 %v4780, %v4781
    %v4783 = vrot.slane %v4782, 2
    %v4784 = vadd.f32 %v4782, %v4783
    %v4785 = vrot.slane %v4784, 1
    %v4786 = vadd.f32 %v4784, %v4785
    %v4787 = vadd.f32 %v4786, %v566
    %v4788 = vmul.f32 %v87, %v3949
    %v4789 = vmul.f32 %v88, %v4773
    %v4790 = vadd.f32 %v4788, %v4789
    %v4791 = vadd.f32 %v89, %v4787
    %v4792 = vadd.f32 %v4791, 1e-08
    %v4793 = vrcp.pop %v4792
    %v4794 = vmul.f32 %v4790, %v4793
    %v4795 = vlaneseq
    %v4796 = vshrl.u32 %v4795, 7
    %v4797 = vsub.s32 0, %v4796
    %v4798 = vrot.slane %v4794, %v4797
    %v4799 = vmul.f32 %v60, %v4798
    %v4800 = vmul.f32 %v61, %v4798
    %v4801 = vmul.f32 %v62, %v4798
    %v4802 = vmul.f32 %v63, %v4798
    %4803 = vmatprep.subr.mxu0 0.0
    %v4804 = vand.u32 %v79, 4294901760
    %4805 = vmatpush1.msra.mxu0 %v4804
    %4806 = vmatprep.subr.mxu0 0.0
    %v4807 = vand.u32 %v78, 4294901760
    %4808 = vmatpush1.msra.mxu0 %v4807
    %4809 = vmatprep.subr.mxu0 0.0
    %v4810 = vand.u32 %v77, 4294901760
    %4811 = vmatpush1.msra.mxu0 %v4810
    %4812 = vmatprep.subr.mxu0 0.0
    %v4813 = vand.u32 %v76, 4294901760
    %4814 = vmatpush1.msra.mxu0 %v4813
    %4815 = vmatprep.subr.mxu0 0.0
    %v4816 = vand.u32 %v75, 4294901760
    %4817 = vmatpush1.msra.mxu0 %v4816
    %4818 = vmatprep.subr.mxu0 0.0
    %v4819 = vand.u32 %v74, 4294901760
    %4820 = vmatpush1.msra.mxu0 %v4819
    %4821 = vmatprep.subr.mxu0 0.0
    %v4822 = vand.u32 %v73, 4294901760
    %4823 = vmatpush1.msra.mxu0 %v4822
    %4824 = vmatprep.subr.mxu0 0.0
    %v4825 = vand.u32 %v72, 4294901760
    %4826 = vmatpush1.msra.mxu0 %v4825
    %4827 = vmatprep.subr.mxu0 0.0
    %v4828 = vand.u32 %v71, 4294901760
    %4829 = vmatpush1.msra.mxu0 %v4828
    %4830 = vmatprep.subr.mxu0 0.0
    %v4831 = vand.u32 %v70, 4294901760
    %4832 = vmatpush1.msra.mxu0 %v4831
    %4833 = vmatprep.subr.mxu0 0.0
    %v4834 = vand.u32 %v69, 4294901760
    %4835 = vmatpush1.msra.mxu0 %v4834
    %4836 = vmatprep.subr.mxu0 0.0
    %v4837 = vand.u32 %v68, 4294901760
    %4838 = vmatpush1.msra.mxu0 %v4837
    %4839 = vmatprep.subr.mxu0 0.0
    %v4840 = vand.u32 %v67, 4294901760
    %4841 = vmatpush1.msra.mxu0 %v4840
    %4842 = vmatprep.subr.mxu0 0.0
    %v4843 = vand.u32 %v66, 4294901760
    %4844 = vmatpush1.msra.mxu0 %v4843
    %4845 = vmatprep.subr.mxu0 0.0
    %v4846 = vand.u32 %v65, 4294901760
    %4847 = vmatpush1.msra.mxu0 %v4846
    %4848 = vmatprep.subr.mxu0 0.0
    %v4849 = vand.u32 %v64, 4294901760
    %4850 = vmatpush1.msra.mxu0 %v4849
    %4851 = vmatprep.subr.mxu0 0.0
    %4852 = vmatpush2.msra.mxu0 0.0
    %4853 = vmatprep.subr.mxu0 0.0
    %4854 = vmatpush2.msra.mxu0 0.0
    %4855 = vmatprep.subr.mxu0 0.0
    %4856 = vmatpush2.msra.mxu0 0.0
    %4857 = vmatprep.subr.mxu0 0.0
    %4858 = vmatpush2.msra.mxu0 0.0
    %4859 = vmatprep.subr.mxu0 0.0
    %4860 = vmatpush2.msra.mxu0 0.0
    %4861 = vmatprep.subr.mxu0 0.0
    %4862 = vmatpush2.msra.mxu0 0.0
    %4863 = vmatprep.subr.mxu0 0.0
    %4864 = vmatpush2.msra.mxu0 0.0
    %4865 = vmatprep.subr.mxu0 0.0
    %4866 = vmatpush2.msra.mxu0 0.0
    %4867 = vmatprep.subr.mxu0 0.0
    %4868 = vmatpush2.msra.mxu0 0.0
    %4869 = vmatprep.subr.mxu0 0.0
    %4870 = vmatpush2.msra.mxu0 0.0
    %4871 = vmatprep.subr.mxu0 0.0
    %4872 = vmatpush2.msra.mxu0 0.0
    %4873 = vmatprep.subr.mxu0 0.0
    %4874 = vmatpush2.msra.mxu0 0.0
    %4875 = vmatprep.subr.mxu0 0.0
    %4876 = vmatpush2.msra.mxu0 0.0
    %4877 = vmatprep.subr.mxu0 0.0
    %4878 = vmatpush2.msra.mxu0 0.0
    %4879 = vmatprep.subr.mxu0 0.0
    %4880 = vmatpush2.msra.mxu0 0.0
    %4881 = vmatprep.subr.mxu0 0.0
    %4882 = vmatpush2.msra.mxu0 0.0
    %4883 = vmatprep.mubr.f32.mxu0 0.0
    %v4884 = vand.u32 %v4799, 4294901760
    %v4885 = vsub.f32 %v4799, %v4884
    %v4886 = vand.u32 %v4885, 4294901760
    %v4887 = vsub.f32 %v4885, %v4886
    %v4888 = vand.u32 %v4887, 4294901760
    %4889 = vmatmul.mubr.f32.gmra.mxu0 %v4888
    %v4890 = vpop.f32.mrf.mxu0
    %v4891 = vadd.f32 0.0, %v4890
    %v4892 = vpop.f32.mrf.mxu0
    %4893 = vmatprep.mubr.f32.mxu0 0.0
    %v4894 = vand.u32 %v4800, 4294901760
    %v4895 = vsub.f32 %v4800, %v4894
    %v4896 = vand.u32 %v4895, 4294901760
    %v4897 = vsub.f32 %v4895, %v4896
    %v4898 = vand.u32 %v4897, 4294901760
    %4899 = vmatmul.mubr.f32.gmra.mxu0 %v4898
    %v4900 = vpop.f32.mrf.mxu0
    %v4901 = vadd.f32 0.0, %v4900
    %v4902 = vpop.f32.mrf.mxu0
    %4903 = vmatprep.mubr.f32.mxu0 0.0
    %v4904 = vand.u32 %v4801, 4294901760
    %v4905 = vsub.f32 %v4801, %v4904
    %v4906 = vand.u32 %v4905, 4294901760
    %v4907 = vsub.f32 %v4905, %v4906
    %v4908 = vand.u32 %v4907, 4294901760
    %4909 = vmatmul.mubr.f32.gmra.mxu0 %v4908
    %v4910 = vpop.f32.mrf.mxu0
    %v4911 = vadd.f32 0.0, %v4910
    %v4912 = vpop.f32.mrf.mxu0
    %4913 = vmatprep.mubr.f32.mxu0 0.0
    %v4914 = vand.u32 %v4802, 4294901760
    %v4915 = vsub.f32 %v4802, %v4914
    %v4916 = vand.u32 %v4915, 4294901760
    %v4917 = vsub.f32 %v4915, %v4916
    %v4918 = vand.u32 %v4917, 4294901760
    %4919 = vmatmul.mubr.f32.gmra.mxu0 %v4918
    %v4920 = vpop.f32.mrf.mxu0
    %v4921 = vadd.f32 0.0, %v4920
    %v4922 = vpop.f32.mrf.mxu0
    %4923 = vdwg.mxu0
    %4924 = vmatprep.subr.mxu0 0.0
    %v4925 = vand.u32 %v79, 4294901760
    %v4926 = vsub.f32 %v79, %v4925
    %v4927 = vand.u32 %v4926, 4294901760
    %v4928 = vsub.f32 %v4926, %v4927
    %v4929 = vand.u32 %v4928, 4294901760
    %4930 = vmatpush1.msra.mxu0 %v4929
    %4931 = vmatprep.subr.mxu0 0.0
    %v4932 = vand.u32 %v78, 4294901760
    %v4933 = vsub.f32 %v78, %v4932
    %v4934 = vand.u32 %v4933, 4294901760
    %v4935 = vsub.f32 %v4933, %v4934
    %v4936 = vand.u32 %v4935, 4294901760
    %4937 = vmatpush1.msra.mxu0 %v4936
    %4938 = vmatprep.subr.mxu0 0.0
    %v4939 = vand.u32 %v77, 4294901760
    %v4940 = vsub.f32 %v77, %v4939
    %v4941 = vand.u32 %v4940, 4294901760
    %v4942 = vsub.f32 %v4940, %v4941
    %v4943 = vand.u32 %v4942, 4294901760
    %4944 = vmatpush1.msra.mxu0 %v4943
    %4945 = vmatprep.subr.mxu0 0.0
    %v4946 = vand.u32 %v76, 4294901760
    %v4947 = vsub.f32 %v76, %v4946
    %v4948 = vand.u32 %v4947, 4294901760
    %v4949 = vsub.f32 %v4947, %v4948
    %v4950 = vand.u32 %v4949, 4294901760
    %4951 = vmatpush1.msra.mxu0 %v4950
    %4952 = vmatprep.subr.mxu0 0.0
    %v4953 = vand.u32 %v75, 4294901760
    %v4954 = vsub.f32 %v75, %v4953
    %v4955 = vand.u32 %v4954, 4294901760
    %v4956 = vsub.f32 %v4954, %v4955
    %v4957 = vand.u32 %v4956, 4294901760
    %4958 = vmatpush1.msra.mxu0 %v4957
    %4959 = vmatprep.subr.mxu0 0.0
    %v4960 = vand.u32 %v74, 4294901760
    %v4961 = vsub.f32 %v74, %v4960
    %v4962 = vand.u32 %v4961, 4294901760
    %v4963 = vsub.f32 %v4961, %v4962
    %v4964 = vand.u32 %v4963, 4294901760
    %4965 = vmatpush1.msra.mxu0 %v4964
    %4966 = vmatprep.subr.mxu0 0.0
    %v4967 = vand.u32 %v73, 4294901760
    %v4968 = vsub.f32 %v73, %v4967
    %v4969 = vand.u32 %v4968, 4294901760
    %v4970 = vsub.f32 %v4968, %v4969
    %v4971 = vand.u32 %v4970, 4294901760
    %4972 = vmatpush1.msra.mxu0 %v4971
    %4973 = vmatprep.subr.mxu0 0.0
    %v4974 = vand.u32 %v72, 4294901760
    %v4975 = vsub.f32 %v72, %v4974
    %v4976 = vand.u32 %v4975, 4294901760
    %v4977 = vsub.f32 %v4975, %v4976
    %v4978 = vand.u32 %v4977, 4294901760
    %4979 = vmatpush1.msra.mxu0 %v4978
    %4980 = vmatprep.subr.mxu0 0.0
    %v4981 = vand.u32 %v71, 4294901760
    %v4982 = vsub.f32 %v71, %v4981
    %v4983 = vand.u32 %v4982, 4294901760
    %v4984 = vsub.f32 %v4982, %v4983
    %v4985 = vand.u32 %v4984, 4294901760
    %4986 = vmatpush1.msra.mxu0 %v4985
    %4987 = vmatprep.subr.mxu0 0.0
    %v4988 = vand.u32 %v70, 4294901760
    %v4989 = vsub.f32 %v70, %v4988
    %v4990 = vand.u32 %v4989, 4294901760
    %v4991 = vsub.f32 %v4989, %v4990
    %v4992 = vand.u32 %v4991, 4294901760
    %4993 = vmatpush1.msra.mxu0 %v4992
    %4994 = vmatprep.subr.mxu0 0.0
    %v4995 = vand.u32 %v69, 4294901760
    %v4996 = vsub.f32 %v69, %v4995
    %v4997 = vand.u32 %v4996, 4294901760
    %v4998 = vsub.f32 %v4996, %v4997
    %v4999 = vand.u32 %v4998, 4294901760
    %5000 = vmatpush1.msra.mxu0 %v4999
    %5001 = vmatprep.subr.mxu0 0.0
    %v5002 = vand.u32 %v68, 4294901760
    %v5003 = vsub.f32 %v68, %v5002
    %v5004 = vand.u32 %v5003, 4294901760
    %v5005 = vsub.f32 %v5003, %v5004
    %v5006 = vand.u32 %v5005, 4294901760
    %5007 = vmatpush1.msra.mxu0 %v5006
    %5008 = vmatprep.subr.mxu0 0.0
    %v5009 = vand.u32 %v67, 4294901760
    %v5010 = vsub.f32 %v67, %v5009
    %v5011 = vand.u32 %v5010, 4294901760
    %v5012 = vsub.f32 %v5010, %v5011
    %v5013 = vand.u32 %v5012, 4294901760
    %5014 = vmatpush1.msra.mxu0 %v5013
    %5015 = vmatprep.subr.mxu0 0.0
    %v5016 = vand.u32 %v66, 4294901760
    %v5017 = vsub.f32 %v66, %v5016
    %v5018 = vand.u32 %v5017, 4294901760
    %v5019 = vsub.f32 %v5017, %v5018
    %v5020 = vand.u32 %v5019, 4294901760
    %5021 = vmatpush1.msra.mxu0 %v5020
    %5022 = vmatprep.subr.mxu0 0.0
    %v5023 = vand.u32 %v65, 4294901760
    %v5024 = vsub.f32 %v65, %v5023
    %v5025 = vand.u32 %v5024, 4294901760
    %v5026 = vsub.f32 %v5024, %v5025
    %v5027 = vand.u32 %v5026, 4294901760
    %5028 = vmatpush1.msra.mxu0 %v5027
    %5029 = vmatprep.subr.mxu0 0.0
    %v5030 = vand.u32 %v64, 4294901760
    %v5031 = vsub.f32 %v64, %v5030
    %v5032 = vand.u32 %v5031, 4294901760
    %v5033 = vsub.f32 %v5031, %v5032
    %v5034 = vand.u32 %v5033, 4294901760
    %5035 = vmatpush1.msra.mxu0 %v5034
    %5036 = vmatprep.subr.mxu0 0.0
    %5037 = vmatpush2.msra.mxu0 0.0
    %5038 = vmatprep.subr.mxu0 0.0
    %5039 = vmatpush2.msra.mxu0 0.0
    %5040 = vmatprep.subr.mxu0 0.0
    %5041 = vmatpush2.msra.mxu0 0.0
    %5042 = vmatprep.subr.mxu0 0.0
    %5043 = vmatpush2.msra.mxu0 0.0
    %5044 = vmatprep.subr.mxu0 0.0
    %5045 = vmatpush2.msra.mxu0 0.0
    %5046 = vmatprep.subr.mxu0 0.0
    %5047 = vmatpush2.msra.mxu0 0.0
    %5048 = vmatprep.subr.mxu0 0.0
    %5049 = vmatpush2.msra.mxu0 0.0
    %5050 = vmatprep.subr.mxu0 0.0
    %5051 = vmatpush2.msra.mxu0 0.0
    %5052 = vmatprep.subr.mxu0 0.0
    %5053 = vmatpush2.msra.mxu0 0.0
    %5054 = vmatprep.subr.mxu0 0.0
    %5055 = vmatpush2.msra.mxu0 0.0
    %5056 = vmatprep.subr.mxu0 0.0
    %5057 = vmatpush2.msra.mxu0 0.0
    %5058 = vmatprep.subr.mxu0 0.0
    %5059 = vmatpush2.msra.mxu0 0.0
    %5060 = vmatprep.subr.mxu0 0.0
    %5061 = vmatpush2.msra.mxu0 0.0
    %5062 = vmatprep.subr.mxu0 0.0
    %5063 = vmatpush2.msra.mxu0 0.0
    %5064 = vmatprep.subr.mxu0 0.0
    %5065 = vmatpush2.msra.mxu0 0.0
    %5066 = vmatprep.subr.mxu0 0.0
    %5067 = vmatpush2.msra.mxu0 0.0
    %5068 = vmatprep.mubr.f32.mxu0 0.0
    %v5069 = vand.u32 %v4799, 4294901760
    %5070 = vmatmul.mubr.f32.gmra.mxu0 %v5069
    %v5071 = vpop.f32.mrf.mxu0
    %v5072 = vadd.f32 %v4891, %v5071
    %v5073 = vpop.f32.mrf.mxu0
    %5074 = vmatprep.mubr.f32.mxu0 0.0
    %v5075 = vand.u32 %v4800, 4294901760
    %5076 = vmatmul.mubr.f32.gmra.mxu0 %v5075
    %v5077 = vpop.f32.mrf.mxu0
    %v5078 = vadd.f32 %v4901, %v5077
    %v5079 = vpop.f32.mrf.mxu0
    %5080 = vmatprep.mubr.f32.mxu0 0.0
    %v5081 = vand.u32 %v4801, 4294901760
    %5082 = vmatmul.mubr.f32.gmra.mxu0 %v5081
    %v5083 = vpop.f32.mrf.mxu0
    %v5084 = vadd.f32 %v4911, %v5083
    %v5085 = vpop.f32.mrf.mxu0
    %5086 = vmatprep.mubr.f32.mxu0 0.0
    %v5087 = vand.u32 %v4802, 4294901760
    %5088 = vmatmul.mubr.f32.gmra.mxu0 %v5087
    %v5089 = vpop.f32.mrf.mxu0
    %v5090 = vadd.f32 %v4921, %v5089
    %v5091 = vpop.f32.mrf.mxu0
    %5092 = vdwg.mxu0
    %5093 = vmatprep.subr.mxu0 0.0
    %v5094 = vand.u32 %v79, 4294901760
    %v5095 = vsub.f32 %v79, %v5094
    %5096 = vmatpush1.msra.mxu0 %v5095
    %5097 = vmatprep.subr.mxu0 0.0
    %v5098 = vand.u32 %v78, 4294901760
    %v5099 = vsub.f32 %v78, %v5098
    %5100 = vmatpush1.msra.mxu0 %v5099
    %5101 = vmatprep.subr.mxu0 0.0
    %v5102 = vand.u32 %v77, 4294901760
    %v5103 = vsub.f32 %v77, %v5102
    %5104 = vmatpush1.msra.mxu0 %v5103
    %5105 = vmatprep.subr.mxu0 0.0
    %v5106 = vand.u32 %v76, 4294901760
    %v5107 = vsub.f32 %v76, %v5106
    %5108 = vmatpush1.msra.mxu0 %v5107
    %5109 = vmatprep.subr.mxu0 0.0
    %v5110 = vand.u32 %v75, 4294901760
    %v5111 = vsub.f32 %v75, %v5110
    %5112 = vmatpush1.msra.mxu0 %v5111
    %5113 = vmatprep.subr.mxu0 0.0
    %v5114 = vand.u32 %v74, 4294901760
    %v5115 = vsub.f32 %v74, %v5114
    %5116 = vmatpush1.msra.mxu0 %v5115
    %5117 = vmatprep.subr.mxu0 0.0
    %v5118 = vand.u32 %v73, 4294901760
    %v5119 = vsub.f32 %v73, %v5118
    %5120 = vmatpush1.msra.mxu0 %v5119
    %5121 = vmatprep.subr.mxu0 0.0
    %v5122 = vand.u32 %v72, 4294901760
    %v5123 = vsub.f32 %v72, %v5122
    %5124 = vmatpush1.msra.mxu0 %v5123
    %5125 = vmatprep.subr.mxu0 0.0
    %v5126 = vand.u32 %v71, 4294901760
    %v5127 = vsub.f32 %v71, %v5126
    %5128 = vmatpush1.msra.mxu0 %v5127
    %5129 = vmatprep.subr.mxu0 0.0
    %v5130 = vand.u32 %v70, 4294901760
    %v5131 = vsub.f32 %v70, %v5130
    %5132 = vmatpush1.msra.mxu0 %v5131
    %5133 = vmatprep.subr.mxu0 0.0
    %v5134 = vand.u32 %v69, 4294901760
    %v5135 = vsub.f32 %v69, %v5134
    %5136 = vmatpush1.msra.mxu0 %v5135
    %5137 = vmatprep.subr.mxu0 0.0
    %v5138 = vand.u32 %v68, 4294901760
    %v5139 = vsub.f32 %v68, %v5138
    %5140 = vmatpush1.msra.mxu0 %v5139
    %5141 = vmatprep.subr.mxu0 0.0
    %v5142 = vand.u32 %v67, 4294901760
    %v5143 = vsub.f32 %v67, %v5142
    %5144 = vmatpush1.msra.mxu0 %v5143
    %5145 = vmatprep.subr.mxu0 0.0
    %v5146 = vand.u32 %v66, 4294901760
    %v5147 = vsub.f32 %v66, %v5146
    %5148 = vmatpush1.msra.mxu0 %v5147
    %5149 = vmatprep.subr.mxu0 0.0
    %v5150 = vand.u32 %v65, 4294901760
    %v5151 = vsub.f32 %v65, %v5150
    %5152 = vmatpush1.msra.mxu0 %v5151
    %5153 = vmatprep.subr.mxu0 0.0
    %v5154 = vand.u32 %v64, 4294901760
    %v5155 = vsub.f32 %v64, %v5154
    %5156 = vmatpush1.msra.mxu0 %v5155
    %5157 = vmatprep.subr.mxu0 0.0
    %5158 = vmatpush2.msra.mxu0 0.0
    %5159 = vmatprep.subr.mxu0 0.0
    %5160 = vmatpush2.msra.mxu0 0.0
    %5161 = vmatprep.subr.mxu0 0.0
    %5162 = vmatpush2.msra.mxu0 0.0
    %5163 = vmatprep.subr.mxu0 0.0
    %5164 = vmatpush2.msra.mxu0 0.0
    %5165 = vmatprep.subr.mxu0 0.0
    %5166 = vmatpush2.msra.mxu0 0.0
    %5167 = vmatprep.subr.mxu0 0.0
    %5168 = vmatpush2.msra.mxu0 0.0
    %5169 = vmatprep.subr.mxu0 0.0
    %5170 = vmatpush2.msra.mxu0 0.0
    %5171 = vmatprep.subr.mxu0 0.0
    %5172 = vmatpush2.msra.mxu0 0.0
    %5173 = vmatprep.subr.mxu0 0.0
    %5174 = vmatpush2.msra.mxu0 0.0
    %5175 = vmatprep.subr.mxu0 0.0
    %5176 = vmatpush2.msra.mxu0 0.0
    %5177 = vmatprep.subr.mxu0 0.0
    %5178 = vmatpush2.msra.mxu0 0.0
    %5179 = vmatprep.subr.mxu0 0.0
    %5180 = vmatpush2.msra.mxu0 0.0
    %5181 = vmatprep.subr.mxu0 0.0
    %5182 = vmatpush2.msra.mxu0 0.0
    %5183 = vmatprep.subr.mxu0 0.0
    %5184 = vmatpush2.msra.mxu0 0.0
    %5185 = vmatprep.subr.mxu0 0.0
    %5186 = vmatpush2.msra.mxu0 0.0
    %5187 = vmatprep.subr.mxu0 0.0
    %5188 = vmatpush2.msra.mxu0 0.0
    %5189 = vmatprep.mubr.f32.mxu0 0.0
    %v5190 = vand.u32 %v4799, 4294901760
    %v5191 = vsub.f32 %v4799, %v5190
    %5192 = vmatmul.mubr.f32.gmra.mxu0 %v5191
    %v5193 = vpop.f32.mrf.mxu0
    %v5194 = vadd.f32 %v5072, %v5193
    %v5195 = vpop.f32.mrf.mxu0
    %5196 = vmatprep.mubr.f32.mxu0 0.0
    %v5197 = vand.u32 %v4800, 4294901760
    %v5198 = vsub.f32 %v4800, %v5197
    %5199 = vmatmul.mubr.f32.gmra.mxu0 %v5198
    %v5200 = vpop.f32.mrf.mxu0
    %v5201 = vadd.f32 %v5078, %v5200
    %v5202 = vpop.f32.mrf.mxu0
    %5203 = vmatprep.mubr.f32.mxu0 0.0
    %v5204 = vand.u32 %v4801, 4294901760
    %v5205 = vsub.f32 %v4801, %v5204
    %5206 = vmatmul.mubr.f32.gmra.mxu0 %v5205
    %v5207 = vpop.f32.mrf.mxu0
    %v5208 = vadd.f32 %v5084, %v5207
    %v5209 = vpop.f32.mrf.mxu0
    %5210 = vmatprep.mubr.f32.mxu0 0.0
    %v5211 = vand.u32 %v4802, 4294901760
    %v5212 = vsub.f32 %v4802, %v5211
    %5213 = vmatmul.mubr.f32.gmra.mxu0 %v5212
    %v5214 = vpop.f32.mrf.mxu0
    %v5215 = vadd.f32 %v5090, %v5214
    %v5216 = vpop.f32.mrf.mxu0
    %5217 = vdwg.mxu0
    %5218 = vmatprep.subr.mxu0 0.0
    %v5219 = vand.u32 %v79, 4294901760
    %5220 = vmatpush1.msra.mxu0 %v5219
    %5221 = vmatprep.subr.mxu0 0.0
    %v5222 = vand.u32 %v78, 4294901760
    %5223 = vmatpush1.msra.mxu0 %v5222
    %5224 = vmatprep.subr.mxu0 0.0
    %v5225 = vand.u32 %v77, 4294901760
    %5226 = vmatpush1.msra.mxu0 %v5225
    %5227 = vmatprep.subr.mxu0 0.0
    %v5228 = vand.u32 %v76, 4294901760
    %5229 = vmatpush1.msra.mxu0 %v5228
    %5230 = vmatprep.subr.mxu0 0.0
    %v5231 = vand.u32 %v75, 4294901760
    %5232 = vmatpush1.msra.mxu0 %v5231
    %5233 = vmatprep.subr.mxu0 0.0
    %v5234 = vand.u32 %v74, 4294901760
    %5235 = vmatpush1.msra.mxu0 %v5234
    %5236 = vmatprep.subr.mxu0 0.0
    %v5237 = vand.u32 %v73, 4294901760
    %5238 = vmatpush1.msra.mxu0 %v5237
    %5239 = vmatprep.subr.mxu0 0.0
    %v5240 = vand.u32 %v72, 4294901760
    %5241 = vmatpush1.msra.mxu0 %v5240
    %5242 = vmatprep.subr.mxu0 0.0
    %v5243 = vand.u32 %v71, 4294901760
    %5244 = vmatpush1.msra.mxu0 %v5243
    %5245 = vmatprep.subr.mxu0 0.0
    %v5246 = vand.u32 %v70, 4294901760
    %5247 = vmatpush1.msra.mxu0 %v5246
    %5248 = vmatprep.subr.mxu0 0.0
    %v5249 = vand.u32 %v69, 4294901760
    %5250 = vmatpush1.msra.mxu0 %v5249
    %5251 = vmatprep.subr.mxu0 0.0
    %v5252 = vand.u32 %v68, 4294901760
    %5253 = vmatpush1.msra.mxu0 %v5252
    %5254 = vmatprep.subr.mxu0 0.0
    %v5255 = vand.u32 %v67, 4294901760
    %5256 = vmatpush1.msra.mxu0 %v5255
    %5257 = vmatprep.subr.mxu0 0.0
    %v5258 = vand.u32 %v66, 4294901760
    %5259 = vmatpush1.msra.mxu0 %v5258
    %5260 = vmatprep.subr.mxu0 0.0
    %v5261 = vand.u32 %v65, 4294901760
    %5262 = vmatpush1.msra.mxu0 %v5261
    %5263 = vmatprep.subr.mxu0 0.0
    %v5264 = vand.u32 %v64, 4294901760
    %5265 = vmatpush1.msra.mxu0 %v5264
    %5266 = vmatprep.subr.mxu0 0.0
    %5267 = vmatpush2.msra.mxu0 0.0
    %5268 = vmatprep.subr.mxu0 0.0
    %5269 = vmatpush2.msra.mxu0 0.0
    %5270 = vmatprep.subr.mxu0 0.0
    %5271 = vmatpush2.msra.mxu0 0.0
    %5272 = vmatprep.subr.mxu0 0.0
    %5273 = vmatpush2.msra.mxu0 0.0
    %5274 = vmatprep.subr.mxu0 0.0
    %5275 = vmatpush2.msra.mxu0 0.0
    %5276 = vmatprep.subr.mxu0 0.0
    %5277 = vmatpush2.msra.mxu0 0.0
    %5278 = vmatprep.subr.mxu0 0.0
    %5279 = vmatpush2.msra.mxu0 0.0
    %5280 = vmatprep.subr.mxu0 0.0
    %5281 = vmatpush2.msra.mxu0 0.0
    %5282 = vmatprep.subr.mxu0 0.0
    %5283 = vmatpush2.msra.mxu0 0.0
    %5284 = vmatprep.subr.mxu0 0.0
    %5285 = vmatpush2.msra.mxu0 0.0
    %5286 = vmatprep.subr.mxu0 0.0
    %5287 = vmatpush2.msra.mxu0 0.0
    %5288 = vmatprep.subr.mxu0 0.0
    %5289 = vmatpush2.msra.mxu0 0.0
    %5290 = vmatprep.subr.mxu0 0.0
    %5291 = vmatpush2.msra.mxu0 0.0
    %5292 = vmatprep.subr.mxu0 0.0
    %5293 = vmatpush2.msra.mxu0 0.0
    %5294 = vmatprep.subr.mxu0 0.0
    %5295 = vmatpush2.msra.mxu0 0.0
    %5296 = vmatprep.subr.mxu0 0.0
    %5297 = vmatpush2.msra.mxu0 0.0
    %5298 = vmatprep.mubr.f32.mxu0 0.0
    %v5299 = vand.u32 %v4799, 4294901760
    %v5300 = vsub.f32 %v4799, %v5299
    %v5301 = vand.u32 %v5300, 4294901760
    %5302 = vmatmul.mubr.f32.gmra.mxu0 %v5301
    %v5303 = vpop.f32.mrf.mxu0
    %v5304 = vadd.f32 %v5194, %v5303
    %v5305 = vpop.f32.mrf.mxu0
    %5306 = vmatprep.mubr.f32.mxu0 0.0
    %v5307 = vand.u32 %v4800, 4294901760
    %v5308 = vsub.f32 %v4800, %v5307
    %v5309 = vand.u32 %v5308, 4294901760
    %5310 = vmatmul.mubr.f32.gmra.mxu0 %v5309
    %v5311 = vpop.f32.mrf.mxu0
    %v5312 = vadd.f32 %v5201, %v5311
    %v5313 = vpop.f32.mrf.mxu0
    %5314 = vmatprep.mubr.f32.mxu0 0.0
    %v5315 = vand.u32 %v4801, 4294901760
    %v5316 = vsub.f32 %v4801, %v5315
    %v5317 = vand.u32 %v5316, 4294901760
    %5318 = vmatmul.mubr.f32.gmra.mxu0 %v5317
    %v5319 = vpop.f32.mrf.mxu0
    %v5320 = vadd.f32 %v5208, %v5319
    %v5321 = vpop.f32.mrf.mxu0
    %5322 = vmatprep.mubr.f32.mxu0 0.0
    %v5323 = vand.u32 %v4802, 4294901760
    %v5324 = vsub.f32 %v4802, %v5323
    %v5325 = vand.u32 %v5324, 4294901760
    %5326 = vmatmul.mubr.f32.gmra.mxu0 %v5325
    %v5327 = vpop.f32.mrf.mxu0
    %v5328 = vadd.f32 %v5215, %v5327
    %v5329 = vpop.f32.mrf.mxu0
    %5330 = vdwg.mxu0
    %5331 = vmatprep.subr.mxu0 0.0
    %v5332 = vand.u32 %v79, 4294901760
    %v5333 = vsub.f32 %v79, %v5332
    %v5334 = vand.u32 %v5333, 4294901760
    %5335 = vmatpush1.msra.mxu0 %v5334
    %5336 = vmatprep.subr.mxu0 0.0
    %v5337 = vand.u32 %v78, 4294901760
    %v5338 = vsub.f32 %v78, %v5337
    %v5339 = vand.u32 %v5338, 4294901760
    %5340 = vmatpush1.msra.mxu0 %v5339
    %5341 = vmatprep.subr.mxu0 0.0
    %v5342 = vand.u32 %v77, 4294901760
    %v5343 = vsub.f32 %v77, %v5342
    %v5344 = vand.u32 %v5343, 4294901760
    %5345 = vmatpush1.msra.mxu0 %v5344
    %5346 = vmatprep.subr.mxu0 0.0
    %v5347 = vand.u32 %v76, 4294901760
    %v5348 = vsub.f32 %v76, %v5347
    %v5349 = vand.u32 %v5348, 4294901760
    %5350 = vmatpush1.msra.mxu0 %v5349
    %5351 = vmatprep.subr.mxu0 0.0
    %v5352 = vand.u32 %v75, 4294901760
    %v5353 = vsub.f32 %v75, %v5352
    %v5354 = vand.u32 %v5353, 4294901760
    %5355 = vmatpush1.msra.mxu0 %v5354
    %5356 = vmatprep.subr.mxu0 0.0
    %v5357 = vand.u32 %v74, 4294901760
    %v5358 = vsub.f32 %v74, %v5357
    %v5359 = vand.u32 %v5358, 4294901760
    %5360 = vmatpush1.msra.mxu0 %v5359
    %5361 = vmatprep.subr.mxu0 0.0
    %v5362 = vand.u32 %v73, 4294901760
    %v5363 = vsub.f32 %v73, %v5362
    %v5364 = vand.u32 %v5363, 4294901760
    %5365 = vmatpush1.msra.mxu0 %v5364
    %5366 = vmatprep.subr.mxu0 0.0
    %v5367 = vand.u32 %v72, 4294901760
    %v5368 = vsub.f32 %v72, %v5367
    %v5369 = vand.u32 %v5368, 4294901760
    %5370 = vmatpush1.msra.mxu0 %v5369
    %5371 = vmatprep.subr.mxu0 0.0
    %v5372 = vand.u32 %v71, 4294901760
    %v5373 = vsub.f32 %v71, %v5372
    %v5374 = vand.u32 %v5373, 4294901760
    %5375 = vmatpush1.msra.mxu0 %v5374
    %5376 = vmatprep.subr.mxu0 0.0
    %v5377 = vand.u32 %v70, 4294901760
    %v5378 = vsub.f32 %v70, %v5377
    %v5379 = vand.u32 %v5378, 4294901760
    %5380 = vmatpush1.msra.mxu0 %v5379
    %5381 = vmatprep.subr.mxu0 0.0
    %v5382 = vand.u32 %v69, 4294901760
    %v5383 = vsub.f32 %v69, %v5382
    %v5384 = vand.u32 %v5383, 4294901760
    %5385 = vmatpush1.msra.mxu0 %v5384
    %5386 = vmatprep.subr.mxu0 0.0
    %v5387 = vand.u32 %v68, 4294901760
    %v5388 = vsub.f32 %v68, %v5387
    %v5389 = vand.u32 %v5388, 4294901760
    %5390 = vmatpush1.msra.mxu0 %v5389
    %5391 = vmatprep.subr.mxu0 0.0
    %v5392 = vand.u32 %v67, 4294901760
    %v5393 = vsub.f32 %v67, %v5392
    %v5394 = vand.u32 %v5393, 4294901760
    %5395 = vmatpush1.msra.mxu0 %v5394
    %5396 = vmatprep.subr.mxu0 0.0
    %v5397 = vand.u32 %v66, 4294901760
    %v5398 = vsub.f32 %v66, %v5397
    %v5399 = vand.u32 %v5398, 4294901760
    %5400 = vmatpush1.msra.mxu0 %v5399
    %5401 = vmatprep.subr.mxu0 0.0
    %v5402 = vand.u32 %v65, 4294901760
    %v5403 = vsub.f32 %v65, %v5402
    %v5404 = vand.u32 %v5403, 4294901760
    %5405 = vmatpush1.msra.mxu0 %v5404
    %5406 = vmatprep.subr.mxu0 0.0
    %v5407 = vand.u32 %v64, 4294901760
    %v5408 = vsub.f32 %v64, %v5407
    %v5409 = vand.u32 %v5408, 4294901760
    %5410 = vmatpush1.msra.mxu0 %v5409
    %5411 = vmatprep.subr.mxu0 0.0
    %5412 = vmatpush2.msra.mxu0 0.0
    %5413 = vmatprep.subr.mxu0 0.0
    %5414 = vmatpush2.msra.mxu0 0.0
    %5415 = vmatprep.subr.mxu0 0.0
    %5416 = vmatpush2.msra.mxu0 0.0
    %5417 = vmatprep.subr.mxu0 0.0
    %5418 = vmatpush2.msra.mxu0 0.0
    %5419 = vmatprep.subr.mxu0 0.0
    %5420 = vmatpush2.msra.mxu0 0.0
    %5421 = vmatprep.subr.mxu0 0.0
    %5422 = vmatpush2.msra.mxu0 0.0
    %5423 = vmatprep.subr.mxu0 0.0
    %5424 = vmatpush2.msra.mxu0 0.0
    %5425 = vmatprep.subr.mxu0 0.0
    %5426 = vmatpush2.msra.mxu0 0.0
    %5427 = vmatprep.subr.mxu0 0.0
    %5428 = vmatpush2.msra.mxu0 0.0
    %5429 = vmatprep.subr.mxu0 0.0
    %5430 = vmatpush2.msra.mxu0 0.0
    %5431 = vmatprep.subr.mxu0 0.0
    %5432 = vmatpush2.msra.mxu0 0.0
    %5433 = vmatprep.subr.mxu0 0.0
    %5434 = vmatpush2.msra.mxu0 0.0
    %5435 = vmatprep.subr.mxu0 0.0
    %5436 = vmatpush2.msra.mxu0 0.0
    %5437 = vmatprep.subr.mxu0 0.0
    %5438 = vmatpush2.msra.mxu0 0.0
    %5439 = vmatprep.subr.mxu0 0.0
    %5440 = vmatpush2.msra.mxu0 0.0
    %5441 = vmatprep.subr.mxu0 0.0
    %5442 = vmatpush2.msra.mxu0 0.0
    %5443 = vmatprep.mubr.f32.mxu0 0.0
    %v5444 = vand.u32 %v4799, 4294901760
    %5445 = vmatmul.mubr.f32.gmra.mxu0 %v5444
    %v5446 = vpop.f32.mrf.mxu0
    %v5447 = vadd.f32 %v5304, %v5446
    %v5448 = vpop.f32.mrf.mxu0
    %5449 = vmatprep.mubr.f32.mxu0 0.0
    %v5450 = vand.u32 %v4800, 4294901760
    %5451 = vmatmul.mubr.f32.gmra.mxu0 %v5450
    %v5452 = vpop.f32.mrf.mxu0
    %v5453 = vadd.f32 %v5312, %v5452
    %v5454 = vpop.f32.mrf.mxu0
    %5455 = vmatprep.mubr.f32.mxu0 0.0
    %v5456 = vand.u32 %v4801, 4294901760
    %5457 = vmatmul.mubr.f32.gmra.mxu0 %v5456
    %v5458 = vpop.f32.mrf.mxu0
    %v5459 = vadd.f32 %v5320, %v5458
    %v5460 = vpop.f32.mrf.mxu0
    %5461 = vmatprep.mubr.f32.mxu0 0.0
    %v5462 = vand.u32 %v4802, 4294901760
    %5463 = vmatmul.mubr.f32.gmra.mxu0 %v5462
    %v5464 = vpop.f32.mrf.mxu0
    %v5465 = vadd.f32 %v5328, %v5464
    %v5466 = vpop.f32.mrf.mxu0
    %5467 = vdwg.mxu0
    %5468 = vmatprep.subr.mxu0 0.0
    %v5469 = vand.u32 %v79, 4294901760
    %5470 = vmatpush1.msra.mxu0 %v5469
    %5471 = vmatprep.subr.mxu0 0.0
    %v5472 = vand.u32 %v78, 4294901760
    %5473 = vmatpush1.msra.mxu0 %v5472
    %5474 = vmatprep.subr.mxu0 0.0
    %v5475 = vand.u32 %v77, 4294901760
    %5476 = vmatpush1.msra.mxu0 %v5475
    %5477 = vmatprep.subr.mxu0 0.0
    %v5478 = vand.u32 %v76, 4294901760
    %5479 = vmatpush1.msra.mxu0 %v5478
    %5480 = vmatprep.subr.mxu0 0.0
    %v5481 = vand.u32 %v75, 4294901760
    %5482 = vmatpush1.msra.mxu0 %v5481
    %5483 = vmatprep.subr.mxu0 0.0
    %v5484 = vand.u32 %v74, 4294901760
    %5485 = vmatpush1.msra.mxu0 %v5484
    %5486 = vmatprep.subr.mxu0 0.0
    %v5487 = vand.u32 %v73, 4294901760
    %5488 = vmatpush1.msra.mxu0 %v5487
    %5489 = vmatprep.subr.mxu0 0.0
    %v5490 = vand.u32 %v72, 4294901760
    %5491 = vmatpush1.msra.mxu0 %v5490
    %5492 = vmatprep.subr.mxu0 0.0
    %v5493 = vand.u32 %v71, 4294901760
    %5494 = vmatpush1.msra.mxu0 %v5493
    %5495 = vmatprep.subr.mxu0 0.0
    %v5496 = vand.u32 %v70, 4294901760
    %5497 = vmatpush1.msra.mxu0 %v5496
    %5498 = vmatprep.subr.mxu0 0.0
    %v5499 = vand.u32 %v69, 4294901760
    %5500 = vmatpush1.msra.mxu0 %v5499
    %5501 = vmatprep.subr.mxu0 0.0
    %v5502 = vand.u32 %v68, 4294901760
    %5503 = vmatpush1.msra.mxu0 %v5502
    %5504 = vmatprep.subr.mxu0 0.0
    %v5505 = vand.u32 %v67, 4294901760
    %5506 = vmatpush1.msra.mxu0 %v5505
    %5507 = vmatprep.subr.mxu0 0.0
    %v5508 = vand.u32 %v66, 4294901760
    %5509 = vmatpush1.msra.mxu0 %v5508
    %5510 = vmatprep.subr.mxu0 0.0
    %v5511 = vand.u32 %v65, 4294901760
    %5512 = vmatpush1.msra.mxu0 %v5511
    %5513 = vmatprep.subr.mxu0 0.0
    %v5514 = vand.u32 %v64, 4294901760
    %5515 = vmatpush1.msra.mxu0 %v5514
    %5516 = vmatprep.subr.mxu0 0.0
    %5517 = vmatpush2.msra.mxu0 0.0
    %5518 = vmatprep.subr.mxu0 0.0
    %5519 = vmatpush2.msra.mxu0 0.0
    %5520 = vmatprep.subr.mxu0 0.0
    %5521 = vmatpush2.msra.mxu0 0.0
    %5522 = vmatprep.subr.mxu0 0.0
    %5523 = vmatpush2.msra.mxu0 0.0
    %5524 = vmatprep.subr.mxu0 0.0
    %5525 = vmatpush2.msra.mxu0 0.0
    %5526 = vmatprep.subr.mxu0 0.0
    %5527 = vmatpush2.msra.mxu0 0.0
    %5528 = vmatprep.subr.mxu0 0.0
    %5529 = vmatpush2.msra.mxu0 0.0
    %5530 = vmatprep.subr.mxu0 0.0
    %5531 = vmatpush2.msra.mxu0 0.0
    %5532 = vmatprep.subr.mxu0 0.0
    %5533 = vmatpush2.msra.mxu0 0.0
    %5534 = vmatprep.subr.mxu0 0.0
    %5535 = vmatpush2.msra.mxu0 0.0
    %5536 = vmatprep.subr.mxu0 0.0
    %5537 = vmatpush2.msra.mxu0 0.0
    %5538 = vmatprep.subr.mxu0 0.0
    %5539 = vmatpush2.msra.mxu0 0.0
    %5540 = vmatprep.subr.mxu0 0.0
    %5541 = vmatpush2.msra.mxu0 0.0
    %5542 = vmatprep.subr.mxu0 0.0
    %5543 = vmatpush2.msra.mxu0 0.0
    %5544 = vmatprep.subr.mxu0 0.0
    %5545 = vmatpush2.msra.mxu0 0.0
    %5546 = vmatprep.subr.mxu0 0.0
    %5547 = vmatpush2.msra.mxu0 0.0
    %5548 = vmatprep.mubr.f32.mxu0 0.0
    %v5549 = vand.u32 %v4799, 4294901760
    %5550 = vmatmul.mubr.f32.gmra.mxu0 %v5549
    %v5551 = vpop.f32.mrf.mxu0
    %v5552 = vadd.f32 %v5447, %v5551
    %v5553 = vpop.f32.mrf.mxu0
    %5554 = vmatprep.mubr.f32.mxu0 0.0
    %v5555 = vand.u32 %v4800, 4294901760
    %5556 = vmatmul.mubr.f32.gmra.mxu0 %v5555
    %v5557 = vpop.f32.mrf.mxu0
    %v5558 = vadd.f32 %v5453, %v5557
    %v5559 = vpop.f32.mrf.mxu0
    %5560 = vmatprep.mubr.f32.mxu0 0.0
    %v5561 = vand.u32 %v4801, 4294901760
    %5562 = vmatmul.mubr.f32.gmra.mxu0 %v5561
    %v5563 = vpop.f32.mrf.mxu0
    %v5564 = vadd.f32 %v5459, %v5563
    %v5565 = vpop.f32.mrf.mxu0
    %5566 = vmatprep.mubr.f32.mxu0 0.0
    %v5567 = vand.u32 %v4802, 4294901760
    %5568 = vmatmul.mubr.f32.gmra.mxu0 %v5567
    %v5569 = vpop.f32.mrf.mxu0
    %v5570 = vadd.f32 %v5465, %v5569
    %v5571 = vpop.f32.mrf.mxu0
    %5572 = vdwg.mxu0
    %v5573 = vsub.f32 %v5552, %v44
    %v5574 = vsub.f32 %v5558, %v45
    %v5575 = vsub.f32 %v5564, %v46
    %v5576 = vsub.f32 %v5570, %v47
    %v5577 = vmul.f32 %v48, %v5573
    %v5578 = vmul.f32 %v49, %v5574
    %v5579 = vmul.f32 %v50, %v5575
    %v5580 = vmul.f32 %v51, %v5576
    %v5581 = vxor.u32 %v5577, 2147483648
    %v5582 = vxor.u32 %v5578, 2147483648
    %v5583 = vxor.u32 %v5579, 2147483648
    %v5584 = vxor.u32 %v5580, 2147483648
    %v5585 = vmul.f32 %v5581, 1.442695
    %v5586 = vpow.pop %v5585
    %v5587 = vmul.f32 %v5582, 1.442695
    %v5588 = vpow.pop %v5587
    %v5589 = vmul.f32 %v5583, 1.442695
    %v5590 = vpow.pop %v5589
    %v5591 = vmul.f32 %v5584, 1.442695
    %v5592 = vpow.pop %v5591
    %v5593 = vadd.f32 %v5586, 1.0
    %v5594 = vadd.f32 %v5588, 1.0
    %v5595 = vadd.f32 %v5590, 1.0
    %v5596 = vadd.f32 %v5592, 1.0
    %v5597 = vrcp.pop %v5593
    %v5598 = vmul.f32 1.0, %v5597
    %v5599 = vrcp.pop %v5594
    %v5600 = vmul.f32 1.0, %v5599
    %v5601 = vrcp.pop %v5595
    %v5602 = vmul.f32 1.0, %v5601
    %v5603 = vrcp.pop %v5596
    %v5604 = vmul.f32 1.0, %v5603
    %v5605 = vmul.f32 %v56, %v5598
    %v5606 = vmul.f32 %v57, %v5600
    %v5607 = vmul.f32 %v58, %v5602
    %v5608 = vmul.f32 %v59, %v5604
    %v5609 = vadd.f32 %v5605, %v5606
    %v5610 = vadd.f32 %v5609, %v5607
    %v5611 = vadd.f32 %v5610, %v5608
    %v5612 = vrot.slane %v5611, 4
    %v5613 = vadd.f32 %v5611, %v5612
    %v5614 = vrot.slane %v5613, 2
    %v5615 = vadd.f32 %v5613, %v5614
    %v5616 = vrot.slane %v5615, 1
    %v5617 = vadd.f32 %v5615, %v5616
    %v5618 = vadd.f32 %v5617, %v559
    %v5619 = vmul.f32 %v52, %v5598
    %v5620 = vmul.f32 %v53, %v5600
    %v5621 = vmul.f32 %v54, %v5602
    %v5622 = vmul.f32 %v55, %v5604
    %v5623 = vadd.f32 %v5619, %v5620
    %v5624 = vadd.f32 %v5623, %v5621
    %v5625 = vadd.f32 %v5624, %v5622
    %v5626 = vrot.slane %v5625, 4
    %v5627 = vadd.f32 %v5625, %v5626
    %v5628 = vrot.slane %v5627, 2
    %v5629 = vadd.f32 %v5627, %v5628
    %v5630 = vrot.slane %v5629, 1
    %v5631 = vadd.f32 %v5629, %v5630
    %v5632 = vadd.f32 %v5631, %v566
    %v5633 = vmul.f32 %v87, %v4794
    %v5634 = vmul.f32 %v88, %v5618
    %v5635 = vadd.f32 %v5633, %v5634
    %v5636 = vadd.f32 %v89, %v5632
    %v5637 = vadd.f32 %v5636, 1e-08
    %v5638 = vrcp.pop %v5637
    %v5639 = vmul.f32 %v5635, %v5638
    %5640 = vst [vmem:[#allocation8] sm:$0x1] %v5639
    %v5641 = vmul.f32 %v5639, %v90
    %v5642 = vadd.f32 %v5641, %v91
    %5643 = vst [vmem:[#allocation7] sm:$0x1] %v5642
    // Predicated region
    $region22: #{tpu_custom_call.1} parent=1 // pred_check
      _
    $region23: #{tpu_custom_call.1} parent=1 // pred_check_branch
      %5645 = sbr.rel (0) target = $region25
    $region24: #{tpu_custom_call.1} parent=1 // pred_region
      %s5647 = ssub.s32 16, 16
      %5648 = vsyncadd [#allocation4], %s5647
      %s5650 = sshll.u32 [#allocation7], 4
      %s5651 = int_to_ptr.vmem [resolvable:$true] %s5650
      %5653 = dma.vmem_to_hbm [thread:$0]  %s5651, 16, %s3, [#allocation4]
    $region25: #{tpu_custom_call.1} parent=1 // pred_fallthru
      _
    // Predicated region
    $region26: #{tpu_custom_call.1} parent=1 // pred_check
      _
    $region27: #{tpu_custom_call.1} parent=1 // pred_check_branch
      %5655 = sbr.rel (0) target = $region29
    $region28: #{tpu_custom_call.1} parent=1 // pred_region
      %s5657 = ssub.s32 16, 16
      %5658 = vsyncadd [#allocation9], %s5657
      %s5660 = sshll.u32 [#allocation8], 4
      %s5661 = int_to_ptr.vmem [resolvable:$true] %s5660
      %5663 = dma.vmem_to_hbm [thread:$0]  %s5661, 16, %s4, [#allocation9]
    $region29: #{tpu_custom_call.1} parent=1 // pred_fallthru
      _
    // Predicated region
    $region30: #{tpu_custom_call.1} parent=1 // pred_check
      _
    $region31: #{tpu_custom_call.1} parent=1 // pred_check_branch
      %5665 = sbr.rel (0) target = $region33
    $region32: #{tpu_custom_call.1} parent=1 // pred_region
      %5666 = dma.done [#allocation4], 16
    $region33: #{tpu_custom_call.1} parent=1 // pred_fallthru
      _
    // Predicated region
    $region34: #{tpu_custom_call.1} parent=1 // pred_check
      _
    $region35: #{tpu_custom_call.1} parent=1 // pred_check_branch
      %5668 = sbr.rel (0) target = $region37
    $region36: #{tpu_custom_call.1} parent=1 // pred_region
      %5669 = dma.done [#allocation9], 16
    $region37: #{tpu_custom_call.1} parent=1 // pred_fallthru
      _
    %5670 = vsyncpa [#allocation3], 1
    %5671 = vsyncpa [#allocation6], 1
    %5672 = vsyncpa [#allocation4], 1
    %5673 = vsyncpa [#allocation9], 1

</llo_original>
